<compile_context>
chip_gen: v6e
topology: v6e:2x2x1
jax: 0.10.0
libtpu: 0.0.40
codegen_flags: <defaults>
</compile_context>

<pallas_src>
import jax
import jax.numpy as jnp
from jax import lax
from jax.experimental import pallas as pl
from jax.experimental.pallas import tpu as pltpu


# ---------------------------------------------------------------------------
# Fused Pallas kernel (one batch element per grid step, channels-first layout)
# ---------------------------------------------------------------------------
def _csp_tiny_layer_kernel(x_ref, bw_ref, bscale_ref, bbias_ref,
                           w1t_ref, w2t_ref, tscale_ref, tbias_ref, out_ref):
    """Fused CSP tiny layer for one image.

    x_ref      : (1, C_in, H, W)       NCHW input block
    bw_ref     : (nb, Cs, 9*Cs) bf16   per-block 3x3 weights, col = ky*3*Cs + kx*Cs + cin
    bscale_ref : (nb, Cs, 1)    f32    folded BN scale per block
    bbias_ref  : (nb, Cs, 1)    f32    folded BN bias per block
    w1t_ref    : (Cout, Cs)     bf16   transition weight acting on the p1 half
    w2t_ref    : (Cout, Cs)     bf16   transition weight acting on the p2 half
    tscale_ref : (Cout, 1)      f32
    tbias_ref  : (Cout, 1)      f32
    out_ref    : (1, Cout, H*W)        NCHW output with spatial dims flattened (lane-dense)
    """
    _, _c_in, h, w = x_ref.shape
    num_blocks, cs, _ = bw_ref.shape
    hw = h * w

    x = x_ref[0].astype(jnp.float32)              # (C_in, H, W)
    p1 = x[:cs].reshape(cs, hw)                   # (Cs, HW)   first half of channels
    p2 = x[cs:]                                   # (Cs, H, W) second half

    zrow = jnp.zeros((cs, 1, w + 2), jnp.float32)
    zcol = jnp.zeros((cs, h, 1), jnp.float32)

    for b in range(num_blocks):
        # Zero padding (pad=1) is re-applied per conv, entirely in VMEM.
        xp = jnp.concatenate([zcol, p2, zcol], axis=2)        # (Cs, H,   W+2)
        xp = jnp.concatenate([zrow, xp, zrow], axis=1)        # (Cs, H+2, W+2)
        # im2col: one (9*Cs, HW) slab -> a single K = 9*Cs MXU matmul.
        patches = jnp.concatenate(
            [xp[:, ky:ky + h, kx:kx + w].reshape(cs, hw)
             for ky in range(3) for kx in range(3)], axis=0)   # (9*Cs, HW)
        acc = lax.dot_general(
            bw_ref[b], patches.astype(jnp.bfloat16),
            (((1,), (0,)), ((), ())),
            preferred_element_type=jnp.float32)                # (Cs, HW) f32 accum
        p2 = jnp.maximum(acc * bscale_ref[b] + bbias_ref[b], 0.0)   # folded BN + ReLU
        p2 = p2.reshape(cs, h, w)

    # Transition 1x1 conv: the channel concat is fused away:
    #   out = relu(BN(W1^T @ p1 + W2^T @ p2))
    p2 = p2.reshape(cs, hw)
    acc = lax.dot_general(w1t_ref[...], p1.astype(jnp.bfloat16),
                          (((1,), (0,)), ((), ())),
                          preferred_element_type=jnp.float32)
    acc = acc + lax.dot_general(w2t_ref[...], p2.astype(jnp.bfloat16),
                                (((1,), (0,)), ((), ())),
                                preferred_element_type=jnp.float32)
    y = jnp.maximum(acc * tscale_ref[...] + tbias_ref[...], 0.0)    # (Cout, HW)
    out_ref[0] = y.astype(out_ref.dtype)


# ---------------------------------------------------------------------------
# Wrapper (weight packing + pallas_call plumbing)
# ---------------------------------------------------------------------------
def csp_tiny_layer(x_nchw, params):
    """Forward pass matching CSPTinyLayer.forward (eval-mode BN). NCHW in / NCHW out."""
    n, c_in, h, w = x_nchw.shape
    split = params["split_channels"]
    if c_in != 2 * split:
        raise ValueError(
            "in_channels must be even: p2 carries in_channels - split channels but the "
            "tiny-block weights are (3,3,split,split).")
    blocks = params["blocks"]
    num_blocks = len(blocks)
    c_out = params["trans_w"].shape[1]
    hw = h * w

    # Per-block 3x3 weights: HWIO -> (Cs_out, 9*Cs_in), stacked over blocks, bf16 for MXU.
    bw = jnp.stack(
        [jnp.transpose(blk["w"], (3, 0, 1, 2)).reshape(split, 9 * split)
         for blk in blocks]).astype(jnp.bfloat16)                       # (nb, Cs, 9*Cs)
    bscale = jnp.stack([blk["scale"].reshape(split, 1) for blk in blocks]).astype(jnp.float32)
    bbias = jnp.stack([blk["bias"].reshape(split, 1) for blk in blocks]).astype(jnp.float32)

    # 1x1 transition weight split in two so the channel concat never materializes.
    w1t = jnp.transpose(params["trans_w"][:split]).astype(jnp.bfloat16)  # (Cout, split)
    w2t = jnp.transpose(params["trans_w"][split:]).astype(jnp.bfloat16)  # (Cout, split)
    tscale = params["trans_scale"].reshape(c_out, 1).astype(jnp.float32)
    tbias = params["trans_bias"].reshape(c_out, 1).astype(jnp.float32)

    const3 = lambda i: (0, 0, 0)   # weights: constant block index -> stay resident
    const2 = lambda i: (0, 0)

    out_flat = pl.pallas_call(
        _csp_tiny_layer_kernel,
        out_shape=jax.ShapeDtypeStruct((n, c_out, hw), x_nchw.dtype),
        grid=(n,),
        in_specs=[
            pl.BlockSpec((1, c_in, h, w), lambda i: (i, 0, 0, 0)),       # per-image input
            pl.BlockSpec((num_blocks, split, 9 * split), const3),
            pl.BlockSpec((num_blocks, split, 1), const3),
            pl.BlockSpec((num_blocks, split, 1), const3),
            pl.BlockSpec((c_out, split), const2),
            pl.BlockSpec((c_out, split), const2),
            pl.BlockSpec((c_out, 1), const2),
            pl.BlockSpec((c_out, 1), const2),
        ],
        out_specs=pl.BlockSpec((1, c_out, hw), lambda i: (i, 0, 0)),     # lane-dense store
        compiler_params=pltpu.CompilerParams(
            dimension_semantics=("parallel",),     # v7x: shard the batch over both TCs
            vmem_limit_bytes=48 * 1024 * 1024),
    )(x_nchw, bw, bscale, bbias, w1t, w2t, tscale, tbias)

    # (N, Cout, H*W) is already NCHW with spatial flattened; this reshape is free.
    return out_flat.reshape(n, c_out, h, w)


# ---------------------------------------------------------------------------
# Pure-JAX reference (for correctness checks)
# ---------------------------------------------------------------------------
def reference_forward(x_nchw, params, matmul_dtype=jnp.float32):
    """Reference CSPTinyLayer. `matmul_dtype` controls conv-operand precision so the
    kernel's bf16 MXU path can be checked with a tight tolerance."""
    split = params["split_channels"]
    x = jnp.transpose(x_nchw, (0, 2, 3, 1)).astype(jnp.float32)
    p1 = x[..., :split]
    p2 = x[..., split:]
    dn = ("NHWC", "HWIO", "NHWC")
    for blk in params["blocks"]:
        y = lax.conv_general_dilated(
            p2.astype(matmul_dtype), blk["w"].astype(matmul_dtype),
            (1, 1), "SAME", dimension_numbers=dn,
            preferred_element_type=jnp.float32)
        p2 = jnp.maximum(y * blk["scale"] + blk["bias"], 0.0)
    cat = jnp.concatenate([p1, p2], axis=-1)
    w11 = params["trans_w"].astype(matmul_dtype)[None, None]   # (1,1,Cin,Cout)
    y = lax.conv_general_dilated(
        cat.astype(matmul_dtype), w11, (1, 1), "SAME", dimension_numbers=dn,
        preferred_element_type=jnp.float32)
    out = jnp.maximum(y * params["trans_scale"] + params["trans_bias"], 0.0)
    return jnp.transpose(out, (0, 3, 1, 2))


# ---------------------------------------------------------------------------
# Deterministic parameter construction
# ---------------------------------------------------------------------------
def fold_bn(gamma, beta, mean, var, eps=1e-5):
    scale = gamma / jnp.sqrt(var + eps)
    bias = beta - mean * scale
    return scale.astype(jnp.float32), bias.astype(jnp.float32)


def make_params(key, in_channels, out_channels, num_blocks):
    split = in_channels // 2
    keys = jax.random.split(key, 2 * num_blocks + 2)
    blocks = []
    for i in range(num_blocks):
        w = 0.3 * jax.random.normal(keys[2 * i], (3, 3, split, split), jnp.float32)
        kb = jax.random.split(keys[2 * i + 1], 4)
        gamma = 1.0 + 0.1 * jax.random.normal(kb[0], (split,), jnp.float32)
        beta = 0.1 * jax.random.normal(kb[1], (split,), jnp.float32)
        mean = 0.1 * jax.random.normal(kb[2], (split,), jnp.float32)
        var = 0.5 + jax.random.uniform(kb[3], (split,), jnp.float32)
        scale, bias = fold_bn(gamma, beta, mean, var)
        blocks.append({"w": w, "scale": scale, "bias": bias})

    tw = 0.3 * jax.random.normal(keys[-2], (in_channels, out_channels), jnp.float32)
    kt = jax.random.split(keys[-1], 4)
    gamma = 1.0 + 0.1 * jax.random.normal(kt[0], (out_channels,), jnp.float32)
    beta = 0.1 * jax.random.normal(kt[1], (out_channels,), jnp.float32)
    mean = 0.1 * jax.random.normal(kt[2], (out_channels,), jnp.float32)
    var = 0.5 + jax.random.uniform(kt[3], (out_channels,), jnp.float32)
    tscale, tbias = fold_bn(gamma, beta, mean, var)

    return {"split_channels": split, "blocks": blocks,
            "trans_w": tw, "trans_scale": tscale, "trans_bias": tbias}


# ---------------------------------------------------------------------------
if __name__ == "__main__":
    key = jax.random.PRNGKey(0)
    k_x, k_p = jax.random.split(key)

    N, C_in, H, W = 2, 4, 16, 16
    C_out, num_blocks = 8, 2

    x = jax.random.normal(k_x, (N, C_in, H, W), jnp.float32)   # NCHW, as in PyTorch
    params = make_params(k_p, C_in, C_out, num_blocks)

    out = jax.block_until_ready(csp_tiny_layer(x, params))
    assert out.shape == (N, C_out, H, W), out.shape

    # 1) Tight check vs a reference with the same bf16 matmul-operand precision.
    ref_bf16 = jax.block_until_ready(reference_forward(x, params, jnp.bfloat16))
    err_bf16 = jnp.max(jnp.abs(out - ref_bf16))
    assert jnp.allclose(out, ref_bf16, rtol=1e-3, atol=1e-3), (
        f"max abs err vs bf16-operand reference = {err_bf16}")

    # 2) Loose sanity check vs the pure-fp32 reference (bf16 MXU quantization only).
    ref_f32 = jax.block_until_ready(reference_forward(x, params, jnp.float32))
    err_f32 = jnp.max(jnp.abs(out - ref_f32))
    assert jnp.allclose(out, ref_f32, rtol=1e-1, atol=1e-1), (
        f"max abs err vs fp32 reference = {err_f32}")

    print("KERNEL_OK")
</pallas_src>

<mosaic_0001>
module attributes {stable_mosaic.version = 11 : i64} {
  func.func @_csp_tiny_layer_kernel(%arg0: i32, %arg1: memref<1x4x16x16xf32, #tpu.memory_space<vmem>>, %arg2: memref<2x2x18xbf16, #tpu.memory_space<vmem>>, %arg3: memref<2x2x1xf32, #tpu.memory_space<vmem>>, %arg4: memref<2x2x1xf32, #tpu.memory_space<vmem>>, %arg5: memref<8x2xbf16, #tpu.memory_space<vmem>>, %arg6: memref<8x2xbf16, #tpu.memory_space<vmem>>, %arg7: memref<8x1xf32, #tpu.memory_space<vmem>>, %arg8: memref<8x1xf32, #tpu.memory_space<vmem>>, %arg9: memref<1x8x256xf32, #tpu.memory_space<vmem>>) attributes {dimension_semantics = [#tpu.dimension_semantics<parallel>], iteration_bounds = array<i64: 2>, scalar_prefetch = 0 : i64, scratch_operands = 0 : i64, tpu.core_type = #tpu.core_type<tc>, window_params = [{transform_indices = @transform_0, window_bounds = array<i64: 1, 4, 16, 16>}, {pipeline_mode = #tpu.pipeline_mode<synchronous>, transform_indices = @transform_1, window_bounds = array<i64: 2, 2, 18>}, {pipeline_mode = #tpu.pipeline_mode<synchronous>, transform_indices = @transform_2, window_bounds = array<i64: 2, 2, 1>}, {pipeline_mode = #tpu.pipeline_mode<synchronous>, transform_indices = @transform_3, window_bounds = array<i64: 2, 2, 1>}, {pipeline_mode = #tpu.pipeline_mode<synchronous>, transform_indices = @transform_4, window_bounds = array<i64: 8, 2>}, {pipeline_mode = #tpu.pipeline_mode<synchronous>, transform_indices = @transform_5, window_bounds = array<i64: 8, 2>}, {pipeline_mode = #tpu.pipeline_mode<synchronous>, transform_indices = @transform_6, window_bounds = array<i64: 8, 1>}, {pipeline_mode = #tpu.pipeline_mode<synchronous>, transform_indices = @transform_7, window_bounds = array<i64: 8, 1>}, {transform_indices = @transform_8, window_bounds = array<i64: 1, 8, 256>}]} {
    %c0 = arith.constant 0 : index
    %c0_0 = arith.constant 0 : index
    %c0_1 = arith.constant 0 : index
    %c0_2 = arith.constant 0 : index
    %0 = vector.load %arg1[%c0, %c0_0, %c0_1, %c0_2] : memref<1x4x16x16xf32, #tpu.memory_space<vmem>>, vector<1x4x16x16xf32>
    %1 = vector.shape_cast %0 : vector<1x4x16x16xf32> to vector<4x16x16xf32>
    %2 = vector.extract_strided_slice %1 {offsets = [0, 0, 0], sizes = [2, 16, 16], strides = [1, 1, 1]} : vector<4x16x16xf32> to vector<2x16x16xf32>
    %3 = vector.shape_cast %2 : vector<2x16x16xf32> to vector<2x256xf32>
    %4 = vector.extract_strided_slice %1 {offsets = [2, 0, 0], sizes = [2, 16, 16], strides = [1, 1, 1]} : vector<4x16x16xf32> to vector<2x16x16xf32>
    %cst = arith.constant 0.000000e+00 : f32
    %5 = vector.broadcast %cst : f32 to vector<2x1x18xf32>
    %cst_3 = arith.constant 0.000000e+00 : f32
    %6 = vector.broadcast %cst_3 : f32 to vector<2x16x1xf32>
    %7 = tpu.concatenate %6, %4, %6 in 2 : vector<2x16x1xf32>, vector<2x16x16xf32>, vector<2x16x1xf32> -> vector<2x16x18xf32>
    %8 = tpu.concatenate %5, %7, %5 in 1 : vector<2x1x18xf32>, vector<2x16x18xf32>, vector<2x1x18xf32> -> vector<2x18x18xf32>
    %9 = vector.extract_strided_slice %8 {offsets = [0, 0, 0], sizes = [2, 16, 16], strides = [1, 1, 1]} : vector<2x18x18xf32> to vector<2x16x16xf32>
    %10 = vector.shape_cast %9 : vector<2x16x16xf32> to vector<2x256xf32>
    %11 = vector.extract_strided_slice %8 {offsets = [0, 0, 1], sizes = [2, 16, 16], strides = [1, 1, 1]} : vector<2x18x18xf32> to vector<2x16x16xf32>
    %12 = vector.shape_cast %11 : vector<2x16x16xf32> to vector<2x256xf32>
    %13 = vector.extract_strided_slice %8 {offsets = [0, 0, 2], sizes = [2, 16, 16], strides = [1, 1, 1]} : vector<2x18x18xf32> to vector<2x16x16xf32>
    %14 = vector.shape_cast %13 : vector<2x16x16xf32> to vector<2x256xf32>
    %15 = vector.extract_strided_slice %8 {offsets = [0, 1, 0], sizes = [2, 16, 16], strides = [1, 1, 1]} : vector<2x18x18xf32> to vector<2x16x16xf32>
    %16 = vector.shape_cast %15 : vector<2x16x16xf32> to vector<2x256xf32>
    %17 = vector.extract_strided_slice %8 {offsets = [0, 1, 1], sizes = [2, 16, 16], strides = [1, 1, 1]} : vector<2x18x18xf32> to vector<2x16x16xf32>
    %18 = vector.shape_cast %17 : vector<2x16x16xf32> to vector<2x256xf32>
    %19 = vector.extract_strided_slice %8 {offsets = [0, 1, 2], sizes = [2, 16, 16], strides = [1, 1, 1]} : vector<2x18x18xf32> to vector<2x16x16xf32>
    %20 = vector.shape_cast %19 : vector<2x16x16xf32> to vector<2x256xf32>
    %21 = vector.extract_strided_slice %8 {offsets = [0, 2, 0], sizes = [2, 16, 16], strides = [1, 1, 1]} : vector<2x18x18xf32> to vector<2x16x16xf32>
    %22 = vector.shape_cast %21 : vector<2x16x16xf32> to vector<2x256xf32>
    %23 = vector.extract_strided_slice %8 {offsets = [0, 2, 1], sizes = [2, 16, 16], strides = [1, 1, 1]} : vector<2x18x18xf32> to vector<2x16x16xf32>
    %24 = vector.shape_cast %23 : vector<2x16x16xf32> to vector<2x256xf32>
    %25 = vector.extract_strided_slice %8 {offsets = [0, 2, 2], sizes = [2, 16, 16], strides = [1, 1, 1]} : vector<2x18x18xf32> to vector<2x16x16xf32>
    %26 = vector.shape_cast %25 : vector<2x16x16xf32> to vector<2x256xf32>
    %27 = tpu.concatenate %10, %12, %14, %16, %18, %20, %22, %24, %26 in 0 : vector<2x256xf32>, vector<2x256xf32>, vector<2x256xf32>, vector<2x256xf32>, vector<2x256xf32>, vector<2x256xf32>, vector<2x256xf32>, vector<2x256xf32>, vector<2x256xf32> -> vector<18x256xf32>
    %c0_4 = arith.constant 0 : index
    %c0_5 = arith.constant 0 : index
    %c0_6 = arith.constant 0 : index
    %28 = vector.load %arg2[%c0_4, %c0_5, %c0_6] : memref<2x2x18xbf16, #tpu.memory_space<vmem>>, vector<1x2x18xbf16>
    %29 = vector.shape_cast %28 : vector<1x2x18xbf16> to vector<2x18xbf16>
    %30 = arith.truncf %27 : vector<18x256xf32> to vector<18x256xbf16>
    %cst_7 = arith.constant dense<0.000000e+00> : vector<2x256xf32>
    %31 = tpu.matmul %29, %30, %cst_7 {dimension_numbers = #tpu.dot_dimension_numbers<[1], [0], [0], [1], [0, 0, 1, 1], [], []>} : vector<2x18xbf16>, vector<18x256xbf16>, vector<2x256xf32> -> vector<2x256xf32>
    %c0_8 = arith.constant 0 : index
    %c0_9 = arith.constant 0 : index
    %c0_10 = arith.constant 0 : index
    %32 = vector.load %arg3[%c0_8, %c0_9, %c0_10] : memref<2x2x1xf32, #tpu.memory_space<vmem>>, vector<1x2x1xf32>
    %33 = vector.shape_cast %32 : vector<1x2x1xf32> to vector<2x1xf32>
    %34 = vector.broadcast %33 : vector<2x1xf32> to vector<2x256xf32>
    %35 = arith.mulf %31, %34 : vector<2x256xf32>
    %c0_11 = arith.constant 0 : index
    %c0_12 = arith.constant 0 : index
    %c0_13 = arith.constant 0 : index
    %36 = vector.load %arg4[%c0_11, %c0_12, %c0_13] : memref<2x2x1xf32, #tpu.memory_space<vmem>>, vector<1x2x1xf32>
    %37 = vector.shape_cast %36 : vector<1x2x1xf32> to vector<2x1xf32>
    %38 = vector.broadcast %37 : vector<2x1xf32> to vector<2x256xf32>
    %39 = arith.addf %35, %38 : vector<2x256xf32>
    %cst_14 = arith.constant 0.000000e+00 : f32
    %40 = vector.broadcast %cst_14 : f32 to vector<2x256xf32>
    %41 = arith.maximumf %39, %40 : vector<2x256xf32>
    %42 = vector.shape_cast %41 : vector<2x256xf32> to vector<2x16x16xf32>
    %43 = tpu.concatenate %6, %42, %6 in 2 : vector<2x16x1xf32>, vector<2x16x16xf32>, vector<2x16x1xf32> -> vector<2x16x18xf32>
    %44 = tpu.concatenate %5, %43, %5 in 1 : vector<2x1x18xf32>, vector<2x16x18xf32>, vector<2x1x18xf32> -> vector<2x18x18xf32>
    %45 = vector.extract_strided_slice %44 {offsets = [0, 0, 0], sizes = [2, 16, 16], strides = [1, 1, 1]} : vector<2x18x18xf32> to vector<2x16x16xf32>
    %46 = vector.shape_cast %45 : vector<2x16x16xf32> to vector<2x256xf32>
    %47 = vector.extract_strided_slice %44 {offsets = [0, 0, 1], sizes = [2, 16, 16], strides = [1, 1, 1]} : vector<2x18x18xf32> to vector<2x16x16xf32>
    %48 = vector.shape_cast %47 : vector<2x16x16xf32> to vector<2x256xf32>
    %49 = vector.extract_strided_slice %44 {offsets = [0, 0, 2], sizes = [2, 16, 16], strides = [1, 1, 1]} : vector<2x18x18xf32> to vector<2x16x16xf32>
    %50 = vector.shape_cast %49 : vector<2x16x16xf32> to vector<2x256xf32>
    %51 = vector.extract_strided_slice %44 {offsets = [0, 1, 0], sizes = [2, 16, 16], strides = [1, 1, 1]} : vector<2x18x18xf32> to vector<2x16x16xf32>
    %52 = vector.shape_cast %51 : vector<2x16x16xf32> to vector<2x256xf32>
    %53 = vector.extract_strided_slice %44 {offsets = [0, 1, 1], sizes = [2, 16, 16], strides = [1, 1, 1]} : vector<2x18x18xf32> to vector<2x16x16xf32>
    %54 = vector.shape_cast %53 : vector<2x16x16xf32> to vector<2x256xf32>
    %55 = vector.extract_strided_slice %44 {offsets = [0, 1, 2], sizes = [2, 16, 16], strides = [1, 1, 1]} : vector<2x18x18xf32> to vector<2x16x16xf32>
    %56 = vector.shape_cast %55 : vector<2x16x16xf32> to vector<2x256xf32>
    %57 = vector.extract_strided_slice %44 {offsets = [0, 2, 0], sizes = [2, 16, 16], strides = [1, 1, 1]} : vector<2x18x18xf32> to vector<2x16x16xf32>
    %58 = vector.shape_cast %57 : vector<2x16x16xf32> to vector<2x256xf32>
    %59 = vector.extract_strided_slice %44 {offsets = [0, 2, 1], sizes = [2, 16, 16], strides = [1, 1, 1]} : vector<2x18x18xf32> to vector<2x16x16xf32>
    %60 = vector.shape_cast %59 : vector<2x16x16xf32> to vector<2x256xf32>
    %61 = vector.extract_strided_slice %44 {offsets = [0, 2, 2], sizes = [2, 16, 16], strides = [1, 1, 1]} : vector<2x18x18xf32> to vector<2x16x16xf32>
    %62 = vector.shape_cast %61 : vector<2x16x16xf32> to vector<2x256xf32>
    %63 = tpu.concatenate %46, %48, %50, %52, %54, %56, %58, %60, %62 in 0 : vector<2x256xf32>, vector<2x256xf32>, vector<2x256xf32>, vector<2x256xf32>, vector<2x256xf32>, vector<2x256xf32>, vector<2x256xf32>, vector<2x256xf32>, vector<2x256xf32> -> vector<18x256xf32>
    %c1 = arith.constant 1 : index
    %c0_15 = arith.constant 0 : index
    %c0_16 = arith.constant 0 : index
    %64 = vector.load %arg2[%c1, %c0_15, %c0_16] : memref<2x2x18xbf16, #tpu.memory_space<vmem>>, vector<1x2x18xbf16>
    %65 = vector.shape_cast %64 : vector<1x2x18xbf16> to vector<2x18xbf16>
    %66 = arith.truncf %63 : vector<18x256xf32> to vector<18x256xbf16>
    %cst_17 = arith.constant dense<0.000000e+00> : vector<2x256xf32>
    %67 = tpu.matmul %65, %66, %cst_17 {dimension_numbers = #tpu.dot_dimension_numbers<[1], [0], [0], [1], [0, 0, 1, 1], [], []>} : vector<2x18xbf16>, vector<18x256xbf16>, vector<2x256xf32> -> vector<2x256xf32>
    %c1_18 = arith.constant 1 : index
    %c0_19 = arith.constant 0 : index
    %c0_20 = arith.constant 0 : index
    %68 = vector.load %arg3[%c1_18, %c0_19, %c0_20] : memref<2x2x1xf32, #tpu.memory_space<vmem>>, vector<1x2x1xf32>
    %69 = vector.shape_cast %68 : vector<1x2x1xf32> to vector<2x1xf32>
    %70 = vector.broadcast %69 : vector<2x1xf32> to vector<2x256xf32>
    %71 = arith.mulf %67, %70 : vector<2x256xf32>
    %c1_21 = arith.constant 1 : index
    %c0_22 = arith.constant 0 : index
    %c0_23 = arith.constant 0 : index
    %72 = vector.load %arg4[%c1_21, %c0_22, %c0_23] : memref<2x2x1xf32, #tpu.memory_space<vmem>>, vector<1x2x1xf32>
    %73 = vector.shape_cast %72 : vector<1x2x1xf32> to vector<2x1xf32>
    %74 = vector.broadcast %73 : vector<2x1xf32> to vector<2x256xf32>
    %75 = arith.addf %71, %74 : vector<2x256xf32>
    %cst_24 = arith.constant 0.000000e+00 : f32
    %76 = vector.broadcast %cst_24 : f32 to vector<2x256xf32>
    %77 = arith.maximumf %75, %76 : vector<2x256xf32>
    %78 = vector.shape_cast %77 : vector<2x256xf32> to vector<2x16x16xf32>
    %79 = vector.shape_cast %78 : vector<2x16x16xf32> to vector<2x256xf32>
    %c0_25 = arith.constant 0 : index
    %c0_26 = arith.constant 0 : index
    %80 = vector.load %arg5[%c0_25, %c0_26] : memref<8x2xbf16, #tpu.memory_space<vmem>>, vector<8x2xbf16>
    %81 = arith.truncf %3 : vector<2x256xf32> to vector<2x256xbf16>
    %cst_27 = arith.constant dense<0.000000e+00> : vector<8x256xf32>
    %82 = tpu.matmul %80, %81, %cst_27 {dimension_numbers = #tpu.dot_dimension_numbers<[1], [0], [0], [1], [0, 0, 1, 1], [], []>} : vector<8x2xbf16>, vector<2x256xbf16>, vector<8x256xf32> -> vector<8x256xf32>
    %c0_28 = arith.constant 0 : index
    %c0_29 = arith.constant 0 : index
    %83 = vector.load %arg6[%c0_28, %c0_29] : memref<8x2xbf16, #tpu.memory_space<vmem>>, vector<8x2xbf16>
    %84 = arith.truncf %79 : vector<2x256xf32> to vector<2x256xbf16>
    %cst_30 = arith.constant dense<0.000000e+00> : vector<8x256xf32>
    %85 = tpu.matmul %83, %84, %cst_30 {dimension_numbers = #tpu.dot_dimension_numbers<[1], [0], [0], [1], [0, 0, 1, 1], [], []>} : vector<8x2xbf16>, vector<2x256xbf16>, vector<8x256xf32> -> vector<8x256xf32>
    %86 = arith.addf %82, %85 : vector<8x256xf32>
    %c0_31 = arith.constant 0 : index
    %c0_32 = arith.constant 0 : index
    %87 = vector.load %arg7[%c0_31, %c0_32] : memref<8x1xf32, #tpu.memory_space<vmem>>, vector<8x1xf32>
    %88 = vector.broadcast %87 : vector<8x1xf32> to vector<8x256xf32>
    %89 = arith.mulf %86, %88 : vector<8x256xf32>
    %c0_33 = arith.constant 0 : index
    %c0_34 = arith.constant 0 : index
    %90 = vector.load %arg8[%c0_33, %c0_34] : memref<8x1xf32, #tpu.memory_space<vmem>>, vector<8x1xf32>
    %91 = vector.broadcast %90 : vector<8x1xf32> to vector<8x256xf32>
    %92 = arith.addf %89, %91 : vector<8x256xf32>
    %cst_35 = arith.constant 0.000000e+00 : f32
    %93 = vector.broadcast %cst_35 : f32 to vector<8x256xf32>
    %94 = arith.maximumf %92, %93 : vector<8x256xf32>
    %c0_36 = arith.constant 0 : index
    %c0_37 = arith.constant 0 : index
    %c0_38 = arith.constant 0 : index
    %95 = vector.load %arg9[%c0_36, %c0_37, %c0_38] : memref<1x8x256xf32, #tpu.memory_space<vmem>>, vector<1x8x256xf32>
    %96 = vector.shape_cast %95 : vector<1x8x256xf32> to vector<8x256xf32>
    %97 = vector.shape_cast %94 : vector<8x256xf32> to vector<1x8x256xf32>
    tpu.vector_store %arg9[%c0_36, %c0_37, %c0_38], %97 {strides = array<i32>} : memref<1x8x256xf32, #tpu.memory_space<vmem>>, vector<1x8x256xf32>,
    return
  }
  func.func @transform_0(%arg0: i32) -> (i32, i32, i32, i32) {
    %c0_i32 = arith.constant 0 : i32
    %c0_i32_0 = arith.constant 0 : i32
    %c0_i32_1 = arith.constant 0 : i32
    %c0_i32_2 = arith.constant 0 : i32
    return %arg0, %c0_i32, %c0_i32_0, %c0_i32_1 : i32, i32, i32, i32
  }
  func.func @transform_1(%arg0: i32) -> (i32, i32, i32) {
    %c0_i32 = arith.constant 0 : i32
    %c0_i32_0 = arith.constant 0 : i32
    %c0_i32_1 = arith.constant 0 : i32
    %c0_i32_2 = arith.constant 0 : i32
    return %c0_i32, %c0_i32_0, %c0_i32_1 : i32, i32, i32
  }
  func.func @transform_2(%arg0: i32) -> (i32, i32, i32) {
    %c0_i32 = arith.constant 0 : i32
    %c0_i32_0 = arith.constant 0 : i32
    %c0_i32_1 = arith.constant 0 : i32
    %c0_i32_2 = arith.constant 0 : i32
    return %c0_i32, %c0_i32_0, %c0_i32_1 : i32, i32, i32
  }
  func.func @transform_3(%arg0: i32) -> (i32, i32, i32) {
    %c0_i32 = arith.constant 0 : i32
    %c0_i32_0 = arith.constant 0 : i32
    %c0_i32_1 = arith.constant 0 : i32
    %c0_i32_2 = arith.constant 0 : i32
    return %c0_i32, %c0_i32_0, %c0_i32_1 : i32, i32, i32
  }
  func.func @transform_4(%arg0: i32) -> (i32, i32) {
    %c0_i32 = arith.constant 0 : i32
    %c0_i32_0 = arith.constant 0 : i32
    %c0_i32_1 = arith.constant 0 : i32
    return %c0_i32, %c0_i32_0 : i32, i32
  }
  func.func @transform_5(%arg0: i32) -> (i32, i32) {
    %c0_i32 = arith.constant 0 : i32
    %c0_i32_0 = arith.constant 0 : i32
    %c0_i32_1 = arith.constant 0 : i32
    return %c0_i32, %c0_i32_0 : i32, i32
  }
  func.func @transform_6(%arg0: i32) -> (i32, i32) {
    %c0_i32 = arith.constant 0 : i32
    %c0_i32_0 = arith.constant 0 : i32
    %c0_i32_1 = arith.constant 0 : i32
    return %c0_i32, %c0_i32_0 : i32, i32
  }
  func.func @transform_7(%arg0: i32) -> (i32, i32) {
    %c0_i32 = arith.constant 0 : i32
    %c0_i32_0 = arith.constant 0 : i32
    %c0_i32_1 = arith.constant 0 : i32
    return %c0_i32, %c0_i32_0 : i32, i32
  }
  func.func @transform_8(%arg0: i32) -> (i32, i32, i32) {
    %c0_i32 = arith.constant 0 : i32
    %c0_i32_0 = arith.constant 0 : i32
    %c0_i32_1 = arith.constant 0 : i32
    return %arg0, %c0_i32, %c0_i32_0 : i32, i32, i32
  }
}

</mosaic_0001>

<llo_original>
// kernel: tpu_custom_call.1
$region0: #{tpu_custom_call.1}
  #allocation0 [shape = 'u32[]', space=smem, size = 0x4, offset = 0x4, fixed_abs, tag = 'smem constant byte address 0x4 - core index']
  #allocation1 [shape = 'u32[144,128]{1,0:T(1,128)}', space=vmem, size = 0x12000, scoped, tag = 'internal scratch']
  %s0 = inlined_call_operand.hbm [shape: f32[2,4,16,16], index: 0, kind: input, shape index: {}]
  %s1 = inlined_call_operand.vmem [shape: bf16[2,2,18], index: 1, kind: input, shape index: {}]
  %s2 = inlined_call_operand.vmem [shape: f32[2,2,1], index: 2, kind: input, shape index: {}]
  %s3 = inlined_call_operand.vmem [shape: f32[2,2,1], index: 3, kind: input, shape index: {}]
  %s4 = inlined_call_operand.vmem [shape: bf16[8,2], index: 4, kind: input, shape index: {}]
  %s5 = inlined_call_operand.vmem [shape: bf16[8,2], index: 5, kind: input, shape index: {}]
  %s6 = inlined_call_operand.vmem [shape: f32[8,1], index: 6, kind: input, shape index: {}]
  %s7 = inlined_call_operand.vmem [shape: f32[8,1], index: 7, kind: input, shape index: {}]
  %s8 = inlined_call_operand.hbm [shape: f32[2,8,256], index: 8, kind: output, shape index: {}]
  %s9 = sld [smem:[#allocation0]]
  $region69: #{tpu_custom_call.1} parent=0
    _
  %s11 = ssub.s32 1, %s9
  %s12 = scalar_select 0, %s11, %s9
  $region1: #{tpu_custom_call.1} parent=0
    #allocation2 [shape = 'u8[65536]{0}', space=vmem, size = 0x10000, scoped, tag = 'input window, operand 0']
    #allocation3 [shape = 's32[2]{0}', space=sflag, size = 0x8, scoped, tag = 'scoped memory for tpu_custom_call.1']
    #allocation4 [shape = 's32[2]{0}', space=sflag, size = 0x8, scoped, tag = 'scoped memory for tpu_custom_call.1']
    #allocation5 [shape = 'u8[16384]{0}', space=vmem, size = 0x4000, scoped, tag = 'output window, operand 0']
    %13 = vsyncpa [#allocation3], 0
    %s14 = scalar_lea.sflag [#allocation3], 1
    %15 = vsyncpa %s14, 0
    %16 = vsyncpa [#allocation4], 0
    %s17 = scalar_lea.sflag [#allocation4], 1
    %18 = vsyncpa %s17, 0
    loop: start=0, step=1, limit=4
    $region2: #{tpu_custom_call.1} parent=1 // loop_pre_header
      _
    $region3: #{tpu_custom_call.1} parent=1 // loop_header
      %s20 = sphi 0, %s24
      %p21 = scmp.ge.s32.totalorder %s20, 4
      %s30 = sphi 0, %s32
      %s33 = sphi 0, %s30
      %s34 = sphi 0, %s33
      %s50 = sphi 0, %s34
      %s54 = sphi 0, %s54
      %s56 = sphi 0, %s54
      %s57 = sphi 0, %s56
      %s71 = sphi 0, %s57
      %s75 = sphi 0, %s75
      %s77 = sphi 0, %s75
      %s78 = sphi 0, %s77
      %s92 = sphi 0, %s78
      %s96 = sphi 0, %s96
      %s98 = sphi 0, %s96
      %s99 = sphi 0, %s98
      %s113 = sphi 0, %s99
      %s117 = sphi 0, %s117
      %s119 = sphi 0, %s117
      %s120 = sphi 0, %s119
      %s134 = sphi 0, %s120
      %s138 = sphi 0, %s138
      %s140 = sphi 0, %s138
      %s141 = sphi 0, %s140
      %s155 = sphi 0, %s141
      %s159 = sphi 0, %s159
      %s161 = sphi 0, %s159
      %s162 = sphi 0, %s161
      %s176 = sphi 0, %s162
      %s180 = sphi 0, %s180
      %s182 = sphi 0, %s180
      %s183 = sphi 0, %s182
      %s197 = sphi 0, %s183
      %s203 = sphi 0, %s205
      %s206 = sphi 0, %s203
      %s207 = sphi 0, %s206
      %s223 = sphi 0, %s207
    $region4: #{tpu_custom_call.1} parent=1 // loop_header_branch
      %23 = sbr.rel (%p21) target = $region8
    $region5: #{tpu_custom_call.1} parent=1 // loop_body
      %s25 = ssub.s32 %s20, 1
      %s26 = ssub.s32 %s20, 2
      %s27 = sadd.s32 %s20, 1
      %s28 = ssub.s32 %s20, %s27
      %p29 = scmp.eq.s32.totalorder %s28, 0
      %s31 = sadd.s32 %s30, 1
      %s32 = scalar_select %p29, %s30, %s31
      %p35 = pneg %p29
      %p36 = scmp.eq.s32.totalorder %s20, 1
      %p37 = por %p35, %p36
      %p38 = scmp.ne.s32.totalorder %s30, %s33
      %p39 = scmp.eq.s32.totalorder %s20, 0
      %p40 = por %p38, %p39
      %p41 = scmp.ne.s32.totalorder %s30, %s33
      %p42 = scmp.eq.s32.totalorder %s25, 1
      %p43 = por %p41, %p42
      %p44 = scmp.ne.s32.totalorder %s33, %s34
      %p45 = scmp.eq.s32.totalorder %s25, 0
      %p46 = por %p44, %p45
      %p47 = scmp.ne.s32.totalorder %s33, %s34
      %p48 = scmp.eq.s32.totalorder %s26, 1
      %p49 = por %p47, %p48
      %p51 = scmp.ne.s32.totalorder %s34, %s50
      %p52 = scmp.eq.s32.totalorder %s26, 0
      %p53 = por %p51, %p52
      %s55 = sadd.s32 %s54, 1
      %p58 = scmp.eq.s32.totalorder %s20, 1
      %p59 = scmp.ne.s32.totalorder %s54, %s56
      %p60 = scmp.eq.s32.totalorder %s20, 0
      %p61 = por %p59, %p60
      %p62 = scmp.ne.s32.totalorder %s54, %s56
      %p63 = scmp.eq.s32.totalorder %s25, 1
      %p64 = por %p62, %p63
      %p65 = scmp.ne.s32.totalorder %s56, %s57
      %p66 = scmp.eq.s32.totalorder %s25, 0
      %p67 = por %p65, %p66
      %p68 = scmp.ne.s32.totalorder %s56, %s57
      %p69 = scmp.eq.s32.totalorder %s26, 1
      %p70 = por %p68, %p69
      %p72 = scmp.ne.s32.totalorder %s57, %s71
      %p73 = scmp.eq.s32.totalorder %s26, 0
      %p74 = por %p72, %p73
      %s76 = sadd.s32 %s75, 1
      %p79 = scmp.eq.s32.totalorder %s20, 1
      %p80 = scmp.ne.s32.totalorder %s75, %s77
      %p81 = scmp.eq.s32.totalorder %s20, 0
      %p82 = por %p80, %p81
      %p83 = scmp.ne.s32.totalorder %s75, %s77
      %p84 = scmp.eq.s32.totalorder %s25, 1
      %p85 = por %p83, %p84
      %p86 = scmp.ne.s32.totalorder %s77, %s78
      %p87 = scmp.eq.s32.totalorder %s25, 0
      %p88 = por %p86, %p87
      %p89 = scmp.ne.s32.totalorder %s77, %s78
      %p90 = scmp.eq.s32.totalorder %s26, 1
      %p91 = por %p89, %p90
      %p93 = scmp.ne.s32.totalorder %s78, %s92
      %p94 = scmp.eq.s32.totalorder %s26, 0
      %p95 = por %p93, %p94
      %s97 = sadd.s32 %s96, 1
      %p100 = scmp.eq.s32.totalorder %s20, 1
      %p101 = scmp.ne.s32.totalorder %s96, %s98
      %p102 = scmp.eq.s32.totalorder %s20, 0
      %p103 = por %p101, %p102
      %p104 = scmp.ne.s32.totalorder %s96, %s98
      %p105 = scmp.eq.s32.totalorder %s25, 1
      %p106 = por %p104, %p105
      %p107 = scmp.ne.s32.totalorder %s98, %s99
      %p108 = scmp.eq.s32.totalorder %s25, 0
      %p109 = por %p107, %p108
      %p110 = scmp.ne.s32.totalorder %s98, %s99
      %p111 = scmp.eq.s32.totalorder %s26, 1
      %p112 = por %p110, %p111
      %p114 = scmp.ne.s32.totalorder %s99, %s113
      %p115 = scmp.eq.s32.totalorder %s26, 0
      %p116 = por %p114, %p115
      %s118 = sadd.s32 %s117, 1
      %p121 = scmp.eq.s32.totalorder %s20, 1
      %p122 = scmp.ne.s32.totalorder %s117, %s119
      %p123 = scmp.eq.s32.totalorder %s20, 0
      %p124 = por %p122, %p123
      %p125 = scmp.ne.s32.totalorder %s117, %s119
      %p126 = scmp.eq.s32.totalorder %s25, 1
      %p127 = por %p125, %p126
      %p128 = scmp.ne.s32.totalorder %s119, %s120
      %p129 = scmp.eq.s32.totalorder %s25, 0
      %p130 = por %p128, %p129
      %p131 = scmp.ne.s32.totalorder %s119, %s120
      %p132 = scmp.eq.s32.totalorder %s26, 1
      %p133 = por %p131, %p132
      %p135 = scmp.ne.s32.totalorder %s120, %s134
      %p136 = scmp.eq.s32.totalorder %s26, 0
      %p137 = por %p135, %p136
      %s139 = sadd.s32 %s138, 1
      %p142 = scmp.eq.s32.totalorder %s20, 1
      %p143 = scmp.ne.s32.totalorder %s138, %s140
      %p144 = scmp.eq.s32.totalorder %s20, 0
      %p145 = por %p143, %p144
      %p146 = scmp.ne.s32.totalorder %s138, %s140
      %p147 = scmp.eq.s32.totalorder %s25, 1
      %p148 = por %p146, %p147
      %p149 = scmp.ne.s32.totalorder %s140, %s141
      %p150 = scmp.eq.s32.totalorder %s25, 0
      %p151 = por %p149, %p150
      %p152 = scmp.ne.s32.totalorder %s140, %s141
      %p153 = scmp.eq.s32.totalorder %s26, 1
      %p154 = por %p152, %p153
      %p156 = scmp.ne.s32.totalorder %s141, %s155
      %p157 = scmp.eq.s32.totalorder %s26, 0
      %p158 = por %p156, %p157
      %s160 = sadd.s32 %s159, 1
      %p163 = scmp.eq.s32.totalorder %s20, 1
      %p164 = scmp.ne.s32.totalorder %s159, %s161
      %p165 = scmp.eq.s32.totalorder %s20, 0
      %p166 = por %p164, %p165
      %p167 = scmp.ne.s32.totalorder %s159, %s161
      %p168 = scmp.eq.s32.totalorder %s25, 1
      %p169 = por %p167, %p168
      %p170 = scmp.ne.s32.totalorder %s161, %s162
      %p171 = scmp.eq.s32.totalorder %s25, 0
      %p172 = por %p170, %p171
      %p173 = scmp.ne.s32.totalorder %s161, %s162
      %p174 = scmp.eq.s32.totalorder %s26, 1
      %p175 = por %p173, %p174
      %p177 = scmp.ne.s32.totalorder %s162, %s176
      %p178 = scmp.eq.s32.totalorder %s26, 0
      %p179 = por %p177, %p178
      %s181 = sadd.s32 %s180, 1
      %p184 = scmp.eq.s32.totalorder %s20, 1
      %p185 = scmp.ne.s32.totalorder %s180, %s182
      %p186 = scmp.eq.s32.totalorder %s20, 0
      %p187 = por %p185, %p186
      %p188 = scmp.ne.s32.totalorder %s180, %s182
      %p189 = scmp.eq.s32.totalorder %s25, 1
      %p190 = por %p188, %p189
      %p191 = scmp.ne.s32.totalorder %s182, %s183
      %p192 = scmp.eq.s32.totalorder %s25, 0
      %p193 = por %p191, %p192
      %p194 = scmp.ne.s32.totalorder %s182, %s183
      %p195 = scmp.eq.s32.totalorder %s26, 1
      %p196 = por %p194, %p195
      %p198 = scmp.ne.s32.totalorder %s183, %s197
      %p199 = scmp.eq.s32.totalorder %s26, 0
      %p200 = por %p198, %p199
      %s201 = ssub.s32 %s20, %s27
      %p202 = scmp.eq.s32.totalorder %s201, 0
      %s204 = sadd.s32 %s203, 1
      %s205 = scalar_select %p202, %s203, %s204
      %p208 = pneg %p202
      %p209 = scmp.eq.s32.totalorder %s20, 1
      %p210 = por %p208, %p209
      %p211 = scmp.ne.s32.totalorder %s203, %s206
      %p212 = scmp.eq.s32.totalorder %s20, 0
      %p213 = por %p211, %p212
      %p214 = scmp.ne.s32.totalorder %s203, %s206
      %p215 = scmp.eq.s32.totalorder %s25, 1
      %p216 = por %p214, %p215
      %p217 = scmp.ne.s32.totalorder %s206, %s207
      %p218 = scmp.eq.s32.totalorder %s25, 0
      %p219 = por %p217, %p218
      %p220 = scmp.ne.s32.totalorder %s206, %s207
      %p221 = scmp.eq.s32.totalorder %s26, 1
      %p222 = por %p220, %p221
      %p224 = scmp.ne.s32.totalorder %s207, %s223
      %p225 = scmp.eq.s32.totalorder %s26, 0
      %p226 = por %p224, %p225
      %p227 = scmp.le.s32.totalorder 1, %s20
      %p228 = scmp.lt.s32.totalorder %s20, 3
      %p229 = pnand %p227, %p228
      %p230 = pneg %p229
      // Predicated region
      $region9: #{tpu_custom_call.1} parent=5 // pred_check
        _
      $region10: #{tpu_custom_call.1} parent=5 // pred_check_branch
        %232 = sbr.rel (%p229) target = $region12
      $region11: #{tpu_custom_call.1} parent=5 // pred_region
        %s233 = ssub.s32 %s20, 1
        // Predicated region
        $region13: #{tpu_custom_call.1} parent=11 // pred_check
          %p234 = pneg %p67
        $region14: #{tpu_custom_call.1} parent=11 // pred_check_branch
          %236 = sbr.rel (%p234) target = $region16
        $region15: #{tpu_custom_call.1} parent=11 // pred_region
          _
        $region16: #{tpu_custom_call.1} parent=11 // pred_fallthru
          _
        // Predicated region
        $region17: #{tpu_custom_call.1} parent=11 // pred_check
          %p237 = pneg %p88
        $region18: #{tpu_custom_call.1} parent=11 // pred_check_branch
          %239 = sbr.rel (%p237) target = $region20
        $region19: #{tpu_custom_call.1} parent=11 // pred_region
          _
        $region20: #{tpu_custom_call.1} parent=11 // pred_fallthru
          _
        // Predicated region
        $region21: #{tpu_custom_call.1} parent=11 // pred_check
          %p240 = pneg %p109
        $region22: #{tpu_custom_call.1} parent=11 // pred_check_branch
          %242 = sbr.rel (%p240) target = $region24
        $region23: #{tpu_custom_call.1} parent=11 // pred_region
          _
        $region24: #{tpu_custom_call.1} parent=11 // pred_fallthru
          _
        // Predicated region
        $region25: #{tpu_custom_call.1} parent=11 // pred_check
          %p243 = pneg %p130
        $region26: #{tpu_custom_call.1} parent=11 // pred_check_branch
          %245 = sbr.rel (%p243) target = $region28
        $region27: #{tpu_custom_call.1} parent=11 // pred_region
          _
        $region28: #{tpu_custom_call.1} parent=11 // pred_fallthru
          _
        // Predicated region
        $region29: #{tpu_custom_call.1} parent=11 // pred_check
          %p246 = pneg %p151
        $region30: #{tpu_custom_call.1} parent=11 // pred_check_branch
          %248 = sbr.rel (%p246) target = $region32
        $region31: #{tpu_custom_call.1} parent=11 // pred_region
          _
        $region32: #{tpu_custom_call.1} parent=11 // pred_fallthru
          _
        // Predicated region
        $region33: #{tpu_custom_call.1} parent=11 // pred_check
          %p249 = pneg %p172
        $region34: #{tpu_custom_call.1} parent=11 // pred_check_branch
          %251 = sbr.rel (%p249) target = $region36
        $region35: #{tpu_custom_call.1} parent=11 // pred_region
          _
        $region36: #{tpu_custom_call.1} parent=11 // pred_fallthru
          _
        // Predicated region
        $region37: #{tpu_custom_call.1} parent=11 // pred_check
          %p252 = pneg %p193
        $region38: #{tpu_custom_call.1} parent=11 // pred_check_branch
          %254 = sbr.rel (%p252) target = $region40
        $region39: #{tpu_custom_call.1} parent=11 // pred_region
          _
        $region40: #{tpu_custom_call.1} parent=11 // pred_fallthru
          _
      $region12: #{tpu_custom_call.1} parent=5 // pred_fallthru
        _
      %p255 = scmp.lt.s32.totalorder %s20, 2
      // Predicated region
      $region41: #{tpu_custom_call.1} parent=5 // pred_check
        %p256 = pneg %p255
      $region42: #{tpu_custom_call.1} parent=5 // pred_check_branch
        %258 = sbr.rel (%p256) target = $region44
      $region43: #{tpu_custom_call.1} parent=5 // pred_region
        // Predicated region
        $region45: #{tpu_custom_call.1} parent=43 // pred_check
          %p259 = pneg %p40
        $region46: #{tpu_custom_call.1} parent=43 // pred_check_branch
          %261 = sbr.rel (%p259) target = $region48
        $region47: #{tpu_custom_call.1} parent=43 // pred_region
          %s262 = sand.u32 %s30, 1
          %s263 = scalar_lea.sflag [#allocation3], %s262
          %s264 = sand.u32 %s30, 1
          %s265 = smul.addr %s264, 64
          %s266 = scalar_lea.vmem [#allocation2], %s265
          %s268 = ssub.s32 1024, 1024
          %269 = vsyncadd %s263, %s268
          %s270 = smul.addr %s20, 8
          %s271 = smul.addr %s270, 128
          %s272 = scalar_lea.hbm %s0, %s271
          %s273 = sshll.u32 %s266, 4
          %s274 = int_to_ptr.vmem [resolvable:$true] %s273
          %279 = dma.hbm_to_vmem [thread:$0]  %s272, 1024, %s274, %s263, 128, 128, 8
        $region48: #{tpu_custom_call.1} parent=43 // pred_fallthru
          _
      $region44: #{tpu_custom_call.1} parent=5 // pred_fallthru
        _
      %p280 = scmp.le.s32.totalorder 1, %s20
      %p281 = scmp.lt.s32.totalorder %s20, 3
      %p282 = pnand %p280, %p281
      %p283 = pneg %p282
      // Predicated region
      $region49: #{tpu_custom_call.1} parent=5 // pred_check
        _
      $region50: #{tpu_custom_call.1} parent=5 // pred_check_branch
        %285 = sbr.rel (%p282) target = $region52
      $region51: #{tpu_custom_call.1} parent=5 // pred_region
        %s286 = ssub.s32 %s20, 1
        %s287 = sand.u32 %s33, 1
        %s288 = scalar_lea.sflag [#allocation3], %s287
        %s289 = sand.u32 %s33, 1
        %s290 = smul.addr %s289, 64
        %s291 = scalar_lea.vmem [#allocation2], %s290
        // Predicated region
        $region53: #{tpu_custom_call.1} parent=51 // pred_check
          %p292 = pneg %p46
        $region54: #{tpu_custom_call.1} parent=51 // pred_check_branch
          %294 = sbr.rel (%p292) target = $region56
        $region55: #{tpu_custom_call.1} parent=51 // pred_region
          %295 = dma.done %s288, 1024
        $region56: #{tpu_custom_call.1} parent=51 // pred_fallthru
          _
        %s296 = sand.u32 %s33, 1
        %s297 = scalar_lea.sflag [#allocation3], %s296
        %s298 = sand.u32 %s33, 1
        %s299 = smul.addr %s298, 64
        %s300 = scalar_lea.vmem [#allocation2], %s299
        %p301 = pneg %p46
        %p302 = pneg %p43
        %p303 = pneg %p67
        %p304 = pneg %p64
        %p305 = pneg %p88
        %p306 = pneg %p85
        %p307 = pneg %p109
        %p308 = pneg %p106
        %p309 = pneg %p130
        %p310 = pneg %p127
        %p311 = pneg %p151
        %p312 = pneg %p148
        %p313 = pneg %p172
        %p314 = pneg %p169
        %p315 = pneg %p193
        %p316 = pneg %p190
        %p317 = pneg %p219
        %p318 = pneg %p216
        %s319 = sand.u32 %s206, 1
        %s320 = scalar_lea.sflag [#allocation4], %s319
        %s321 = sand.u32 %s206, 1
        %s322 = smul.addr %s321, 16
        %s323 = scalar_lea.vmem [#allocation5], %s322
        %v325 = vld [vmem:[%s291] sm:$0xff]
        %v326 = vld [vmem:[%s291 + $0x8] sm:$0xff]
        %v327 = vld [vmem:[%s291 + $0x10] sm:$0xff]
        %v328 = vld [vmem:[%s291 + $0x18] sm:$0xff]
        %v329 = vld [vmem:[%s291 + $0x20] sm:$0xff]
        %v330 = vld [vmem:[%s291 + $0x28] sm:$0xff]
        %v331 = vld [vmem:[%s291 + $0x30] sm:$0xff]
        %v332 = vld [vmem:[%s291 + $0x38] sm:$0xff]
        %v333 = vcombine.high %v325, 0.0
        %v335 = vunpack.c.l.s4 1983009808
        %v336 = vunpack.c.0.s8 %v335
        %v337 = vlaneseq
        %v338 = vshrl.u32 %v337, 7
        %v339 = vsub.s32 %v336, %v338
        %v340 = vrot.slane %v325, %v339
        %v342 = vunpack.c.l.s4 1983009808
        %v343 = vunpack.c.0.s8 %v342
        %v344 = vlaneseq
        %v345 = vshrl.u32 %v344, 7
        %v346 = vsub.s32 %v343, %v345
        %v347 = vrot.slane %v333, %v346
        %v348 = vcombine.high %v327, 0.0
        %v350 = vunpack.c.l.s4 1983009808
        %v351 = vunpack.c.0.s8 %v350
        %v352 = vlaneseq
        %v353 = vshrl.u32 %v352, 7
        %v354 = vsub.s32 %v351, %v353
        %v355 = vrot.slane %v327, %v354
        %v357 = vunpack.c.l.s4 1983009808
        %v358 = vunpack.c.0.s8 %v357
        %v359 = vlaneseq
        %v360 = vshrl.u32 %v359, 7
        %v361 = vsub.s32 %v358, %v360
        %v362 = vrot.slane %v348, %v361
        %v363 = vcombine.low %v340, %v355
        %v364 = vcombine.high %v340, %v355
        %v366 = vunpack.c.l.s4 1934713408
        %v367 = vunpack.c.0.s8 %v366
        %v368 = vlaneseq
        %v369 = vshrl.u32 %v368, 7
        %v370 = vsub.s32 %v367, %v369
        %v371 = vrot.slane %v363, %v370
        %v373 = vunpack.c.l.s4 1934713408
        %v374 = vunpack.c.0.s8 %v373
        %v375 = vlaneseq
        %v376 = vshrl.u32 %v375, 7
        %v377 = vsub.s32 %v374, %v376
        %v378 = vrot.slane %v364, %v377
        %v379 = vcombine.low %v347, %v362
        %v380 = vcombine.high %v347, %v362
        %v382 = vunpack.c.l.s4 1934713408
        %v383 = vunpack.c.0.s8 %v382
        %v384 = vlaneseq
        %v385 = vshrl.u32 %v384, 7
        %v386 = vsub.s32 %v383, %v385
        %v387 = vrot.slane %v379, %v386
        %v389 = vunpack.c.l.s4 1934713408
        %v390 = vunpack.c.0.s8 %v389
        %v391 = vlaneseq
        %v392 = vshrl.u32 %v391, 7
        %v393 = vsub.s32 %v390, %v392
        %v394 = vrot.slane %v380, %v393
        %v395 = vcombine.high %v371, 0.0
        %v396 = vcombine.high %v378, 0.0
        %v397 = vcombine.high %v387, 0.0
        %v398 = vcombine.high %v394, 0.0
        %v399 = vcombine.high %v326, 0.0
        %v401 = vunpack.c.l.s4 1983009808
        %v402 = vunpack.c.0.s8 %v401
        %v403 = vlaneseq
        %v404 = vshrl.u32 %v403, 7
        %v405 = vsub.s32 %v402, %v404
        %v406 = vrot.slane %v326, %v405
        %v408 = vunpack.c.l.s4 1983009808
        %v409 = vunpack.c.0.s8 %v408
        %v410 = vlaneseq
        %v411 = vshrl.u32 %v410, 7
        %v412 = vsub.s32 %v409, %v411
        %v413 = vrot.slane %v399, %v412
        %v414 = vcombine.high %v328, 0.0
        %v416 = vunpack.c.l.s4 1983009808
        %v417 = vunpack.c.0.s8 %v416
        %v418 = vlaneseq
        %v419 = vshrl.u32 %v418, 7
        %v420 = vsub.s32 %v417, %v419
        %v421 = vrot.slane %v328, %v420
        %v423 = vunpack.c.l.s4 1983009808
        %v424 = vunpack.c.0.s8 %v423
        %v425 = vlaneseq
        %v426 = vshrl.u32 %v425, 7
        %v427 = vsub.s32 %v424, %v426
        %v428 = vrot.slane %v414, %v427
        %v429 = vcombine.low %v406, %v421
        %v430 = vcombine.high %v406, %v421
        %v432 = vunpack.c.l.s4 1934713408
        %v433 = vunpack.c.0.s8 %v432
        %v434 = vlaneseq
        %v435 = vshrl.u32 %v434, 7
        %v436 = vsub.s32 %v433, %v435
        %v437 = vrot.slane %v429, %v436
        %v439 = vunpack.c.l.s4 1934713408
        %v440 = vunpack.c.0.s8 %v439
        %v441 = vlaneseq
        %v442 = vshrl.u32 %v441, 7
        %v443 = vsub.s32 %v440, %v442
        %v444 = vrot.slane %v430, %v443
        %v445 = vcombine.low %v413, %v428
        %v446 = vcombine.high %v413, %v428
        %v448 = vunpack.c.l.s4 1934713408
        %v449 = vunpack.c.0.s8 %v448
        %v450 = vlaneseq
        %v451 = vshrl.u32 %v450, 7
        %v452 = vsub.s32 %v449, %v451
        %v453 = vrot.slane %v445, %v452
        %v455 = vunpack.c.l.s4 1934713408
        %v456 = vunpack.c.0.s8 %v455
        %v457 = vlaneseq
        %v458 = vshrl.u32 %v457, 7
        %v459 = vsub.s32 %v456, %v458
        %v460 = vrot.slane %v446, %v459
        %v461 = vcombine.high %v437, 0.0
        %v462 = vcombine.high %v444, 0.0
        %v463 = vcombine.high %v453, 0.0
        %v464 = vcombine.high %v460, 0.0
        %466 = vrot.lane.b32.xlu0 %v395, 16
        %v467 = vpop.permute.xlu0 %466
        %470 = vrot.lane.b32.xlu0 %v378, 32
        %v471 = vpop.permute.xlu0 %470
        %474 = vrot.lane.b32.xlu0 %v396, 48
        %v475 = vpop.permute.xlu0 %474
        %478 = vrot.lane.b32.xlu0 %v387, 64
        %v479 = vpop.permute.xlu0 %478
        %482 = vrot.lane.b32.xlu0 %v397, 80
        %v483 = vpop.permute.xlu0 %482
        %486 = vrot.lane.b32.xlu0 %v394, 96
        %v487 = vpop.permute.xlu0 %486
        %490 = vrot.lane.b32.xlu0 %v398, 112
        %v491 = vpop.permute.xlu0 %490
        %494 = vrot.lane.b32.xlu0 %v461, 16
        %v495 = vpop.permute.xlu0 %494
        %498 = vrot.lane.b32.xlu0 %v444, 32
        %v499 = vpop.permute.xlu0 %498
        %502 = vrot.lane.b32.xlu0 %v462, 48
        %v503 = vpop.permute.xlu0 %502
        %506 = vrot.lane.b32.xlu0 %v453, 64
        %v507 = vpop.permute.xlu0 %506
        %510 = vrot.lane.b32.xlu0 %v463, 80
        %v511 = vpop.permute.xlu0 %510
        %514 = vrot.lane.b32.xlu0 %v460, 96
        %v515 = vpop.permute.xlu0 %514
        %518 = vrot.lane.b32.xlu0 %v464, 112
        %v519 = vpop.permute.xlu0 %518
        %vm521 = vcmask 130048
        %v522 = vsel %vm521, %v371, %v467
        %vm523 = vcmask 261120
        %v524 = vsel %vm523, %v522, %v471
        %vm525 = vcmask 392192
        %v526 = vsel %vm525, %v524, %v475
        %vm527 = vcmask 523264
        %v528 = vsel %vm527, %v526, %v479
        %vm529 = vcmask 654336
        %v530 = vsel %vm529, %v528, %v483
        %vm531 = vcmask 785408
        %v532 = vsel %vm531, %v530, %v487
        %vm533 = vcmask 916480
        %v534 = vsel %vm533, %v532, %v491
        %v535 = vsel %vm521, %v437, %v495
        %v536 = vsel %vm523, %v535, %v499
        %v537 = vsel %vm525, %v536, %v503
        %v538 = vsel %vm527, %v537, %v507
        %v539 = vsel %vm529, %v538, %v511
        %v540 = vsel %vm531, %v539, %v515
        %v541 = vsel %vm533, %v540, %v519
        %546 = vrot.lane.b32.xlu0 %v329, 1
        %v547 = vpop.permute.xlu0 %546
        %548 = vrot.lane.b32.xlu0 %v330, 1
        %v549 = vpop.permute.xlu0 %548
        %550 = vrot.lane.b32.xlu0 %v331, 1
        %v551 = vpop.permute.xlu0 %550
        %552 = vrot.lane.b32.xlu0 %v332, 1
        %v553 = vpop.permute.xlu0 %552
        %vm558 = vcmask 7168
        %v559 = vsel %vm558, 0.0, %v547
        %v560 = vsel %vm558, 0.0, %v549
        %v561 = vsel %vm558, 0.0, %v551
        %v562 = vsel %vm558, 0.0, %v553
        %vm563 = vcmask 138240
        %v564 = vsel %vm563, %v559, 0.0
        %v565 = vsel %vm563, %v560, 0.0
        %v566 = vsel %vm563, %v561, 0.0
        %v567 = vsel %vm563, %v562, 0.0
        %vm572 = vcmask 1040384
        %v573 = vrot.slane %v564, 7
        %v574 = vrot.slane %v565, 7
        %v575 = vsel %vm572, %v573, %v574
        %v576 = vrot.slane %v566, 7
        %v577 = vrot.slane %v567, 7
        %v578 = vsel %vm572, %v576, %v577
        %v585 = vsel %vm572, 0.0, %v573
        %v586 = vsel %vm572, 0.0, %v576
        %v587 = vsel %vm572, %v574, 0.0
        %v588 = vsel %vm572, %v577, 0.0
        %v589 = vcombine.high %v585, 0.0
        %v591 = vunpack.c.l.s4 1983009808
        %v592 = vunpack.c.0.s8 %v591
        %v593 = vlaneseq
        %v594 = vshrl.u32 %v593, 7
        %v595 = vsub.s32 %v592, %v594
        %v596 = vrot.slane %v585, %v595
        %v598 = vunpack.c.l.s4 1983009808
        %v599 = vunpack.c.0.s8 %v598
        %v600 = vlaneseq
        %v601 = vshrl.u32 %v600, 7
        %v602 = vsub.s32 %v599, %v601
        %v603 = vrot.slane %v589, %v602
        %v604 = vcombine.high %v586, 0.0
        %v606 = vunpack.c.l.s4 1983009808
        %v607 = vunpack.c.0.s8 %v606
        %v608 = vlaneseq
        %v609 = vshrl.u32 %v608, 7
        %v610 = vsub.s32 %v607, %v609
        %v611 = vrot.slane %v586, %v610
        %v613 = vunpack.c.l.s4 1983009808
        %v614 = vunpack.c.0.s8 %v613
        %v615 = vlaneseq
        %v616 = vshrl.u32 %v615, 7
        %v617 = vsub.s32 %v614, %v616
        %v618 = vrot.slane %v604, %v617
        %v619 = vcombine.low %v596, %v611
        %v620 = vcombine.high %v596, %v611
        %v622 = vunpack.c.l.s4 1934713408
        %v623 = vunpack.c.0.s8 %v622
        %v624 = vlaneseq
        %v625 = vshrl.u32 %v624, 7
        %v626 = vsub.s32 %v623, %v625
        %v627 = vrot.slane %v619, %v626
        %v629 = vunpack.c.l.s4 1934713408
        %v630 = vunpack.c.0.s8 %v629
        %v631 = vlaneseq
        %v632 = vshrl.u32 %v631, 7
        %v633 = vsub.s32 %v630, %v632
        %v634 = vrot.slane %v620, %v633
        %v635 = vcombine.low %v603, %v618
        %v636 = vcombine.high %v603, %v618
        %v638 = vunpack.c.l.s4 1934713408
        %v639 = vunpack.c.0.s8 %v638
        %v640 = vlaneseq
        %v641 = vshrl.u32 %v640, 7
        %v642 = vsub.s32 %v639, %v641
        %v643 = vrot.slane %v635, %v642
        %v645 = vunpack.c.l.s4 1934713408
        %v646 = vunpack.c.0.s8 %v645
        %v647 = vlaneseq
        %v648 = vshrl.u32 %v647, 7
        %v649 = vsub.s32 %v646, %v648
        %v650 = vrot.slane %v636, %v649
        %v651 = vcombine.high %v627, 0.0
        %v652 = vcombine.high %v634, 0.0
        %v653 = vcombine.high %v643, 0.0
        %v654 = vcombine.high %v650, 0.0
        %v655 = vcombine.high %v575, 0.0
        %v657 = vunpack.c.l.s4 1983009808
        %v658 = vunpack.c.0.s8 %v657
        %v659 = vlaneseq
        %v660 = vshrl.u32 %v659, 7
        %v661 = vsub.s32 %v658, %v660
        %v662 = vrot.slane %v575, %v661
        %v664 = vunpack.c.l.s4 1983009808
        %v665 = vunpack.c.0.s8 %v664
        %v666 = vlaneseq
        %v667 = vshrl.u32 %v666, 7
        %v668 = vsub.s32 %v665, %v667
        %v669 = vrot.slane %v655, %v668
        %v670 = vcombine.high %v578, 0.0
        %v672 = vunpack.c.l.s4 1983009808
        %v673 = vunpack.c.0.s8 %v672
        %v674 = vlaneseq
        %v675 = vshrl.u32 %v674, 7
        %v676 = vsub.s32 %v673, %v675
        %v677 = vrot.slane %v578, %v676
        %v679 = vunpack.c.l.s4 1983009808
        %v680 = vunpack.c.0.s8 %v679
        %v681 = vlaneseq
        %v682 = vshrl.u32 %v681, 7
        %v683 = vsub.s32 %v680, %v682
        %v684 = vrot.slane %v670, %v683
        %v685 = vcombine.low %v662, %v677
        %v686 = vcombine.high %v662, %v677
        %v688 = vunpack.c.l.s4 1934713408
        %v689 = vunpack.c.0.s8 %v688
        %v690 = vlaneseq
        %v691 = vshrl.u32 %v690, 7
        %v692 = vsub.s32 %v689, %v691
        %v693 = vrot.slane %v685, %v692
        %v695 = vunpack.c.l.s4 1934713408
        %v696 = vunpack.c.0.s8 %v695
        %v697 = vlaneseq
        %v698 = vshrl.u32 %v697, 7
        %v699 = vsub.s32 %v696, %v698
        %v700 = vrot.slane %v686, %v699
        %v701 = vcombine.low %v669, %v684
        %v702 = vcombine.high %v669, %v684
        %v704 = vunpack.c.l.s4 1934713408
        %v705 = vunpack.c.0.s8 %v704
        %v706 = vlaneseq
        %v707 = vshrl.u32 %v706, 7
        %v708 = vsub.s32 %v705, %v707
        %v709 = vrot.slane %v701, %v708
        %v711 = vunpack.c.l.s4 1934713408
        %v712 = vunpack.c.0.s8 %v711
        %v713 = vlaneseq
        %v714 = vshrl.u32 %v713, 7
        %v715 = vsub.s32 %v712, %v714
        %v716 = vrot.slane %v702, %v715
        %v717 = vcombine.high %v693, 0.0
        %v718 = vcombine.high %v700, 0.0
        %v719 = vcombine.high %v709, 0.0
        %v720 = vcombine.high %v716, 0.0
        %722 = vrot.lane.b32.xlu0 %v651, 16
        %v723 = vpop.permute.xlu0 %722
        %726 = vrot.lane.b32.xlu0 %v634, 32
        %v727 = vpop.permute.xlu0 %726
        %730 = vrot.lane.b32.xlu0 %v652, 48
        %v731 = vpop.permute.xlu0 %730
        %734 = vrot.lane.b32.xlu0 %v643, 64
        %v735 = vpop.permute.xlu0 %734
        %738 = vrot.lane.b32.xlu0 %v653, 80
        %v739 = vpop.permute.xlu0 %738
        %742 = vrot.lane.b32.xlu0 %v650, 96
        %v743 = vpop.permute.xlu0 %742
        %746 = vrot.lane.b32.xlu0 %v654, 112
        %v747 = vpop.permute.xlu0 %746
        %750 = vrot.lane.b32.xlu0 %v717, 16
        %v751 = vpop.permute.xlu0 %750
        %754 = vrot.lane.b32.xlu0 %v700, 32
        %v755 = vpop.permute.xlu0 %754
        %758 = vrot.lane.b32.xlu0 %v718, 48
        %v759 = vpop.permute.xlu0 %758
        %762 = vrot.lane.b32.xlu0 %v709, 64
        %v763 = vpop.permute.xlu0 %762
        %766 = vrot.lane.b32.xlu0 %v719, 80
        %v767 = vpop.permute.xlu0 %766
        %770 = vrot.lane.b32.xlu0 %v716, 96
        %v771 = vpop.permute.xlu0 %770
        %774 = vrot.lane.b32.xlu0 %v720, 112
        %v775 = vpop.permute.xlu0 %774
        %v777 = vsel %vm521, %v627, %v723
        %v778 = vsel %vm523, %v777, %v727
        %v779 = vsel %vm525, %v778, %v731
        %v780 = vsel %vm527, %v779, %v735
        %v781 = vsel %vm529, %v780, %v739
        %v782 = vsel %vm531, %v781, %v743
        %v783 = vsel %vm533, %v782, %v747
        %v784 = vsel %vm521, %v693, %v751
        %v785 = vsel %vm523, %v784, %v755
        %v786 = vsel %vm525, %v785, %v759
        %v787 = vsel %vm527, %v786, %v763
        %v788 = vsel %vm529, %v787, %v767
        %v789 = vsel %vm531, %v788, %v771
        %v790 = vsel %vm533, %v789, %v775
        %793 = vrot.lane.b32.xlu0 %v585, 127
        %v794 = vpop.permute.xlu0 %793
        %795 = vrot.lane.b32.xlu0 %v575, 127
        %v796 = vpop.permute.xlu0 %795
        %797 = vrot.lane.b32.xlu0 %v586, 127
        %v798 = vpop.permute.xlu0 %797
        %799 = vrot.lane.b32.xlu0 %v578, 127
        %v800 = vpop.permute.xlu0 %799
        %v805 = vcombine.high %v794, 0.0
        %v807 = vunpack.c.l.s4 1983009808
        %v808 = vunpack.c.0.s8 %v807
        %v809 = vlaneseq
        %v810 = vshrl.u32 %v809, 7
        %v811 = vsub.s32 %v808, %v810
        %v812 = vrot.slane %v794, %v811
        %v814 = vunpack.c.l.s4 1983009808
        %v815 = vunpack.c.0.s8 %v814
        %v816 = vlaneseq
        %v817 = vshrl.u32 %v816, 7
        %v818 = vsub.s32 %v815, %v817
        %v819 = vrot.slane %v805, %v818
        %v820 = vcombine.high %v798, 0.0
        %v822 = vunpack.c.l.s4 1983009808
        %v823 = vunpack.c.0.s8 %v822
        %v824 = vlaneseq
        %v825 = vshrl.u32 %v824, 7
        %v826 = vsub.s32 %v823, %v825
        %v827 = vrot.slane %v798, %v826
        %v829 = vunpack.c.l.s4 1983009808
        %v830 = vunpack.c.0.s8 %v829
        %v831 = vlaneseq
        %v832 = vshrl.u32 %v831, 7
        %v833 = vsub.s32 %v830, %v832
        %v834 = vrot.slane %v820, %v833
        %v835 = vcombine.low %v812, %v827
        %v836 = vcombine.high %v812, %v827
        %v838 = vunpack.c.l.s4 1934713408
        %v839 = vunpack.c.0.s8 %v838
        %v840 = vlaneseq
        %v841 = vshrl.u32 %v840, 7
        %v842 = vsub.s32 %v839, %v841
        %v843 = vrot.slane %v835, %v842
        %v845 = vunpack.c.l.s4 1934713408
        %v846 = vunpack.c.0.s8 %v845
        %v847 = vlaneseq
        %v848 = vshrl.u32 %v847, 7
        %v849 = vsub.s32 %v846, %v848
        %v850 = vrot.slane %v836, %v849
        %v851 = vcombine.low %v819, %v834
        %v852 = vcombine.high %v819, %v834
        %v854 = vunpack.c.l.s4 1934713408
        %v855 = vunpack.c.0.s8 %v854
        %v856 = vlaneseq
        %v857 = vshrl.u32 %v856, 7
        %v858 = vsub.s32 %v855, %v857
        %v859 = vrot.slane %v851, %v858
        %v861 = vunpack.c.l.s4 1934713408
        %v862 = vunpack.c.0.s8 %v861
        %v863 = vlaneseq
        %v864 = vshrl.u32 %v863, 7
        %v865 = vsub.s32 %v862, %v864
        %v866 = vrot.slane %v852, %v865
        %v867 = vcombine.high %v843, 0.0
        %v868 = vcombine.high %v850, 0.0
        %v869 = vcombine.high %v859, 0.0
        %v870 = vcombine.high %v866, 0.0
        %v871 = vcombine.high %v796, 0.0
        %v873 = vunpack.c.l.s4 1983009808
        %v874 = vunpack.c.0.s8 %v873
        %v875 = vlaneseq
        %v876 = vshrl.u32 %v875, 7
        %v877 = vsub.s32 %v874, %v876
        %v878 = vrot.slane %v796, %v877
        %v880 = vunpack.c.l.s4 1983009808
        %v881 = vunpack.c.0.s8 %v880
        %v882 = vlaneseq
        %v883 = vshrl.u32 %v882, 7
        %v884 = vsub.s32 %v881, %v883
        %v885 = vrot.slane %v871, %v884
        %v886 = vcombine.high %v800, 0.0
        %v888 = vunpack.c.l.s4 1983009808
        %v889 = vunpack.c.0.s8 %v888
        %v890 = vlaneseq
        %v891 = vshrl.u32 %v890, 7
        %v892 = vsub.s32 %v889, %v891
        %v893 = vrot.slane %v800, %v892
        %v895 = vunpack.c.l.s4 1983009808
        %v896 = vunpack.c.0.s8 %v895
        %v897 = vlaneseq
        %v898 = vshrl.u32 %v897, 7
        %v899 = vsub.s32 %v896, %v898
        %v900 = vrot.slane %v886, %v899
        %v901 = vcombine.low %v878, %v893
        %v902 = vcombine.high %v878, %v893
        %v904 = vunpack.c.l.s4 1934713408
        %v905 = vunpack.c.0.s8 %v904
        %v906 = vlaneseq
        %v907 = vshrl.u32 %v906, 7
        %v908 = vsub.s32 %v905, %v907
        %v909 = vrot.slane %v901, %v908
        %v911 = vunpack.c.l.s4 1934713408
        %v912 = vunpack.c.0.s8 %v911
        %v913 = vlaneseq
        %v914 = vshrl.u32 %v913, 7
        %v915 = vsub.s32 %v912, %v914
        %v916 = vrot.slane %v902, %v915
        %v917 = vcombine.low %v885, %v900
        %v918 = vcombine.high %v885, %v900
        %v920 = vunpack.c.l.s4 1934713408
        %v921 = vunpack.c.0.s8 %v920
        %v922 = vlaneseq
        %v923 = vshrl.u32 %v922, 7
        %v924 = vsub.s32 %v921, %v923
        %v925 = vrot.slane %v917, %v924
        %v927 = vunpack.c.l.s4 1934713408
        %v928 = vunpack.c.0.s8 %v927
        %v929 = vlaneseq
        %v930 = vshrl.u32 %v929, 7
        %v931 = vsub.s32 %v928, %v930
        %v932 = vrot.slane %v918, %v931
        %v933 = vcombine.high %v909, 0.0
        %v934 = vcombine.high %v916, 0.0
        %v935 = vcombine.high %v925, 0.0
        %v936 = vcombine.high %v932, 0.0
        %938 = vrot.lane.b32.xlu0 %v867, 16
        %v939 = vpop.permute.xlu0 %938
        %942 = vrot.lane.b32.xlu0 %v850, 32
        %v943 = vpop.permute.xlu0 %942
        %946 = vrot.lane.b32.xlu0 %v868, 48
        %v947 = vpop.permute.xlu0 %946
        %950 = vrot.lane.b32.xlu0 %v859, 64
        %v951 = vpop.permute.xlu0 %950
        %954 = vrot.lane.b32.xlu0 %v869, 80
        %v955 = vpop.permute.xlu0 %954
        %958 = vrot.lane.b32.xlu0 %v866, 96
        %v959 = vpop.permute.xlu0 %958
        %962 = vrot.lane.b32.xlu0 %v870, 112
        %v963 = vpop.permute.xlu0 %962
        %966 = vrot.lane.b32.xlu0 %v933, 16
        %v967 = vpop.permute.xlu0 %966
        %970 = vrot.lane.b32.xlu0 %v916, 32
        %v971 = vpop.permute.xlu0 %970
        %974 = vrot.lane.b32.xlu0 %v934, 48
        %v975 = vpop.permute.xlu0 %974
        %978 = vrot.lane.b32.xlu0 %v925, 64
        %v979 = vpop.permute.xlu0 %978
        %982 = vrot.lane.b32.xlu0 %v935, 80
        %v983 = vpop.permute.xlu0 %982
        %986 = vrot.lane.b32.xlu0 %v932, 96
        %v987 = vpop.permute.xlu0 %986
        %990 = vrot.lane.b32.xlu0 %v936, 112
        %v991 = vpop.permute.xlu0 %990
        %v993 = vsel %vm521, %v843, %v939
        %v994 = vsel %vm523, %v993, %v943
        %v995 = vsel %vm525, %v994, %v947
        %v996 = vsel %vm527, %v995, %v951
        %v997 = vsel %vm529, %v996, %v955
        %v998 = vsel %vm531, %v997, %v959
        %v999 = vsel %vm533, %v998, %v963
        %v1000 = vsel %vm521, %v909, %v967
        %v1001 = vsel %vm523, %v1000, %v971
        %v1002 = vsel %vm525, %v1001, %v975
        %v1003 = vsel %vm527, %v1002, %v979
        %v1004 = vsel %vm529, %v1003, %v983
        %v1005 = vsel %vm531, %v1004, %v987
        %v1006 = vsel %vm533, %v1005, %v991
        %1007 = vrot.lane.b32.xlu0 %v585, 126
        %v1008 = vpop.permute.xlu0 %1007
        %1009 = vrot.lane.b32.xlu0 %v575, 126
        %v1010 = vpop.permute.xlu0 %1009
        %1011 = vrot.lane.b32.xlu0 %v586, 126
        %v1012 = vpop.permute.xlu0 %1011
        %1013 = vrot.lane.b32.xlu0 %v578, 126
        %v1014 = vpop.permute.xlu0 %1013
        %v1019 = vcombine.high %v1008, 0.0
        %v1021 = vunpack.c.l.s4 1983009808
        %v1022 = vunpack.c.0.s8 %v1021
        %v1023 = vlaneseq
        %v1024 = vshrl.u32 %v1023, 7
        %v1025 = vsub.s32 %v1022, %v1024
        %v1026 = vrot.slane %v1008, %v1025
        %v1028 = vunpack.c.l.s4 1983009808
        %v1029 = vunpack.c.0.s8 %v1028
        %v1030 = vlaneseq
        %v1031 = vshrl.u32 %v1030, 7
        %v1032 = vsub.s32 %v1029, %v1031
        %v1033 = vrot.slane %v1019, %v1032
        %v1034 = vcombine.high %v1012, 0.0
        %v1036 = vunpack.c.l.s4 1983009808
        %v1037 = vunpack.c.0.s8 %v1036
        %v1038 = vlaneseq
        %v1039 = vshrl.u32 %v1038, 7
        %v1040 = vsub.s32 %v1037, %v1039
        %v1041 = vrot.slane %v1012, %v1040
        %v1043 = vunpack.c.l.s4 1983009808
        %v1044 = vunpack.c.0.s8 %v1043
        %v1045 = vlaneseq
        %v1046 = vshrl.u32 %v1045, 7
        %v1047 = vsub.s32 %v1044, %v1046
        %v1048 = vrot.slane %v1034, %v1047
        %v1049 = vcombine.low %v1026, %v1041
        %v1050 = vcombine.high %v1026, %v1041
        %v1052 = vunpack.c.l.s4 1934713408
        %v1053 = vunpack.c.0.s8 %v1052
        %v1054 = vlaneseq
        %v1055 = vshrl.u32 %v1054, 7
        %v1056 = vsub.s32 %v1053, %v1055
        %v1057 = vrot.slane %v1049, %v1056
        %v1059 = vunpack.c.l.s4 1934713408
        %v1060 = vunpack.c.0.s8 %v1059
        %v1061 = vlaneseq
        %v1062 = vshrl.u32 %v1061, 7
        %v1063 = vsub.s32 %v1060, %v1062
        %v1064 = vrot.slane %v1050, %v1063
        %v1065 = vcombine.low %v1033, %v1048
        %v1066 = vcombine.high %v1033, %v1048
        %v1068 = vunpack.c.l.s4 1934713408
        %v1069 = vunpack.c.0.s8 %v1068
        %v1070 = vlaneseq
        %v1071 = vshrl.u32 %v1070, 7
        %v1072 = vsub.s32 %v1069, %v1071
        %v1073 = vrot.slane %v1065, %v1072
        %v1075 = vunpack.c.l.s4 1934713408
        %v1076 = vunpack.c.0.s8 %v1075
        %v1077 = vlaneseq
        %v1078 = vshrl.u32 %v1077, 7
        %v1079 = vsub.s32 %v1076, %v1078
        %v1080 = vrot.slane %v1066, %v1079
        %v1081 = vcombine.high %v1057, 0.0
        %v1082 = vcombine.high %v1064, 0.0
        %v1083 = vcombine.high %v1073, 0.0
        %v1084 = vcombine.high %v1080, 0.0
        %v1085 = vcombine.high %v1010, 0.0
        %v1087 = vunpack.c.l.s4 1983009808
        %v1088 = vunpack.c.0.s8 %v1087
        %v1089 = vlaneseq
        %v1090 = vshrl.u32 %v1089, 7
        %v1091 = vsub.s32 %v1088, %v1090
        %v1092 = vrot.slane %v1010, %v1091
        %v1094 = vunpack.c.l.s4 1983009808
        %v1095 = vunpack.c.0.s8 %v1094
        %v1096 = vlaneseq
        %v1097 = vshrl.u32 %v1096, 7
        %v1098 = vsub.s32 %v1095, %v1097
        %v1099 = vrot.slane %v1085, %v1098
        %v1100 = vcombine.high %v1014, 0.0
        %v1102 = vunpack.c.l.s4 1983009808
        %v1103 = vunpack.c.0.s8 %v1102
        %v1104 = vlaneseq
        %v1105 = vshrl.u32 %v1104, 7
        %v1106 = vsub.s32 %v1103, %v1105
        %v1107 = vrot.slane %v1014, %v1106
        %v1109 = vunpack.c.l.s4 1983009808
        %v1110 = vunpack.c.0.s8 %v1109
        %v1111 = vlaneseq
        %v1112 = vshrl.u32 %v1111, 7
        %v1113 = vsub.s32 %v1110, %v1112
        %v1114 = vrot.slane %v1100, %v1113
        %v1115 = vcombine.low %v1092, %v1107
        %v1116 = vcombine.high %v1092, %v1107
        %v1118 = vunpack.c.l.s4 1934713408
        %v1119 = vunpack.c.0.s8 %v1118
        %v1120 = vlaneseq
        %v1121 = vshrl.u32 %v1120, 7
        %v1122 = vsub.s32 %v1119, %v1121
        %v1123 = vrot.slane %v1115, %v1122
        %v1125 = vunpack.c.l.s4 1934713408
        %v1126 = vunpack.c.0.s8 %v1125
        %v1127 = vlaneseq
        %v1128 = vshrl.u32 %v1127, 7
        %v1129 = vsub.s32 %v1126, %v1128
        %v1130 = vrot.slane %v1116, %v1129
        %v1131 = vcombine.low %v1099, %v1114
        %v1132 = vcombine.high %v1099, %v1114
        %v1134 = vunpack.c.l.s4 1934713408
        %v1135 = vunpack.c.0.s8 %v1134
        %v1136 = vlaneseq
        %v1137 = vshrl.u32 %v1136, 7
        %v1138 = vsub.s32 %v1135, %v1137
        %v1139 = vrot.slane %v1131, %v1138
        %v1141 = vunpack.c.l.s4 1934713408
        %v1142 = vunpack.c.0.s8 %v1141
        %v1143 = vlaneseq
        %v1144 = vshrl.u32 %v1143, 7
        %v1145 = vsub.s32 %v1142, %v1144
        %v1146 = vrot.slane %v1132, %v1145
        %v1147 = vcombine.high %v1123, 0.0
        %v1148 = vcombine.high %v1130, 0.0
        %v1149 = vcombine.high %v1139, 0.0
        %v1150 = vcombine.high %v1146, 0.0
        %1152 = vrot.lane.b32.xlu0 %v1081, 16
        %v1153 = vpop.permute.xlu0 %1152
        %1156 = vrot.lane.b32.xlu0 %v1064, 32
        %v1157 = vpop.permute.xlu0 %1156
        %1160 = vrot.lane.b32.xlu0 %v1082, 48
        %v1161 = vpop.permute.xlu0 %1160
        %1164 = vrot.lane.b32.xlu0 %v1073, 64
        %v1165 = vpop.permute.xlu0 %1164
        %1168 = vrot.lane.b32.xlu0 %v1083, 80
        %v1169 = vpop.permute.xlu0 %1168
        %1172 = vrot.lane.b32.xlu0 %v1080, 96
        %v1173 = vpop.permute.xlu0 %1172
        %1176 = vrot.lane.b32.xlu0 %v1084, 112
        %v1177 = vpop.permute.xlu0 %1176
        %1180 = vrot.lane.b32.xlu0 %v1147, 16
        %v1181 = vpop.permute.xlu0 %1180
        %1184 = vrot.lane.b32.xlu0 %v1130, 32
        %v1185 = vpop.permute.xlu0 %1184
        %1188 = vrot.lane.b32.xlu0 %v1148, 48
        %v1189 = vpop.permute.xlu0 %1188
        %1192 = vrot.lane.b32.xlu0 %v1139, 64
        %v1193 = vpop.permute.xlu0 %1192
        %1196 = vrot.lane.b32.xlu0 %v1149, 80
        %v1197 = vpop.permute.xlu0 %1196
        %1200 = vrot.lane.b32.xlu0 %v1146, 96
        %v1201 = vpop.permute.xlu0 %1200
        %1204 = vrot.lane.b32.xlu0 %v1150, 112
        %v1205 = vpop.permute.xlu0 %1204
        %v1207 = vsel %vm521, %v1057, %v1153
        %v1208 = vsel %vm523, %v1207, %v1157
        %v1209 = vsel %vm525, %v1208, %v1161
        %v1210 = vsel %vm527, %v1209, %v1165
        %v1211 = vsel %vm529, %v1210, %v1169
        %v1212 = vsel %vm531, %v1211, %v1173
        %v1213 = vsel %vm533, %v1212, %v1177
        %v1214 = vsel %vm521, %v1123, %v1181
        %v1215 = vsel %vm523, %v1214, %v1185
        %v1216 = vsel %vm525, %v1215, %v1189
        %v1217 = vsel %vm527, %v1216, %v1193
        %v1218 = vsel %vm529, %v1217, %v1197
        %v1219 = vsel %vm531, %v1218, %v1201
        %v1220 = vsel %vm533, %v1219, %v1205
        %vm1223 = vcmask 1046528
        %v1224 = vrot.slane %v585, 1
        %v1225 = vrot.slane %v575, 1
        %v1226 = vsel %vm1223, %v1224, %v1225
        %v1227 = vrot.slane %v587, 1
        %v1228 = vsel %vm1223, %v1225, %v1227
        %v1229 = vrot.slane %v586, 1
        %v1230 = vrot.slane %v578, 1
        %v1231 = vsel %vm1223, %v1229, %v1230
        %v1232 = vrot.slane %v588, 1
        %v1233 = vsel %vm1223, %v1230, %v1232
        %v1238 = vcombine.high %v1226, 0.0
        %v1240 = vunpack.c.l.s4 1983009808
        %v1241 = vunpack.c.0.s8 %v1240
        %v1242 = vlaneseq
        %v1243 = vshrl.u32 %v1242, 7
        %v1244 = vsub.s32 %v1241, %v1243
        %v1245 = vrot.slane %v1226, %v1244
        %v1247 = vunpack.c.l.s4 1983009808
        %v1248 = vunpack.c.0.s8 %v1247
        %v1249 = vlaneseq
        %v1250 = vshrl.u32 %v1249, 7
        %v1251 = vsub.s32 %v1248, %v1250
        %v1252 = vrot.slane %v1238, %v1251
        %v1253 = vcombine.high %v1231, 0.0
        %v1255 = vunpack.c.l.s4 1983009808
        %v1256 = vunpack.c.0.s8 %v1255
        %v1257 = vlaneseq
        %v1258 = vshrl.u32 %v1257, 7
        %v1259 = vsub.s32 %v1256, %v1258
        %v1260 = vrot.slane %v1231, %v1259
        %v1262 = vunpack.c.l.s4 1983009808
        %v1263 = vunpack.c.0.s8 %v1262
        %v1264 = vlaneseq
        %v1265 = vshrl.u32 %v1264, 7
        %v1266 = vsub.s32 %v1263, %v1265
        %v1267 = vrot.slane %v1253, %v1266
        %v1268 = vcombine.low %v1245, %v1260
        %v1269 = vcombine.high %v1245, %v1260
        %v1271 = vunpack.c.l.s4 1934713408
        %v1272 = vunpack.c.0.s8 %v1271
        %v1273 = vlaneseq
        %v1274 = vshrl.u32 %v1273, 7
        %v1275 = vsub.s32 %v1272, %v1274
        %v1276 = vrot.slane %v1268, %v1275
        %v1278 = vunpack.c.l.s4 1934713408
        %v1279 = vunpack.c.0.s8 %v1278
        %v1280 = vlaneseq
        %v1281 = vshrl.u32 %v1280, 7
        %v1282 = vsub.s32 %v1279, %v1281
        %v1283 = vrot.slane %v1269, %v1282
        %v1284 = vcombine.low %v1252, %v1267
        %v1285 = vcombine.high %v1252, %v1267
        %v1287 = vunpack.c.l.s4 1934713408
        %v1288 = vunpack.c.0.s8 %v1287
        %v1289 = vlaneseq
        %v1290 = vshrl.u32 %v1289, 7
        %v1291 = vsub.s32 %v1288, %v1290
        %v1292 = vrot.slane %v1284, %v1291
        %v1294 = vunpack.c.l.s4 1934713408
        %v1295 = vunpack.c.0.s8 %v1294
        %v1296 = vlaneseq
        %v1297 = vshrl.u32 %v1296, 7
        %v1298 = vsub.s32 %v1295, %v1297
        %v1299 = vrot.slane %v1285, %v1298
        %v1300 = vcombine.high %v1276, 0.0
        %v1301 = vcombine.high %v1283, 0.0
        %v1302 = vcombine.high %v1292, 0.0
        %v1303 = vcombine.high %v1299, 0.0
        %v1304 = vcombine.high %v1228, 0.0
        %v1306 = vunpack.c.l.s4 1983009808
        %v1307 = vunpack.c.0.s8 %v1306
        %v1308 = vlaneseq
        %v1309 = vshrl.u32 %v1308, 7
        %v1310 = vsub.s32 %v1307, %v1309
        %v1311 = vrot.slane %v1228, %v1310
        %v1313 = vunpack.c.l.s4 1983009808
        %v1314 = vunpack.c.0.s8 %v1313
        %v1315 = vlaneseq
        %v1316 = vshrl.u32 %v1315, 7
        %v1317 = vsub.s32 %v1314, %v1316
        %v1318 = vrot.slane %v1304, %v1317
        %v1319 = vcombine.high %v1233, 0.0
        %v1321 = vunpack.c.l.s4 1983009808
        %v1322 = vunpack.c.0.s8 %v1321
        %v1323 = vlaneseq
        %v1324 = vshrl.u32 %v1323, 7
        %v1325 = vsub.s32 %v1322, %v1324
        %v1326 = vrot.slane %v1233, %v1325
        %v1328 = vunpack.c.l.s4 1983009808
        %v1329 = vunpack.c.0.s8 %v1328
        %v1330 = vlaneseq
        %v1331 = vshrl.u32 %v1330, 7
        %v1332 = vsub.s32 %v1329, %v1331
        %v1333 = vrot.slane %v1319, %v1332
        %v1334 = vcombine.low %v1311, %v1326
        %v1335 = vcombine.high %v1311, %v1326
        %v1337 = vunpack.c.l.s4 1934713408
        %v1338 = vunpack.c.0.s8 %v1337
        %v1339 = vlaneseq
        %v1340 = vshrl.u32 %v1339, 7
        %v1341 = vsub.s32 %v1338, %v1340
        %v1342 = vrot.slane %v1334, %v1341
        %v1344 = vunpack.c.l.s4 1934713408
        %v1345 = vunpack.c.0.s8 %v1344
        %v1346 = vlaneseq
        %v1347 = vshrl.u32 %v1346, 7
        %v1348 = vsub.s32 %v1345, %v1347
        %v1349 = vrot.slane %v1335, %v1348
        %v1350 = vcombine.low %v1318, %v1333
        %v1351 = vcombine.high %v1318, %v1333
        %v1353 = vunpack.c.l.s4 1934713408
        %v1354 = vunpack.c.0.s8 %v1353
        %v1355 = vlaneseq
        %v1356 = vshrl.u32 %v1355, 7
        %v1357 = vsub.s32 %v1354, %v1356
        %v1358 = vrot.slane %v1350, %v1357
        %v1360 = vunpack.c.l.s4 1934713408
        %v1361 = vunpack.c.0.s8 %v1360
        %v1362 = vlaneseq
        %v1363 = vshrl.u32 %v1362, 7
        %v1364 = vsub.s32 %v1361, %v1363
        %v1365 = vrot.slane %v1351, %v1364
        %v1366 = vcombine.high %v1342, 0.0
        %v1367 = vcombine.high %v1349, 0.0
        %v1368 = vcombine.high %v1358, 0.0
        %v1369 = vcombine.high %v1365, 0.0
        %1371 = vrot.lane.b32.xlu0 %v1300, 16
        %v1372 = vpop.permute.xlu0 %1371
        %1375 = vrot.lane.b32.xlu0 %v1283, 32
        %v1376 = vpop.permute.xlu0 %1375
        %1379 = vrot.lane.b32.xlu0 %v1301, 48
        %v1380 = vpop.permute.xlu0 %1379
        %1383 = vrot.lane.b32.xlu0 %v1292, 64
        %v1384 = vpop.permute.xlu0 %1383
        %1387 = vrot.lane.b32.xlu0 %v1302, 80
        %v1388 = vpop.permute.xlu0 %1387
        %1391 = vrot.lane.b32.xlu0 %v1299, 96
        %v1392 = vpop.permute.xlu0 %1391
        %1395 = vrot.lane.b32.xlu0 %v1303, 112
        %v1396 = vpop.permute.xlu0 %1395
        %1399 = vrot.lane.b32.xlu0 %v1366, 16
        %v1400 = vpop.permute.xlu0 %1399
        %1403 = vrot.lane.b32.xlu0 %v1349, 32
        %v1404 = vpop.permute.xlu0 %1403
        %1407 = vrot.lane.b32.xlu0 %v1367, 48
        %v1408 = vpop.permute.xlu0 %1407
        %1411 = vrot.lane.b32.xlu0 %v1358, 64
        %v1412 = vpop.permute.xlu0 %1411
        %1415 = vrot.lane.b32.xlu0 %v1368, 80
        %v1416 = vpop.permute.xlu0 %1415
        %1419 = vrot.lane.b32.xlu0 %v1365, 96
        %v1420 = vpop.permute.xlu0 %1419
        %1423 = vrot.lane.b32.xlu0 %v1369, 112
        %v1424 = vpop.permute.xlu0 %1423
        %v1426 = vsel %vm521, %v1276, %v1372
        %v1427 = vsel %vm523, %v1426, %v1376
        %v1428 = vsel %vm525, %v1427, %v1380
        %v1429 = vsel %vm527, %v1428, %v1384
        %v1430 = vsel %vm529, %v1429, %v1388
        %v1431 = vsel %vm531, %v1430, %v1392
        %v1432 = vsel %vm533, %v1431, %v1396
        %v1433 = vsel %vm521, %v1342, %v1400
        %v1434 = vsel %vm523, %v1433, %v1404
        %v1435 = vsel %vm525, %v1434, %v1408
        %v1436 = vsel %vm527, %v1435, %v1412
        %v1437 = vsel %vm529, %v1436, %v1416
        %v1438 = vsel %vm531, %v1437, %v1420
        %v1439 = vsel %vm533, %v1438, %v1424
        %1440 = vrot.lane.b32.xlu0 %v1226, 127
        %v1441 = vpop.permute.xlu0 %1440
        %1442 = vrot.lane.b32.xlu0 %v1228, 127
        %v1443 = vpop.permute.xlu0 %1442
        %1444 = vrot.lane.b32.xlu0 %v1231, 127
        %v1445 = vpop.permute.xlu0 %1444
        %1446 = vrot.lane.b32.xlu0 %v1233, 127
        %v1447 = vpop.permute.xlu0 %1446
        %v1452 = vcombine.high %v1441, 0.0
        %v1454 = vunpack.c.l.s4 1983009808
        %v1455 = vunpack.c.0.s8 %v1454
        %v1456 = vlaneseq
        %v1457 = vshrl.u32 %v1456, 7
        %v1458 = vsub.s32 %v1455, %v1457
        %v1459 = vrot.slane %v1441, %v1458
        %v1461 = vunpack.c.l.s4 1983009808
        %v1462 = vunpack.c.0.s8 %v1461
        %v1463 = vlaneseq
        %v1464 = vshrl.u32 %v1463, 7
        %v1465 = vsub.s32 %v1462, %v1464
        %v1466 = vrot.slane %v1452, %v1465
        %v1467 = vcombine.high %v1445, 0.0
        %v1469 = vunpack.c.l.s4 1983009808
        %v1470 = vunpack.c.0.s8 %v1469
        %v1471 = vlaneseq
        %v1472 = vshrl.u32 %v1471, 7
        %v1473 = vsub.s32 %v1470, %v1472
        %v1474 = vrot.slane %v1445, %v1473
        %v1476 = vunpack.c.l.s4 1983009808
        %v1477 = vunpack.c.0.s8 %v1476
        %v1478 = vlaneseq
        %v1479 = vshrl.u32 %v1478, 7
        %v1480 = vsub.s32 %v1477, %v1479
        %v1481 = vrot.slane %v1467, %v1480
        %v1482 = vcombine.low %v1459, %v1474
        %v1483 = vcombine.high %v1459, %v1474
        %v1485 = vunpack.c.l.s4 1934713408
        %v1486 = vunpack.c.0.s8 %v1485
        %v1487 = vlaneseq
        %v1488 = vshrl.u32 %v1487, 7
        %v1489 = vsub.s32 %v1486, %v1488
        %v1490 = vrot.slane %v1482, %v1489
        %v1492 = vunpack.c.l.s4 1934713408
        %v1493 = vunpack.c.0.s8 %v1492
        %v1494 = vlaneseq
        %v1495 = vshrl.u32 %v1494, 7
        %v1496 = vsub.s32 %v1493, %v1495
        %v1497 = vrot.slane %v1483, %v1496
        %v1498 = vcombine.low %v1466, %v1481
        %v1499 = vcombine.high %v1466, %v1481
        %v1501 = vunpack.c.l.s4 1934713408
        %v1502 = vunpack.c.0.s8 %v1501
        %v1503 = vlaneseq
        %v1504 = vshrl.u32 %v1503, 7
        %v1505 = vsub.s32 %v1502, %v1504
        %v1506 = vrot.slane %v1498, %v1505
        %v1508 = vunpack.c.l.s4 1934713408
        %v1509 = vunpack.c.0.s8 %v1508
        %v1510 = vlaneseq
        %v1511 = vshrl.u32 %v1510, 7
        %v1512 = vsub.s32 %v1509, %v1511
        %v1513 = vrot.slane %v1499, %v1512
        %v1514 = vcombine.high %v1490, 0.0
        %v1515 = vcombine.high %v1497, 0.0
        %v1516 = vcombine.high %v1506, 0.0
        %v1517 = vcombine.high %v1513, 0.0
        %v1518 = vcombine.high %v1443, 0.0
        %v1520 = vunpack.c.l.s4 1983009808
        %v1521 = vunpack.c.0.s8 %v1520
        %v1522 = vlaneseq
        %v1523 = vshrl.u32 %v1522, 7
        %v1524 = vsub.s32 %v1521, %v1523
        %v1525 = vrot.slane %v1443, %v1524
        %v1527 = vunpack.c.l.s4 1983009808
        %v1528 = vunpack.c.0.s8 %v1527
        %v1529 = vlaneseq
        %v1530 = vshrl.u32 %v1529, 7
        %v1531 = vsub.s32 %v1528, %v1530
        %v1532 = vrot.slane %v1518, %v1531
        %v1533 = vcombine.high %v1447, 0.0
        %v1535 = vunpack.c.l.s4 1983009808
        %v1536 = vunpack.c.0.s8 %v1535
        %v1537 = vlaneseq
        %v1538 = vshrl.u32 %v1537, 7
        %v1539 = vsub.s32 %v1536, %v1538
        %v1540 = vrot.slane %v1447, %v1539
        %v1542 = vunpack.c.l.s4 1983009808
        %v1543 = vunpack.c.0.s8 %v1542
        %v1544 = vlaneseq
        %v1545 = vshrl.u32 %v1544, 7
        %v1546 = vsub.s32 %v1543, %v1545
        %v1547 = vrot.slane %v1533, %v1546
        %v1548 = vcombine.low %v1525, %v1540
        %v1549 = vcombine.high %v1525, %v1540
        %v1551 = vunpack.c.l.s4 1934713408
        %v1552 = vunpack.c.0.s8 %v1551
        %v1553 = vlaneseq
        %v1554 = vshrl.u32 %v1553, 7
        %v1555 = vsub.s32 %v1552, %v1554
        %v1556 = vrot.slane %v1548, %v1555
        %v1558 = vunpack.c.l.s4 1934713408
        %v1559 = vunpack.c.0.s8 %v1558
        %v1560 = vlaneseq
        %v1561 = vshrl.u32 %v1560, 7
        %v1562 = vsub.s32 %v1559, %v1561
        %v1563 = vrot.slane %v1549, %v1562
        %v1564 = vcombine.low %v1532, %v1547
        %v1565 = vcombine.high %v1532, %v1547
        %v1567 = vunpack.c.l.s4 1934713408
        %v1568 = vunpack.c.0.s8 %v1567
        %v1569 = vlaneseq
        %v1570 = vshrl.u32 %v1569, 7
        %v1571 = vsub.s32 %v1568, %v1570
        %v1572 = vrot.slane %v1564, %v1571
        %v1574 = vunpack.c.l.s4 1934713408
        %v1575 = vunpack.c.0.s8 %v1574
        %v1576 = vlaneseq
        %v1577 = vshrl.u32 %v1576, 7
        %v1578 = vsub.s32 %v1575, %v1577
        %v1579 = vrot.slane %v1565, %v1578
        %v1580 = vcombine.high %v1556, 0.0
        %v1581 = vcombine.high %v1563, 0.0
        %v1582 = vcombine.high %v1572, 0.0
        %v1583 = vcombine.high %v1579, 0.0
        %1585 = vrot.lane.b32.xlu0 %v1514, 16
        %v1586 = vpop.permute.xlu0 %1585
        %1589 = vrot.lane.b32.xlu0 %v1497, 32
        %v1590 = vpop.permute.xlu0 %1589
        %1593 = vrot.lane.b32.xlu0 %v1515, 48
        %v1594 = vpop.permute.xlu0 %1593
        %1597 = vrot.lane.b32.xlu0 %v1506, 64
        %v1598 = vpop.permute.xlu0 %1597
        %1601 = vrot.lane.b32.xlu0 %v1516, 80
        %v1602 = vpop.permute.xlu0 %1601
        %1605 = vrot.lane.b32.xlu0 %v1513, 96
        %v1606 = vpop.permute.xlu0 %1605
        %1609 = vrot.lane.b32.xlu0 %v1517, 112
        %v1610 = vpop.permute.xlu0 %1609
        %1613 = vrot.lane.b32.xlu0 %v1580, 16
        %v1614 = vpop.permute.xlu0 %1613
        %1617 = vrot.lane.b32.xlu0 %v1563, 32
        %v1618 = vpop.permute.xlu0 %1617
        %1621 = vrot.lane.b32.xlu0 %v1581, 48
        %v1622 = vpop.permute.xlu0 %1621
        %1625 = vrot.lane.b32.xlu0 %v1572, 64
        %v1626 = vpop.permute.xlu0 %1625
        %1629 = vrot.lane.b32.xlu0 %v1582, 80
        %v1630 = vpop.permute.xlu0 %1629
        %1633 = vrot.lane.b32.xlu0 %v1579, 96
        %v1634 = vpop.permute.xlu0 %1633
        %1637 = vrot.lane.b32.xlu0 %v1583, 112
        %v1638 = vpop.permute.xlu0 %1637
        %v1640 = vsel %vm521, %v1490, %v1586
        %v1641 = vsel %vm523, %v1640, %v1590
        %v1642 = vsel %vm525, %v1641, %v1594
        %v1643 = vsel %vm527, %v1642, %v1598
        %v1644 = vsel %vm529, %v1643, %v1602
        %v1645 = vsel %vm531, %v1644, %v1606
        %v1646 = vsel %vm533, %v1645, %v1610
        %v1647 = vsel %vm521, %v1556, %v1614
        %v1648 = vsel %vm523, %v1647, %v1618
        %v1649 = vsel %vm525, %v1648, %v1622
        %v1650 = vsel %vm527, %v1649, %v1626
        %v1651 = vsel %vm529, %v1650, %v1630
        %v1652 = vsel %vm531, %v1651, %v1634
        %v1653 = vsel %vm533, %v1652, %v1638
        %1654 = vrot.lane.b32.xlu0 %v1226, 126
        %v1655 = vpop.permute.xlu0 %1654
        %1656 = vrot.lane.b32.xlu0 %v1228, 126
        %v1657 = vpop.permute.xlu0 %1656
        %1658 = vrot.lane.b32.xlu0 %v1231, 126
        %v1659 = vpop.permute.xlu0 %1658
        %1660 = vrot.lane.b32.xlu0 %v1233, 126
        %v1661 = vpop.permute.xlu0 %1660
        %v1666 = vcombine.high %v1655, 0.0
        %v1668 = vunpack.c.l.s4 1983009808
        %v1669 = vunpack.c.0.s8 %v1668
        %v1670 = vlaneseq
        %v1671 = vshrl.u32 %v1670, 7
        %v1672 = vsub.s32 %v1669, %v1671
        %v1673 = vrot.slane %v1655, %v1672
        %v1675 = vunpack.c.l.s4 1983009808
        %v1676 = vunpack.c.0.s8 %v1675
        %v1677 = vlaneseq
        %v1678 = vshrl.u32 %v1677, 7
        %v1679 = vsub.s32 %v1676, %v1678
        %v1680 = vrot.slane %v1666, %v1679
        %v1681 = vcombine.high %v1659, 0.0
        %v1683 = vunpack.c.l.s4 1983009808
        %v1684 = vunpack.c.0.s8 %v1683
        %v1685 = vlaneseq
        %v1686 = vshrl.u32 %v1685, 7
        %v1687 = vsub.s32 %v1684, %v1686
        %v1688 = vrot.slane %v1659, %v1687
        %v1690 = vunpack.c.l.s4 1983009808
        %v1691 = vunpack.c.0.s8 %v1690
        %v1692 = vlaneseq
        %v1693 = vshrl.u32 %v1692, 7
        %v1694 = vsub.s32 %v1691, %v1693
        %v1695 = vrot.slane %v1681, %v1694
        %v1696 = vcombine.low %v1673, %v1688
        %v1697 = vcombine.high %v1673, %v1688
        %v1699 = vunpack.c.l.s4 1934713408
        %v1700 = vunpack.c.0.s8 %v1699
        %v1701 = vlaneseq
        %v1702 = vshrl.u32 %v1701, 7
        %v1703 = vsub.s32 %v1700, %v1702
        %v1704 = vrot.slane %v1696, %v1703
        %v1706 = vunpack.c.l.s4 1934713408
        %v1707 = vunpack.c.0.s8 %v1706
        %v1708 = vlaneseq
        %v1709 = vshrl.u32 %v1708, 7
        %v1710 = vsub.s32 %v1707, %v1709
        %v1711 = vrot.slane %v1697, %v1710
        %v1712 = vcombine.low %v1680, %v1695
        %v1713 = vcombine.high %v1680, %v1695
        %v1715 = vunpack.c.l.s4 1934713408
        %v1716 = vunpack.c.0.s8 %v1715
        %v1717 = vlaneseq
        %v1718 = vshrl.u32 %v1717, 7
        %v1719 = vsub.s32 %v1716, %v1718
        %v1720 = vrot.slane %v1712, %v1719
        %v1722 = vunpack.c.l.s4 1934713408
        %v1723 = vunpack.c.0.s8 %v1722
        %v1724 = vlaneseq
        %v1725 = vshrl.u32 %v1724, 7
        %v1726 = vsub.s32 %v1723, %v1725
        %v1727 = vrot.slane %v1713, %v1726
        %v1728 = vcombine.high %v1704, 0.0
        %v1729 = vcombine.high %v1711, 0.0
        %v1730 = vcombine.high %v1720, 0.0
        %v1731 = vcombine.high %v1727, 0.0
        %v1732 = vcombine.high %v1657, 0.0
        %v1734 = vunpack.c.l.s4 1983009808
        %v1735 = vunpack.c.0.s8 %v1734
        %v1736 = vlaneseq
        %v1737 = vshrl.u32 %v1736, 7
        %v1738 = vsub.s32 %v1735, %v1737
        %v1739 = vrot.slane %v1657, %v1738
        %v1741 = vunpack.c.l.s4 1983009808
        %v1742 = vunpack.c.0.s8 %v1741
        %v1743 = vlaneseq
        %v1744 = vshrl.u32 %v1743, 7
        %v1745 = vsub.s32 %v1742, %v1744
        %v1746 = vrot.slane %v1732, %v1745
        %v1747 = vcombine.high %v1661, 0.0
        %v1749 = vunpack.c.l.s4 1983009808
        %v1750 = vunpack.c.0.s8 %v1749
        %v1751 = vlaneseq
        %v1752 = vshrl.u32 %v1751, 7
        %v1753 = vsub.s32 %v1750, %v1752
        %v1754 = vrot.slane %v1661, %v1753
        %v1756 = vunpack.c.l.s4 1983009808
        %v1757 = vunpack.c.0.s8 %v1756
        %v1758 = vlaneseq
        %v1759 = vshrl.u32 %v1758, 7
        %v1760 = vsub.s32 %v1757, %v1759
        %v1761 = vrot.slane %v1747, %v1760
        %v1762 = vcombine.low %v1739, %v1754
        %v1763 = vcombine.high %v1739, %v1754
        %v1765 = vunpack.c.l.s4 1934713408
        %v1766 = vunpack.c.0.s8 %v1765
        %v1767 = vlaneseq
        %v1768 = vshrl.u32 %v1767, 7
        %v1769 = vsub.s32 %v1766, %v1768
        %v1770 = vrot.slane %v1762, %v1769
        %v1772 = vunpack.c.l.s4 1934713408
        %v1773 = vunpack.c.0.s8 %v1772
        %v1774 = vlaneseq
        %v1775 = vshrl.u32 %v1774, 7
        %v1776 = vsub.s32 %v1773, %v1775
        %v1777 = vrot.slane %v1763, %v1776
        %v1778 = vcombine.low %v1746, %v1761
        %v1779 = vcombine.high %v1746, %v1761
        %v1781 = vunpack.c.l.s4 1934713408
        %v1782 = vunpack.c.0.s8 %v1781
        %v1783 = vlaneseq
        %v1784 = vshrl.u32 %v1783, 7
        %v1785 = vsub.s32 %v1782, %v1784
        %v1786 = vrot.slane %v1778, %v1785
        %v1788 = vunpack.c.l.s4 1934713408
        %v1789 = vunpack.c.0.s8 %v1788
        %v1790 = vlaneseq
        %v1791 = vshrl.u32 %v1790, 7
        %v1792 = vsub.s32 %v1789, %v1791
        %v1793 = vrot.slane %v1779, %v1792
        %v1794 = vcombine.high %v1770, 0.0
        %v1795 = vcombine.high %v1777, 0.0
        %v1796 = vcombine.high %v1786, 0.0
        %v1797 = vcombine.high %v1793, 0.0
        %1799 = vrot.lane.b32.xlu0 %v1728, 16
        %v1800 = vpop.permute.xlu0 %1799
        %1803 = vrot.lane.b32.xlu0 %v1711, 32
        %v1804 = vpop.permute.xlu0 %1803
        %1807 = vrot.lane.b32.xlu0 %v1729, 48
        %v1808 = vpop.permute.xlu0 %1807
        %1811 = vrot.lane.b32.xlu0 %v1720, 64
        %v1812 = vpop.permute.xlu0 %1811
        %1815 = vrot.lane.b32.xlu0 %v1730, 80
        %v1816 = vpop.permute.xlu0 %1815
        %1819 = vrot.lane.b32.xlu0 %v1727, 96
        %v1820 = vpop.permute.xlu0 %1819
        %1823 = vrot.lane.b32.xlu0 %v1731, 112
        %v1824 = vpop.permute.xlu0 %1823
        %1827 = vrot.lane.b32.xlu0 %v1794, 16
        %v1828 = vpop.permute.xlu0 %1827
        %1831 = vrot.lane.b32.xlu0 %v1777, 32
        %v1832 = vpop.permute.xlu0 %1831
        %1835 = vrot.lane.b32.xlu0 %v1795, 48
        %v1836 = vpop.permute.xlu0 %1835
        %1839 = vrot.lane.b32.xlu0 %v1786, 64
        %v1840 = vpop.permute.xlu0 %1839
        %1843 = vrot.lane.b32.xlu0 %v1796, 80
        %v1844 = vpop.permute.xlu0 %1843
        %1847 = vrot.lane.b32.xlu0 %v1793, 96
        %v1848 = vpop.permute.xlu0 %1847
        %1851 = vrot.lane.b32.xlu0 %v1797, 112
        %v1852 = vpop.permute.xlu0 %1851
        %v1854 = vsel %vm521, %v1704, %v1800
        %v1855 = vsel %vm523, %v1854, %v1804
        %v1856 = vsel %vm525, %v1855, %v1808
        %v1857 = vsel %vm527, %v1856, %v1812
        %v1858 = vsel %vm529, %v1857, %v1816
        %v1859 = vsel %vm531, %v1858, %v1820
        %v1860 = vsel %vm533, %v1859, %v1824
        %v1861 = vsel %vm521, %v1770, %v1828
        %v1862 = vsel %vm523, %v1861, %v1832
        %v1863 = vsel %vm525, %v1862, %v1836
        %v1864 = vsel %vm527, %v1863, %v1840
        %v1865 = vsel %vm529, %v1864, %v1844
        %v1866 = vsel %vm531, %v1865, %v1848
        %v1867 = vsel %vm533, %v1866, %v1852
        %vm1868 = vcmask 1045504
        %v1869 = vrot.slane %v585, 2
        %v1870 = vrot.slane %v575, 2
        %v1871 = vsel %vm1868, %v1869, %v1870
        %v1872 = vrot.slane %v587, 2
        %v1873 = vsel %vm1868, %v1870, %v1872
        %v1874 = vrot.slane %v586, 2
        %v1875 = vrot.slane %v578, 2
        %v1876 = vsel %vm1868, %v1874, %v1875
        %v1877 = vrot.slane %v588, 2
        %v1878 = vsel %vm1868, %v1875, %v1877
        %v1883 = vcombine.high %v1871, 0.0
        %v1885 = vunpack.c.l.s4 1983009808
        %v1886 = vunpack.c.0.s8 %v1885
        %v1887 = vlaneseq
        %v1888 = vshrl.u32 %v1887, 7
        %v1889 = vsub.s32 %v1886, %v1888
        %v1890 = vrot.slane %v1871, %v1889
        %v1892 = vunpack.c.l.s4 1983009808
        %v1893 = vunpack.c.0.s8 %v1892
        %v1894 = vlaneseq
        %v1895 = vshrl.u32 %v1894, 7
        %v1896 = vsub.s32 %v1893, %v1895
        %v1897 = vrot.slane %v1883, %v1896
        %v1898 = vcombine.high %v1876, 0.0
        %v1900 = vunpack.c.l.s4 1983009808
        %v1901 = vunpack.c.0.s8 %v1900
        %v1902 = vlaneseq
        %v1903 = vshrl.u32 %v1902, 7
        %v1904 = vsub.s32 %v1901, %v1903
        %v1905 = vrot.slane %v1876, %v1904
        %v1907 = vunpack.c.l.s4 1983009808
        %v1908 = vunpack.c.0.s8 %v1907
        %v1909 = vlaneseq
        %v1910 = vshrl.u32 %v1909, 7
        %v1911 = vsub.s32 %v1908, %v1910
        %v1912 = vrot.slane %v1898, %v1911
        %v1913 = vcombine.low %v1890, %v1905
        %v1914 = vcombine.high %v1890, %v1905
        %v1916 = vunpack.c.l.s4 1934713408
        %v1917 = vunpack.c.0.s8 %v1916
        %v1918 = vlaneseq
        %v1919 = vshrl.u32 %v1918, 7
        %v1920 = vsub.s32 %v1917, %v1919
        %v1921 = vrot.slane %v1913, %v1920
        %v1923 = vunpack.c.l.s4 1934713408
        %v1924 = vunpack.c.0.s8 %v1923
        %v1925 = vlaneseq
        %v1926 = vshrl.u32 %v1925, 7
        %v1927 = vsub.s32 %v1924, %v1926
        %v1928 = vrot.slane %v1914, %v1927
        %v1929 = vcombine.low %v1897, %v1912
        %v1930 = vcombine.high %v1897, %v1912
        %v1932 = vunpack.c.l.s4 1934713408
        %v1933 = vunpack.c.0.s8 %v1932
        %v1934 = vlaneseq
        %v1935 = vshrl.u32 %v1934, 7
        %v1936 = vsub.s32 %v1933, %v1935
        %v1937 = vrot.slane %v1929, %v1936
        %v1939 = vunpack.c.l.s4 1934713408
        %v1940 = vunpack.c.0.s8 %v1939
        %v1941 = vlaneseq
        %v1942 = vshrl.u32 %v1941, 7
        %v1943 = vsub.s32 %v1940, %v1942
        %v1944 = vrot.slane %v1930, %v1943
        %v1945 = vcombine.high %v1921, 0.0
        %v1946 = vcombine.high %v1928, 0.0
        %v1947 = vcombine.high %v1937, 0.0
        %v1948 = vcombine.high %v1944, 0.0
        %v1949 = vcombine.high %v1873, 0.0
        %v1951 = vunpack.c.l.s4 1983009808
        %v1952 = vunpack.c.0.s8 %v1951
        %v1953 = vlaneseq
        %v1954 = vshrl.u32 %v1953, 7
        %v1955 = vsub.s32 %v1952, %v1954
        %v1956 = vrot.slane %v1873, %v1955
        %v1958 = vunpack.c.l.s4 1983009808
        %v1959 = vunpack.c.0.s8 %v1958
        %v1960 = vlaneseq
        %v1961 = vshrl.u32 %v1960, 7
        %v1962 = vsub.s32 %v1959, %v1961
        %v1963 = vrot.slane %v1949, %v1962
        %v1964 = vcombine.high %v1878, 0.0
        %v1966 = vunpack.c.l.s4 1983009808
        %v1967 = vunpack.c.0.s8 %v1966
        %v1968 = vlaneseq
        %v1969 = vshrl.u32 %v1968, 7
        %v1970 = vsub.s32 %v1967, %v1969
        %v1971 = vrot.slane %v1878, %v1970
        %v1973 = vunpack.c.l.s4 1983009808
        %v1974 = vunpack.c.0.s8 %v1973
        %v1975 = vlaneseq
        %v1976 = vshrl.u32 %v1975, 7
        %v1977 = vsub.s32 %v1974, %v1976
        %v1978 = vrot.slane %v1964, %v1977
        %v1979 = vcombine.low %v1956, %v1971
        %v1980 = vcombine.high %v1956, %v1971
        %v1982 = vunpack.c.l.s4 1934713408
        %v1983 = vunpack.c.0.s8 %v1982
        %v1984 = vlaneseq
        %v1985 = vshrl.u32 %v1984, 7
        %v1986 = vsub.s32 %v1983, %v1985
        %v1987 = vrot.slane %v1979, %v1986
        %v1989 = vunpack.c.l.s4 1934713408
        %v1990 = vunpack.c.0.s8 %v1989
        %v1991 = vlaneseq
        %v1992 = vshrl.u32 %v1991, 7
        %v1993 = vsub.s32 %v1990, %v1992
        %v1994 = vrot.slane %v1980, %v1993
        %v1995 = vcombine.low %v1963, %v1978
        %v1996 = vcombine.high %v1963, %v1978
        %v1998 = vunpack.c.l.s4 1934713408
        %v1999 = vunpack.c.0.s8 %v1998
        %v2000 = vlaneseq
        %v2001 = vshrl.u32 %v2000, 7
        %v2002 = vsub.s32 %v1999, %v2001
        %v2003 = vrot.slane %v1995, %v2002
        %v2005 = vunpack.c.l.s4 1934713408
        %v2006 = vunpack.c.0.s8 %v2005
        %v2007 = vlaneseq
        %v2008 = vshrl.u32 %v2007, 7
        %v2009 = vsub.s32 %v2006, %v2008
        %v2010 = vrot.slane %v1996, %v2009
        %v2011 = vcombine.high %v1987, 0.0
        %v2012 = vcombine.high %v1994, 0.0
        %v2013 = vcombine.high %v2003, 0.0
        %v2014 = vcombine.high %v2010, 0.0
        %2016 = vrot.lane.b32.xlu0 %v1945, 16
        %v2017 = vpop.permute.xlu0 %2016
        %2020 = vrot.lane.b32.xlu0 %v1928, 32
        %v2021 = vpop.permute.xlu0 %2020
        %2024 = vrot.lane.b32.xlu0 %v1946, 48
        %v2025 = vpop.permute.xlu0 %2024
        %2028 = vrot.lane.b32.xlu0 %v1937, 64
        %v2029 = vpop.permute.xlu0 %2028
        %2032 = vrot.lane.b32.xlu0 %v1947, 80
        %v2033 = vpop.permute.xlu0 %2032
        %2036 = vrot.lane.b32.xlu0 %v1944, 96
        %v2037 = vpop.permute.xlu0 %2036
        %2040 = vrot.lane.b32.xlu0 %v1948, 112
        %v2041 = vpop.permute.xlu0 %2040
        %2044 = vrot.lane.b32.xlu0 %v2011, 16
        %v2045 = vpop.permute.xlu0 %2044
        %2048 = vrot.lane.b32.xlu0 %v1994, 32
        %v2049 = vpop.permute.xlu0 %2048
        %2052 = vrot.lane.b32.xlu0 %v2012, 48
        %v2053 = vpop.permute.xlu0 %2052
        %2056 = vrot.lane.b32.xlu0 %v2003, 64
        %v2057 = vpop.permute.xlu0 %2056
        %2060 = vrot.lane.b32.xlu0 %v2013, 80
        %v2061 = vpop.permute.xlu0 %2060
        %2064 = vrot.lane.b32.xlu0 %v2010, 96
        %v2065 = vpop.permute.xlu0 %2064
        %2068 = vrot.lane.b32.xlu0 %v2014, 112
        %v2069 = vpop.permute.xlu0 %2068
        %v2071 = vsel %vm521, %v1921, %v2017
        %v2072 = vsel %vm523, %v2071, %v2021
        %v2073 = vsel %vm525, %v2072, %v2025
        %v2074 = vsel %vm527, %v2073, %v2029
        %v2075 = vsel %vm529, %v2074, %v2033
        %v2076 = vsel %vm531, %v2075, %v2037
        %v2077 = vsel %vm533, %v2076, %v2041
        %v2078 = vsel %vm521, %v1987, %v2045
        %v2079 = vsel %vm523, %v2078, %v2049
        %v2080 = vsel %vm525, %v2079, %v2053
        %v2081 = vsel %vm527, %v2080, %v2057
        %v2082 = vsel %vm529, %v2081, %v2061
        %v2083 = vsel %vm531, %v2082, %v2065
        %v2084 = vsel %vm533, %v2083, %v2069
        %2085 = vrot.lane.b32.xlu0 %v1871, 127
        %v2086 = vpop.permute.xlu0 %2085
        %2087 = vrot.lane.b32.xlu0 %v1873, 127
        %v2088 = vpop.permute.xlu0 %2087
        %2089 = vrot.lane.b32.xlu0 %v1876, 127
        %v2090 = vpop.permute.xlu0 %2089
        %2091 = vrot.lane.b32.xlu0 %v1878, 127
        %v2092 = vpop.permute.xlu0 %2091
        %v2097 = vcombine.high %v2086, 0.0
        %v2099 = vunpack.c.l.s4 1983009808
        %v2100 = vunpack.c.0.s8 %v2099
        %v2101 = vlaneseq
        %v2102 = vshrl.u32 %v2101, 7
        %v2103 = vsub.s32 %v2100, %v2102
        %v2104 = vrot.slane %v2086, %v2103
        %v2106 = vunpack.c.l.s4 1983009808
        %v2107 = vunpack.c.0.s8 %v2106
        %v2108 = vlaneseq
        %v2109 = vshrl.u32 %v2108, 7
        %v2110 = vsub.s32 %v2107, %v2109
        %v2111 = vrot.slane %v2097, %v2110
        %v2112 = vcombine.high %v2090, 0.0
        %v2114 = vunpack.c.l.s4 1983009808
        %v2115 = vunpack.c.0.s8 %v2114
        %v2116 = vlaneseq
        %v2117 = vshrl.u32 %v2116, 7
        %v2118 = vsub.s32 %v2115, %v2117
        %v2119 = vrot.slane %v2090, %v2118
        %v2121 = vunpack.c.l.s4 1983009808
        %v2122 = vunpack.c.0.s8 %v2121
        %v2123 = vlaneseq
        %v2124 = vshrl.u32 %v2123, 7
        %v2125 = vsub.s32 %v2122, %v2124
        %v2126 = vrot.slane %v2112, %v2125
        %v2127 = vcombine.low %v2104, %v2119
        %v2128 = vcombine.high %v2104, %v2119
        %v2130 = vunpack.c.l.s4 1934713408
        %v2131 = vunpack.c.0.s8 %v2130
        %v2132 = vlaneseq
        %v2133 = vshrl.u32 %v2132, 7
        %v2134 = vsub.s32 %v2131, %v2133
        %v2135 = vrot.slane %v2127, %v2134
        %v2137 = vunpack.c.l.s4 1934713408
        %v2138 = vunpack.c.0.s8 %v2137
        %v2139 = vlaneseq
        %v2140 = vshrl.u32 %v2139, 7
        %v2141 = vsub.s32 %v2138, %v2140
        %v2142 = vrot.slane %v2128, %v2141
        %v2143 = vcombine.low %v2111, %v2126
        %v2144 = vcombine.high %v2111, %v2126
        %v2146 = vunpack.c.l.s4 1934713408
        %v2147 = vunpack.c.0.s8 %v2146
        %v2148 = vlaneseq
        %v2149 = vshrl.u32 %v2148, 7
        %v2150 = vsub.s32 %v2147, %v2149
        %v2151 = vrot.slane %v2143, %v2150
        %v2153 = vunpack.c.l.s4 1934713408
        %v2154 = vunpack.c.0.s8 %v2153
        %v2155 = vlaneseq
        %v2156 = vshrl.u32 %v2155, 7
        %v2157 = vsub.s32 %v2154, %v2156
        %v2158 = vrot.slane %v2144, %v2157
        %v2159 = vcombine.high %v2135, 0.0
        %v2160 = vcombine.high %v2142, 0.0
        %v2161 = vcombine.high %v2151, 0.0
        %v2162 = vcombine.high %v2158, 0.0
        %v2163 = vcombine.high %v2088, 0.0
        %v2165 = vunpack.c.l.s4 1983009808
        %v2166 = vunpack.c.0.s8 %v2165
        %v2167 = vlaneseq
        %v2168 = vshrl.u32 %v2167, 7
        %v2169 = vsub.s32 %v2166, %v2168
        %v2170 = vrot.slane %v2088, %v2169
        %v2172 = vunpack.c.l.s4 1983009808
        %v2173 = vunpack.c.0.s8 %v2172
        %v2174 = vlaneseq
        %v2175 = vshrl.u32 %v2174, 7
        %v2176 = vsub.s32 %v2173, %v2175
        %v2177 = vrot.slane %v2163, %v2176
        %v2178 = vcombine.high %v2092, 0.0
        %v2180 = vunpack.c.l.s4 1983009808
        %v2181 = vunpack.c.0.s8 %v2180
        %v2182 = vlaneseq
        %v2183 = vshrl.u32 %v2182, 7
        %v2184 = vsub.s32 %v2181, %v2183
        %v2185 = vrot.slane %v2092, %v2184
        %v2187 = vunpack.c.l.s4 1983009808
        %v2188 = vunpack.c.0.s8 %v2187
        %v2189 = vlaneseq
        %v2190 = vshrl.u32 %v2189, 7
        %v2191 = vsub.s32 %v2188, %v2190
        %v2192 = vrot.slane %v2178, %v2191
        %v2193 = vcombine.low %v2170, %v2185
        %v2194 = vcombine.high %v2170, %v2185
        %v2196 = vunpack.c.l.s4 1934713408
        %v2197 = vunpack.c.0.s8 %v2196
        %v2198 = vlaneseq
        %v2199 = vshrl.u32 %v2198, 7
        %v2200 = vsub.s32 %v2197, %v2199
        %v2201 = vrot.slane %v2193, %v2200
        %v2203 = vunpack.c.l.s4 1934713408
        %v2204 = vunpack.c.0.s8 %v2203
        %v2205 = vlaneseq
        %v2206 = vshrl.u32 %v2205, 7
        %v2207 = vsub.s32 %v2204, %v2206
        %v2208 = vrot.slane %v2194, %v2207
        %v2209 = vcombine.low %v2177, %v2192
        %v2210 = vcombine.high %v2177, %v2192
        %v2212 = vunpack.c.l.s4 1934713408
        %v2213 = vunpack.c.0.s8 %v2212
        %v2214 = vlaneseq
        %v2215 = vshrl.u32 %v2214, 7
        %v2216 = vsub.s32 %v2213, %v2215
        %v2217 = vrot.slane %v2209, %v2216
        %v2219 = vunpack.c.l.s4 1934713408
        %v2220 = vunpack.c.0.s8 %v2219
        %v2221 = vlaneseq
        %v2222 = vshrl.u32 %v2221, 7
        %v2223 = vsub.s32 %v2220, %v2222
        %v2224 = vrot.slane %v2210, %v2223
        %v2225 = vcombine.high %v2201, 0.0
        %v2226 = vcombine.high %v2208, 0.0
        %v2227 = vcombine.high %v2217, 0.0
        %v2228 = vcombine.high %v2224, 0.0
        %2230 = vrot.lane.b32.xlu0 %v2159, 16
        %v2231 = vpop.permute.xlu0 %2230
        %2234 = vrot.lane.b32.xlu0 %v2142, 32
        %v2235 = vpop.permute.xlu0 %2234
        %2238 = vrot.lane.b32.xlu0 %v2160, 48
        %v2239 = vpop.permute.xlu0 %2238
        %2242 = vrot.lane.b32.xlu0 %v2151, 64
        %v2243 = vpop.permute.xlu0 %2242
        %2246 = vrot.lane.b32.xlu0 %v2161, 80
        %v2247 = vpop.permute.xlu0 %2246
        %2250 = vrot.lane.b32.xlu0 %v2158, 96
        %v2251 = vpop.permute.xlu0 %2250
        %2254 = vrot.lane.b32.xlu0 %v2162, 112
        %v2255 = vpop.permute.xlu0 %2254
        %2258 = vrot.lane.b32.xlu0 %v2225, 16
        %v2259 = vpop.permute.xlu0 %2258
        %2262 = vrot.lane.b32.xlu0 %v2208, 32
        %v2263 = vpop.permute.xlu0 %2262
        %2266 = vrot.lane.b32.xlu0 %v2226, 48
        %v2267 = vpop.permute.xlu0 %2266
        %2270 = vrot.lane.b32.xlu0 %v2217, 64
        %v2271 = vpop.permute.xlu0 %2270
        %2274 = vrot.lane.b32.xlu0 %v2227, 80
        %v2275 = vpop.permute.xlu0 %2274
        %2278 = vrot.lane.b32.xlu0 %v2224, 96
        %v2279 = vpop.permute.xlu0 %2278
        %2282 = vrot.lane.b32.xlu0 %v2228, 112
        %v2283 = vpop.permute.xlu0 %2282
        %v2285 = vsel %vm521, %v2135, %v2231
        %v2286 = vsel %vm523, %v2285, %v2235
        %v2287 = vsel %vm525, %v2286, %v2239
        %v2288 = vsel %vm527, %v2287, %v2243
        %v2289 = vsel %vm529, %v2288, %v2247
        %v2290 = vsel %vm531, %v2289, %v2251
        %v2291 = vsel %vm533, %v2290, %v2255
        %v2292 = vsel %vm521, %v2201, %v2259
        %v2293 = vsel %vm523, %v2292, %v2263
        %v2294 = vsel %vm525, %v2293, %v2267
        %v2295 = vsel %vm527, %v2294, %v2271
        %v2296 = vsel %vm529, %v2295, %v2275
        %v2297 = vsel %vm531, %v2296, %v2279
        %v2298 = vsel %vm533, %v2297, %v2283
        %2299 = vrot.lane.b32.xlu0 %v1871, 126
        %v2300 = vpop.permute.xlu0 %2299
        %2301 = vrot.lane.b32.xlu0 %v1873, 126
        %v2302 = vpop.permute.xlu0 %2301
        %2303 = vrot.lane.b32.xlu0 %v1876, 126
        %v2304 = vpop.permute.xlu0 %2303
        %2305 = vrot.lane.b32.xlu0 %v1878, 126
        %v2306 = vpop.permute.xlu0 %2305
        %v2311 = vcombine.high %v2300, 0.0
        %v2313 = vunpack.c.l.s4 1983009808
        %v2314 = vunpack.c.0.s8 %v2313
        %v2315 = vlaneseq
        %v2316 = vshrl.u32 %v2315, 7
        %v2317 = vsub.s32 %v2314, %v2316
        %v2318 = vrot.slane %v2300, %v2317
        %v2320 = vunpack.c.l.s4 1983009808
        %v2321 = vunpack.c.0.s8 %v2320
        %v2322 = vlaneseq
        %v2323 = vshrl.u32 %v2322, 7
        %v2324 = vsub.s32 %v2321, %v2323
        %v2325 = vrot.slane %v2311, %v2324
        %v2326 = vcombine.high %v2304, 0.0
        %v2328 = vunpack.c.l.s4 1983009808
        %v2329 = vunpack.c.0.s8 %v2328
        %v2330 = vlaneseq
        %v2331 = vshrl.u32 %v2330, 7
        %v2332 = vsub.s32 %v2329, %v2331
        %v2333 = vrot.slane %v2304, %v2332
        %v2335 = vunpack.c.l.s4 1983009808
        %v2336 = vunpack.c.0.s8 %v2335
        %v2337 = vlaneseq
        %v2338 = vshrl.u32 %v2337, 7
        %v2339 = vsub.s32 %v2336, %v2338
        %v2340 = vrot.slane %v2326, %v2339
        %v2341 = vcombine.low %v2318, %v2333
        %v2342 = vcombine.high %v2318, %v2333
        %v2344 = vunpack.c.l.s4 1934713408
        %v2345 = vunpack.c.0.s8 %v2344
        %v2346 = vlaneseq
        %v2347 = vshrl.u32 %v2346, 7
        %v2348 = vsub.s32 %v2345, %v2347
        %v2349 = vrot.slane %v2341, %v2348
        %v2351 = vunpack.c.l.s4 1934713408
        %v2352 = vunpack.c.0.s8 %v2351
        %v2353 = vlaneseq
        %v2354 = vshrl.u32 %v2353, 7
        %v2355 = vsub.s32 %v2352, %v2354
        %v2356 = vrot.slane %v2342, %v2355
        %v2357 = vcombine.low %v2325, %v2340
        %v2358 = vcombine.high %v2325, %v2340
        %v2360 = vunpack.c.l.s4 1934713408
        %v2361 = vunpack.c.0.s8 %v2360
        %v2362 = vlaneseq
        %v2363 = vshrl.u32 %v2362, 7
        %v2364 = vsub.s32 %v2361, %v2363
        %v2365 = vrot.slane %v2357, %v2364
        %v2367 = vunpack.c.l.s4 1934713408
        %v2368 = vunpack.c.0.s8 %v2367
        %v2369 = vlaneseq
        %v2370 = vshrl.u32 %v2369, 7
        %v2371 = vsub.s32 %v2368, %v2370
        %v2372 = vrot.slane %v2358, %v2371
        %v2373 = vcombine.high %v2349, 0.0
        %v2374 = vcombine.high %v2356, 0.0
        %v2375 = vcombine.high %v2365, 0.0
        %v2376 = vcombine.high %v2372, 0.0
        %v2377 = vcombine.high %v2302, 0.0
        %v2379 = vunpack.c.l.s4 1983009808
        %v2380 = vunpack.c.0.s8 %v2379
        %v2381 = vlaneseq
        %v2382 = vshrl.u32 %v2381, 7
        %v2383 = vsub.s32 %v2380, %v2382
        %v2384 = vrot.slane %v2302, %v2383
        %v2386 = vunpack.c.l.s4 1983009808
        %v2387 = vunpack.c.0.s8 %v2386
        %v2388 = vlaneseq
        %v2389 = vshrl.u32 %v2388, 7
        %v2390 = vsub.s32 %v2387, %v2389
        %v2391 = vrot.slane %v2377, %v2390
        %v2392 = vcombine.high %v2306, 0.0
        %v2394 = vunpack.c.l.s4 1983009808
        %v2395 = vunpack.c.0.s8 %v2394
        %v2396 = vlaneseq
        %v2397 = vshrl.u32 %v2396, 7
        %v2398 = vsub.s32 %v2395, %v2397
        %v2399 = vrot.slane %v2306, %v2398
        %v2401 = vunpack.c.l.s4 1983009808
        %v2402 = vunpack.c.0.s8 %v2401
        %v2403 = vlaneseq
        %v2404 = vshrl.u32 %v2403, 7
        %v2405 = vsub.s32 %v2402, %v2404
        %v2406 = vrot.slane %v2392, %v2405
        %v2407 = vcombine.low %v2384, %v2399
        %v2408 = vcombine.high %v2384, %v2399
        %v2410 = vunpack.c.l.s4 1934713408
        %v2411 = vunpack.c.0.s8 %v2410
        %v2412 = vlaneseq
        %v2413 = vshrl.u32 %v2412, 7
        %v2414 = vsub.s32 %v2411, %v2413
        %v2415 = vrot.slane %v2407, %v2414
        %v2417 = vunpack.c.l.s4 1934713408
        %v2418 = vunpack.c.0.s8 %v2417
        %v2419 = vlaneseq
        %v2420 = vshrl.u32 %v2419, 7
        %v2421 = vsub.s32 %v2418, %v2420
        %v2422 = vrot.slane %v2408, %v2421
        %v2423 = vcombine.low %v2391, %v2406
        %v2424 = vcombine.high %v2391, %v2406
        %v2426 = vunpack.c.l.s4 1934713408
        %v2427 = vunpack.c.0.s8 %v2426
        %v2428 = vlaneseq
        %v2429 = vshrl.u32 %v2428, 7
        %v2430 = vsub.s32 %v2427, %v2429
        %v2431 = vrot.slane %v2423, %v2430
        %v2433 = vunpack.c.l.s4 1934713408
        %v2434 = vunpack.c.0.s8 %v2433
        %v2435 = vlaneseq
        %v2436 = vshrl.u32 %v2435, 7
        %v2437 = vsub.s32 %v2434, %v2436
        %v2438 = vrot.slane %v2424, %v2437
        %v2439 = vcombine.high %v2415, 0.0
        %v2440 = vcombine.high %v2422, 0.0
        %v2441 = vcombine.high %v2431, 0.0
        %v2442 = vcombine.high %v2438, 0.0
        %2444 = vrot.lane.b32.xlu0 %v2373, 16
        %v2445 = vpop.permute.xlu0 %2444
        %2448 = vrot.lane.b32.xlu0 %v2356, 32
        %v2449 = vpop.permute.xlu0 %2448
        %2452 = vrot.lane.b32.xlu0 %v2374, 48
        %v2453 = vpop.permute.xlu0 %2452
        %2456 = vrot.lane.b32.xlu0 %v2365, 64
        %v2457 = vpop.permute.xlu0 %2456
        %2460 = vrot.lane.b32.xlu0 %v2375, 80
        %v2461 = vpop.permute.xlu0 %2460
        %2464 = vrot.lane.b32.xlu0 %v2372, 96
        %v2465 = vpop.permute.xlu0 %2464
        %2468 = vrot.lane.b32.xlu0 %v2376, 112
        %v2469 = vpop.permute.xlu0 %2468
        %2472 = vrot.lane.b32.xlu0 %v2439, 16
        %v2473 = vpop.permute.xlu0 %2472
        %2476 = vrot.lane.b32.xlu0 %v2422, 32
        %v2477 = vpop.permute.xlu0 %2476
        %2480 = vrot.lane.b32.xlu0 %v2440, 48
        %v2481 = vpop.permute.xlu0 %2480
        %2484 = vrot.lane.b32.xlu0 %v2431, 64
        %v2485 = vpop.permute.xlu0 %2484
        %2488 = vrot.lane.b32.xlu0 %v2441, 80
        %v2489 = vpop.permute.xlu0 %2488
        %2492 = vrot.lane.b32.xlu0 %v2438, 96
        %v2493 = vpop.permute.xlu0 %2492
        %2496 = vrot.lane.b32.xlu0 %v2442, 112
        %v2497 = vpop.permute.xlu0 %2496
        %v2499 = vsel %vm521, %v2349, %v2445
        %v2500 = vsel %vm523, %v2499, %v2449
        %v2501 = vsel %vm525, %v2500, %v2453
        %v2502 = vsel %vm527, %v2501, %v2457
        %v2503 = vsel %vm529, %v2502, %v2461
        %v2504 = vsel %vm531, %v2503, %v2465
        %v2505 = vsel %vm533, %v2504, %v2469
        %v2506 = vsel %vm521, %v2415, %v2473
        %v2507 = vsel %vm523, %v2506, %v2477
        %v2508 = vsel %vm525, %v2507, %v2481
        %v2509 = vsel %vm527, %v2508, %v2485
        %v2510 = vsel %vm529, %v2509, %v2489
        %v2511 = vsel %vm531, %v2510, %v2493
        %v2512 = vsel %vm533, %v2511, %v2497
        %v2515 = vrot.slane %v999, 6
        %v2516 = vrot.slane %v1006, 6
        %v2521 = vrot.slane %v1213, 4
        %v2522 = vrot.slane %v1220, 4
        %v2527 = vrot.slane %v1432, 2
        %v2528 = vrot.slane %v1439, 2
        %v2533 = vrot.slane %v1860, 6
        %v2534 = vrot.slane %v1867, 6
        %v2539 = vrot.slane %v2077, 4
        %v2540 = vrot.slane %v2084, 4
        %v2545 = vrot.slane %v2291, 2
        %v2546 = vrot.slane %v2298, 2
        %vm2549 = vcmask 1041408
        %v2550 = vsel %vm2549, %v783, %v2515
        %v2551 = vsel %vm2549, %v790, %v2516
        %vm2552 = vcmask 1043456
        %v2553 = vsel %vm2552, %v2550, %v2521
        %v2554 = vsel %vm2552, %v2551, %v2522
        %v2555 = vsel %vm1868, %v2553, %v2527
        %v2556 = vsel %vm1868, %v2554, %v2528
        %v2557 = vsel %vm2549, %v1646, %v2533
        %v2558 = vsel %vm2549, %v1653, %v2534
        %v2559 = vsel %vm2552, %v2557, %v2539
        %v2560 = vsel %vm2552, %v2558, %v2540
        %v2561 = vsel %vm1868, %v2559, %v2545
        %v2562 = vsel %vm1868, %v2560, %v2546
        %v2563 = vld [vmem:[%s1] sm:$0x1]
        %v2564 = vpack.c.bf16 %v2561, %v2555
        %v2565 = vpack.c.bf16 %v2562, %v2556
        %v2566 = vpack.c.bf16 %v2505, %v2505
        %v2567 = vpack.c.bf16 %v2512, %v2512
        %vm2568 = vcmask 146432
        %v2570 = vsel %vm2568, %v2563, 0
        %v2573 = vsel %vm572, %v2566, 0
        %v2576 = vsel %vm572, %v2567, 0
        %2578 = vmatprep.subr.bf16.mxu0 0
        %2579 = vmatpush1.bf16.msra.mxu0 0
        %2580 = vmatprep.subr.bf16.mxu0 0
        %2581 = vmatpush1.bf16.msra.mxu0 0
        %2582 = vmatprep.subr.bf16.mxu0 0
        %2583 = vmatpush1.bf16.msra.mxu0 0
        %2584 = vmatprep.subr.bf16.mxu0 0
        %2585 = vmatpush1.bf16.msra.mxu0 0
        %2586 = vmatprep.subr.bf16.mxu0 0
        %2587 = vmatpush1.bf16.msra.mxu0 0
        %2588 = vmatprep.subr.bf16.mxu0 0
        %2589 = vmatpush1.bf16.msra.mxu0 0
        %2590 = vmatprep.subr.bf16.mxu0 %v2576
        %2591 = vmatpush1.bf16.msra.mxu0 %v2573
        %2592 = vmatprep.subr.bf16.mxu0 %v2565
        %2593 = vmatpush1.bf16.msra.mxu0 %v2564
        %2594 = vmatprep.subr.bf16.mxu0 0
        %2595 = vmatpush2.bf16.msra.mxu0 0
        %2596 = vmatprep.subr.bf16.mxu0 0
        %2597 = vmatpush2.bf16.msra.mxu0 0
        %2598 = vmatprep.subr.bf16.mxu0 0
        %2599 = vmatpush2.bf16.msra.mxu0 0
        %2600 = vmatprep.subr.bf16.mxu0 0
        %2601 = vmatpush2.bf16.msra.mxu0 0
        %2602 = vmatprep.subr.bf16.mxu0 0
        %2603 = vmatpush2.bf16.msra.mxu0 0
        %2604 = vmatprep.subr.bf16.mxu0 0
        %2605 = vmatpush2.bf16.msra.mxu0 0
        %2606 = vmatprep.subr.bf16.mxu0 0
        %2607 = vmatpush2.bf16.msra.mxu0 0
        %2608 = vmatprep.subr.bf16.mxu0 0
        %2609 = vmatpush2.bf16.msra.mxu0 0
        %2610 = vmatprep.mubr.bf16.mxu0 0
        %2611 = vmatmul.mubr.bf16.gmra.mxu0 %v2570
        %v2612 = vpop.f32.mrf.mxu0
        %v2613 = vadd.f32 0.0, %v2612
        %v2614 = vpop.f32.mrf.mxu0
        %v2615 = vadd.f32 0.0, %v2614
        %v2616 = vpop.f32.mrf.mxu0
        %v2617 = vpop.f32.mrf.mxu0
        %2618 = vdwg.mxu0
        %v2619 = vld [vmem:[%s2] sm:$0x3]
        %2621 = vset.pattern.permute.xlu0 0
        %2622 = vperm.xlu0 %2621, %v2619
        %v2623 = vpop.permute.xlu0 %2622
        %v2625 = vmul.f32 %v2613, %v2623
        %v2626 = vmul.f32 %v2615, %v2623
        %v2627 = vld [vmem:[%s3] sm:$0x3]
        %2629 = vset.pattern.permute.xlu0 0
        %2630 = vperm.xlu0 %2629, %v2627
        %v2631 = vpop.permute.xlu0 %2630
        %v2633 = vadd.f32 %v2625, %v2631
        %v2634 = vadd.f32 %v2626, %v2631
        %v2635 = vmax.f32 %v2633, 0.0
        %v2636 = vmax.f32 %v2634, 0.0
        %2638 = vrot.lane.b32.xlu0 %v2635, 112
        %v2639 = vpop.permute.xlu0 %2638
        %2641 = vrot.lane.b32.xlu0 %v2635, 96
        %v2642 = vpop.permute.xlu0 %2641
        %2644 = vrot.lane.b32.xlu0 %v2635, 80
        %v2645 = vpop.permute.xlu0 %2644
        %2647 = vrot.lane.b32.xlu0 %v2635, 64
        %v2648 = vpop.permute.xlu0 %2647
        %2650 = vrot.lane.b32.xlu0 %v2635, 48
        %v2651 = vpop.permute.xlu0 %2650
        %2653 = vrot.lane.b32.xlu0 %v2635, 32
        %v2654 = vpop.permute.xlu0 %2653
        %2656 = vrot.lane.b32.xlu0 %v2635, 16
        %v2657 = vpop.permute.xlu0 %2656
        %2660 = vrot.lane.b32.xlu0 %v2636, 112
        %v2661 = vpop.permute.xlu0 %2660
        %2663 = vrot.lane.b32.xlu0 %v2636, 96
        %v2664 = vpop.permute.xlu0 %2663
        %2666 = vrot.lane.b32.xlu0 %v2636, 80
        %v2667 = vpop.permute.xlu0 %2666
        %2669 = vrot.lane.b32.xlu0 %v2636, 64
        %v2670 = vpop.permute.xlu0 %2669
        %2672 = vrot.lane.b32.xlu0 %v2636, 48
        %v2673 = vpop.permute.xlu0 %2672
        %2675 = vrot.lane.b32.xlu0 %v2636, 32
        %v2676 = vpop.permute.xlu0 %2675
        %2678 = vrot.lane.b32.xlu0 %v2636, 16
        %v2679 = vpop.permute.xlu0 %2678
        %v2681 = vcombine.low %v2635, %v2642
        %v2683 = vunpack.c.l.s4 1983009808
        %v2684 = vunpack.c.0.s8 %v2683
        %v2685 = vlaneseq
        %v2686 = vshrl.u32 %v2685, 7
        %v2687 = vsub.s32 %v2684, %v2686
        %v2688 = vrot.slane %v2681, %v2687
        %v2689 = vcombine.low %v2639, %v2645
        %v2691 = vunpack.c.l.s4 1983009808
        %v2692 = vunpack.c.0.s8 %v2691
        %v2693 = vlaneseq
        %v2694 = vshrl.u32 %v2693, 7
        %v2695 = vsub.s32 %v2692, %v2694
        %v2696 = vrot.slane %v2689, %v2695
        %v2697 = vcombine.low %v2648, %v2654
        %v2699 = vunpack.c.l.s4 1983009808
        %v2700 = vunpack.c.0.s8 %v2699
        %v2701 = vlaneseq
        %v2702 = vshrl.u32 %v2701, 7
        %v2703 = vsub.s32 %v2700, %v2702
        %v2704 = vrot.slane %v2697, %v2703
        %v2705 = vcombine.low %v2651, %v2657
        %v2707 = vunpack.c.l.s4 1983009808
        %v2708 = vunpack.c.0.s8 %v2707
        %v2709 = vlaneseq
        %v2710 = vshrl.u32 %v2709, 7
        %v2711 = vsub.s32 %v2708, %v2710
        %v2712 = vrot.slane %v2705, %v2711
        %v2713 = vcombine.low %v2688, %v2696
        %v2715 = vunpack.c.l.s4 1934713408
        %v2716 = vunpack.c.0.s8 %v2715
        %v2717 = vlaneseq
        %v2718 = vshrl.u32 %v2717, 7
        %v2719 = vsub.s32 %v2716, %v2718
        %v2720 = vrot.slane %v2713, %v2719
        %v2721 = vcombine.low %v2704, %v2712
        %v2723 = vunpack.c.l.s4 1934713408
        %v2724 = vunpack.c.0.s8 %v2723
        %v2725 = vlaneseq
        %v2726 = vshrl.u32 %v2725, 7
        %v2727 = vsub.s32 %v2724, %v2726
        %v2728 = vrot.slane %v2721, %v2727
        %v2729 = vcombine.low %v2720, %v2728
        %v2730 = vcombine.high %v2720, %v2728
        %v2731 = vcombine.low %v2636, %v2664
        %v2733 = vunpack.c.l.s4 1983009808
        %v2734 = vunpack.c.0.s8 %v2733
        %v2735 = vlaneseq
        %v2736 = vshrl.u32 %v2735, 7
        %v2737 = vsub.s32 %v2734, %v2736
        %v2738 = vrot.slane %v2731, %v2737
        %v2739 = vcombine.low %v2661, %v2667
        %v2741 = vunpack.c.l.s4 1983009808
        %v2742 = vunpack.c.0.s8 %v2741
        %v2743 = vlaneseq
        %v2744 = vshrl.u32 %v2743, 7
        %v2745 = vsub.s32 %v2742, %v2744
        %v2746 = vrot.slane %v2739, %v2745
        %v2747 = vcombine.low %v2670, %v2676
        %v2749 = vunpack.c.l.s4 1983009808
        %v2750 = vunpack.c.0.s8 %v2749
        %v2751 = vlaneseq
        %v2752 = vshrl.u32 %v2751, 7
        %v2753 = vsub.s32 %v2750, %v2752
        %v2754 = vrot.slane %v2747, %v2753
        %v2755 = vcombine.low %v2673, %v2679
        %v2757 = vunpack.c.l.s4 1983009808
        %v2758 = vunpack.c.0.s8 %v2757
        %v2759 = vlaneseq
        %v2760 = vshrl.u32 %v2759, 7
        %v2761 = vsub.s32 %v2758, %v2760
        %v2762 = vrot.slane %v2755, %v2761
        %v2763 = vcombine.low %v2738, %v2746
        %v2765 = vunpack.c.l.s4 1934713408
        %v2766 = vunpack.c.0.s8 %v2765
        %v2767 = vlaneseq
        %v2768 = vshrl.u32 %v2767, 7
        %v2769 = vsub.s32 %v2766, %v2768
        %v2770 = vrot.slane %v2763, %v2769
        %v2771 = vcombine.low %v2754, %v2762
        %v2773 = vunpack.c.l.s4 1934713408
        %v2774 = vunpack.c.0.s8 %v2773
        %v2775 = vlaneseq
        %v2776 = vshrl.u32 %v2775, 7
        %v2777 = vsub.s32 %v2774, %v2776
        %v2778 = vrot.slane %v2771, %v2777
        %v2779 = vcombine.low %v2770, %v2778
        %v2780 = vcombine.high %v2770, %v2778
        %2785 = vrot.lane.b32.xlu0 %v2729, 1
        %v2786 = vpop.permute.xlu0 %2785
        %2787 = vrot.lane.b32.xlu0 %v2779, 1
        %v2788 = vpop.permute.xlu0 %2787
        %2789 = vrot.lane.b32.xlu0 %v2730, 1
        %v2790 = vpop.permute.xlu0 %2789
        %2791 = vrot.lane.b32.xlu0 %v2780, 1
        %v2792 = vpop.permute.xlu0 %2791
        %v2797 = vsel %vm558, 0.0, %v2786
        %v2798 = vsel %vm558, 0.0, %v2788
        %v2799 = vsel %vm558, 0.0, %v2790
        %v2800 = vsel %vm558, 0.0, %v2792
        %v2801 = vsel %vm563, %v2797, 0.0
        %v2802 = vsel %vm563, %v2798, 0.0
        %v2803 = vsel %vm563, %v2799, 0.0
        %v2804 = vsel %vm563, %v2800, 0.0
        %v2809 = vrot.slane %v2801, 7
        %v2810 = vrot.slane %v2802, 7
        %v2811 = vsel %vm572, %v2809, %v2810
        %v2812 = vrot.slane %v2803, 7
        %v2813 = vrot.slane %v2804, 7
        %v2814 = vsel %vm572, %v2812, %v2813
        %v2821 = vsel %vm572, 0.0, %v2809
        %v2822 = vsel %vm572, 0.0, %v2812
        %v2823 = vsel %vm572, %v2810, 0.0
        %v2824 = vsel %vm572, %v2813, 0.0
        %v2825 = vcombine.high %v2821, 0.0
        %v2827 = vunpack.c.l.s4 1983009808
        %v2828 = vunpack.c.0.s8 %v2827
        %v2829 = vlaneseq
        %v2830 = vshrl.u32 %v2829, 7
        %v2831 = vsub.s32 %v2828, %v2830
        %v2832 = vrot.slane %v2821, %v2831
        %v2834 = vunpack.c.l.s4 1983009808
        %v2835 = vunpack.c.0.s8 %v2834
        %v2836 = vlaneseq
        %v2837 = vshrl.u32 %v2836, 7
        %v2838 = vsub.s32 %v2835, %v2837
        %v2839 = vrot.slane %v2825, %v2838
        %v2840 = vcombine.high %v2822, 0.0
        %v2842 = vunpack.c.l.s4 1983009808
        %v2843 = vunpack.c.0.s8 %v2842
        %v2844 = vlaneseq
        %v2845 = vshrl.u32 %v2844, 7
        %v2846 = vsub.s32 %v2843, %v2845
        %v2847 = vrot.slane %v2822, %v2846
        %v2849 = vunpack.c.l.s4 1983009808
        %v2850 = vunpack.c.0.s8 %v2849
        %v2851 = vlaneseq
        %v2852 = vshrl.u32 %v2851, 7
        %v2853 = vsub.s32 %v2850, %v2852
        %v2854 = vrot.slane %v2840, %v2853
        %v2855 = vcombine.low %v2832, %v2847
        %v2856 = vcombine.high %v2832, %v2847
        %v2858 = vunpack.c.l.s4 1934713408
        %v2859 = vunpack.c.0.s8 %v2858
        %v2860 = vlaneseq
        %v2861 = vshrl.u32 %v2860, 7
        %v2862 = vsub.s32 %v2859, %v2861
        %v2863 = vrot.slane %v2855, %v2862
        %v2865 = vunpack.c.l.s4 1934713408
        %v2866 = vunpack.c.0.s8 %v2865
        %v2867 = vlaneseq
        %v2868 = vshrl.u32 %v2867, 7
        %v2869 = vsub.s32 %v2866, %v2868
        %v2870 = vrot.slane %v2856, %v2869
        %v2871 = vcombine.low %v2839, %v2854
        %v2872 = vcombine.high %v2839, %v2854
        %v2874 = vunpack.c.l.s4 1934713408
        %v2875 = vunpack.c.0.s8 %v2874
        %v2876 = vlaneseq
        %v2877 = vshrl.u32 %v2876, 7
        %v2878 = vsub.s32 %v2875, %v2877
        %v2879 = vrot.slane %v2871, %v2878
        %v2881 = vunpack.c.l.s4 1934713408
        %v2882 = vunpack.c.0.s8 %v2881
        %v2883 = vlaneseq
        %v2884 = vshrl.u32 %v2883, 7
        %v2885 = vsub.s32 %v2882, %v2884
        %v2886 = vrot.slane %v2872, %v2885
        %v2887 = vcombine.high %v2863, 0.0
        %v2888 = vcombine.high %v2870, 0.0
        %v2889 = vcombine.high %v2879, 0.0
        %v2890 = vcombine.high %v2886, 0.0
        %v2891 = vcombine.high %v2811, 0.0
        %v2893 = vunpack.c.l.s4 1983009808
        %v2894 = vunpack.c.0.s8 %v2893
        %v2895 = vlaneseq
        %v2896 = vshrl.u32 %v2895, 7
        %v2897 = vsub.s32 %v2894, %v2896
        %v2898 = vrot.slane %v2811, %v2897
        %v2900 = vunpack.c.l.s4 1983009808
        %v2901 = vunpack.c.0.s8 %v2900
        %v2902 = vlaneseq
        %v2903 = vshrl.u32 %v2902, 7
        %v2904 = vsub.s32 %v2901, %v2903
        %v2905 = vrot.slane %v2891, %v2904
        %v2906 = vcombine.high %v2814, 0.0
        %v2908 = vunpack.c.l.s4 1983009808
        %v2909 = vunpack.c.0.s8 %v2908
        %v2910 = vlaneseq
        %v2911 = vshrl.u32 %v2910, 7
        %v2912 = vsub.s32 %v2909, %v2911
        %v2913 = vrot.slane %v2814, %v2912
        %v2915 = vunpack.c.l.s4 1983009808
        %v2916 = vunpack.c.0.s8 %v2915
        %v2917 = vlaneseq
        %v2918 = vshrl.u32 %v2917, 7
        %v2919 = vsub.s32 %v2916, %v2918
        %v2920 = vrot.slane %v2906, %v2919
        %v2921 = vcombine.low %v2898, %v2913
        %v2922 = vcombine.high %v2898, %v2913
        %v2924 = vunpack.c.l.s4 1934713408
        %v2925 = vunpack.c.0.s8 %v2924
        %v2926 = vlaneseq
        %v2927 = vshrl.u32 %v2926, 7
        %v2928 = vsub.s32 %v2925, %v2927
        %v2929 = vrot.slane %v2921, %v2928
        %v2931 = vunpack.c.l.s4 1934713408
        %v2932 = vunpack.c.0.s8 %v2931
        %v2933 = vlaneseq
        %v2934 = vshrl.u32 %v2933, 7
        %v2935 = vsub.s32 %v2932, %v2934
        %v2936 = vrot.slane %v2922, %v2935
        %v2937 = vcombine.low %v2905, %v2920
        %v2938 = vcombine.high %v2905, %v2920
        %v2940 = vunpack.c.l.s4 1934713408
        %v2941 = vunpack.c.0.s8 %v2940
        %v2942 = vlaneseq
        %v2943 = vshrl.u32 %v2942, 7
        %v2944 = vsub.s32 %v2941, %v2943
        %v2945 = vrot.slane %v2937, %v2944
        %v2947 = vunpack.c.l.s4 1934713408
        %v2948 = vunpack.c.0.s8 %v2947
        %v2949 = vlaneseq
        %v2950 = vshrl.u32 %v2949, 7
        %v2951 = vsub.s32 %v2948, %v2950
        %v2952 = vrot.slane %v2938, %v2951
        %v2953 = vcombine.high %v2929, 0.0
        %v2954 = vcombine.high %v2936, 0.0
        %v2955 = vcombine.high %v2945, 0.0
        %v2956 = vcombine.high %v2952, 0.0
        %2958 = vrot.lane.b32.xlu0 %v2887, 16
        %v2959 = vpop.permute.xlu0 %2958
        %2962 = vrot.lane.b32.xlu0 %v2870, 32
        %v2963 = vpop.permute.xlu0 %2962
        %2966 = vrot.lane.b32.xlu0 %v2888, 48
        %v2967 = vpop.permute.xlu0 %2966
        %2970 = vrot.lane.b32.xlu0 %v2879, 64
        %v2971 = vpop.permute.xlu0 %2970
        %2974 = vrot.lane.b32.xlu0 %v2889, 80
        %v2975 = vpop.permute.xlu0 %2974
        %2978 = vrot.lane.b32.xlu0 %v2886, 96
        %v2979 = vpop.permute.xlu0 %2978
        %2982 = vrot.lane.b32.xlu0 %v2890, 112
        %v2983 = vpop.permute.xlu0 %2982
        %2986 = vrot.lane.b32.xlu0 %v2953, 16
        %v2987 = vpop.permute.xlu0 %2986
        %2990 = vrot.lane.b32.xlu0 %v2936, 32
        %v2991 = vpop.permute.xlu0 %2990
        %2994 = vrot.lane.b32.xlu0 %v2954, 48
        %v2995 = vpop.permute.xlu0 %2994
        %2998 = vrot.lane.b32.xlu0 %v2945, 64
        %v2999 = vpop.permute.xlu0 %2998
        %3002 = vrot.lane.b32.xlu0 %v2955, 80
        %v3003 = vpop.permute.xlu0 %3002
        %3006 = vrot.lane.b32.xlu0 %v2952, 96
        %v3007 = vpop.permute.xlu0 %3006
        %3010 = vrot.lane.b32.xlu0 %v2956, 112
        %v3011 = vpop.permute.xlu0 %3010
        %v3013 = vsel %vm521, %v2863, %v2959
        %v3014 = vsel %vm523, %v3013, %v2963
        %v3015 = vsel %vm525, %v3014, %v2967
        %v3016 = vsel %vm527, %v3015, %v2971
        %v3017 = vsel %vm529, %v3016, %v2975
        %v3018 = vsel %vm531, %v3017, %v2979
        %v3019 = vsel %vm533, %v3018, %v2983
        %v3020 = vsel %vm521, %v2929, %v2987
        %v3021 = vsel %vm523, %v3020, %v2991
        %v3022 = vsel %vm525, %v3021, %v2995
        %v3023 = vsel %vm527, %v3022, %v2999
        %v3024 = vsel %vm529, %v3023, %v3003
        %v3025 = vsel %vm531, %v3024, %v3007
        %v3026 = vsel %vm533, %v3025, %v3011
        %3029 = vrot.lane.b32.xlu0 %v2821, 127
        %v3030 = vpop.permute.xlu0 %3029
        %3031 = vrot.lane.b32.xlu0 %v2811, 127
        %v3032 = vpop.permute.xlu0 %3031
        %3033 = vrot.lane.b32.xlu0 %v2822, 127
        %v3034 = vpop.permute.xlu0 %3033
        %3035 = vrot.lane.b32.xlu0 %v2814, 127
        %v3036 = vpop.permute.xlu0 %3035
        %v3041 = vcombine.high %v3030, 0.0
        %v3043 = vunpack.c.l.s4 1983009808
        %v3044 = vunpack.c.0.s8 %v3043
        %v3045 = vlaneseq
        %v3046 = vshrl.u32 %v3045, 7
        %v3047 = vsub.s32 %v3044, %v3046
        %v3048 = vrot.slane %v3030, %v3047
        %v3050 = vunpack.c.l.s4 1983009808
        %v3051 = vunpack.c.0.s8 %v3050
        %v3052 = vlaneseq
        %v3053 = vshrl.u32 %v3052, 7
        %v3054 = vsub.s32 %v3051, %v3053
        %v3055 = vrot.slane %v3041, %v3054
        %v3056 = vcombine.high %v3034, 0.0
        %v3058 = vunpack.c.l.s4 1983009808
        %v3059 = vunpack.c.0.s8 %v3058
        %v3060 = vlaneseq
        %v3061 = vshrl.u32 %v3060, 7
        %v3062 = vsub.s32 %v3059, %v3061
        %v3063 = vrot.slane %v3034, %v3062
        %v3065 = vunpack.c.l.s4 1983009808
        %v3066 = vunpack.c.0.s8 %v3065
        %v3067 = vlaneseq
        %v3068 = vshrl.u32 %v3067, 7
        %v3069 = vsub.s32 %v3066, %v3068
        %v3070 = vrot.slane %v3056, %v3069
        %v3071 = vcombine.low %v3048, %v3063
        %v3072 = vcombine.high %v3048, %v3063
        %v3074 = vunpack.c.l.s4 1934713408
        %v3075 = vunpack.c.0.s8 %v3074
        %v3076 = vlaneseq
        %v3077 = vshrl.u32 %v3076, 7
        %v3078 = vsub.s32 %v3075, %v3077
        %v3079 = vrot.slane %v3071, %v3078
        %v3081 = vunpack.c.l.s4 1934713408
        %v3082 = vunpack.c.0.s8 %v3081
        %v3083 = vlaneseq
        %v3084 = vshrl.u32 %v3083, 7
        %v3085 = vsub.s32 %v3082, %v3084
        %v3086 = vrot.slane %v3072, %v3085
        %v3087 = vcombine.low %v3055, %v3070
        %v3088 = vcombine.high %v3055, %v3070
        %v3090 = vunpack.c.l.s4 1934713408
        %v3091 = vunpack.c.0.s8 %v3090
        %v3092 = vlaneseq
        %v3093 = vshrl.u32 %v3092, 7
        %v3094 = vsub.s32 %v3091, %v3093
        %v3095 = vrot.slane %v3087, %v3094
        %v3097 = vunpack.c.l.s4 1934713408
        %v3098 = vunpack.c.0.s8 %v3097
        %v3099 = vlaneseq
        %v3100 = vshrl.u32 %v3099, 7
        %v3101 = vsub.s32 %v3098, %v3100
        %v3102 = vrot.slane %v3088, %v3101
        %v3103 = vcombine.high %v3079, 0.0
        %v3104 = vcombine.high %v3086, 0.0
        %v3105 = vcombine.high %v3095, 0.0
        %v3106 = vcombine.high %v3102, 0.0
        %v3107 = vcombine.high %v3032, 0.0
        %v3109 = vunpack.c.l.s4 1983009808
        %v3110 = vunpack.c.0.s8 %v3109
        %v3111 = vlaneseq
        %v3112 = vshrl.u32 %v3111, 7
        %v3113 = vsub.s32 %v3110, %v3112
        %v3114 = vrot.slane %v3032, %v3113
        %v3116 = vunpack.c.l.s4 1983009808
        %v3117 = vunpack.c.0.s8 %v3116
        %v3118 = vlaneseq
        %v3119 = vshrl.u32 %v3118, 7
        %v3120 = vsub.s32 %v3117, %v3119
        %v3121 = vrot.slane %v3107, %v3120
        %v3122 = vcombine.high %v3036, 0.0
        %v3124 = vunpack.c.l.s4 1983009808
        %v3125 = vunpack.c.0.s8 %v3124
        %v3126 = vlaneseq
        %v3127 = vshrl.u32 %v3126, 7
        %v3128 = vsub.s32 %v3125, %v3127
        %v3129 = vrot.slane %v3036, %v3128
        %v3131 = vunpack.c.l.s4 1983009808
        %v3132 = vunpack.c.0.s8 %v3131
        %v3133 = vlaneseq
        %v3134 = vshrl.u32 %v3133, 7
        %v3135 = vsub.s32 %v3132, %v3134
        %v3136 = vrot.slane %v3122, %v3135
        %v3137 = vcombine.low %v3114, %v3129
        %v3138 = vcombine.high %v3114, %v3129
        %v3140 = vunpack.c.l.s4 1934713408
        %v3141 = vunpack.c.0.s8 %v3140
        %v3142 = vlaneseq
        %v3143 = vshrl.u32 %v3142, 7
        %v3144 = vsub.s32 %v3141, %v3143
        %v3145 = vrot.slane %v3137, %v3144
        %v3147 = vunpack.c.l.s4 1934713408
        %v3148 = vunpack.c.0.s8 %v3147
        %v3149 = vlaneseq
        %v3150 = vshrl.u32 %v3149, 7
        %v3151 = vsub.s32 %v3148, %v3150
        %v3152 = vrot.slane %v3138, %v3151
        %v3153 = vcombine.low %v3121, %v3136
        %v3154 = vcombine.high %v3121, %v3136
        %v3156 = vunpack.c.l.s4 1934713408
        %v3157 = vunpack.c.0.s8 %v3156
        %v3158 = vlaneseq
        %v3159 = vshrl.u32 %v3158, 7
        %v3160 = vsub.s32 %v3157, %v3159
        %v3161 = vrot.slane %v3153, %v3160
        %v3163 = vunpack.c.l.s4 1934713408
        %v3164 = vunpack.c.0.s8 %v3163
        %v3165 = vlaneseq
        %v3166 = vshrl.u32 %v3165, 7
        %v3167 = vsub.s32 %v3164, %v3166
        %v3168 = vrot.slane %v3154, %v3167
        %v3169 = vcombine.high %v3145, 0.0
        %v3170 = vcombine.high %v3152, 0.0
        %v3171 = vcombine.high %v3161, 0.0
        %v3172 = vcombine.high %v3168, 0.0
        %3174 = vrot.lane.b32.xlu0 %v3103, 16
        %v3175 = vpop.permute.xlu0 %3174
        %3178 = vrot.lane.b32.xlu0 %v3086, 32
        %v3179 = vpop.permute.xlu0 %3178
        %3182 = vrot.lane.b32.xlu0 %v3104, 48
        %v3183 = vpop.permute.xlu0 %3182
        %3186 = vrot.lane.b32.xlu0 %v3095, 64
        %v3187 = vpop.permute.xlu0 %3186
        %3190 = vrot.lane.b32.xlu0 %v3105, 80
        %v3191 = vpop.permute.xlu0 %3190
        %3194 = vrot.lane.b32.xlu0 %v3102, 96
        %v3195 = vpop.permute.xlu0 %3194
        %3198 = vrot.lane.b32.xlu0 %v3106, 112
        %v3199 = vpop.permute.xlu0 %3198
        %3202 = vrot.lane.b32.xlu0 %v3169, 16
        %v3203 = vpop.permute.xlu0 %3202
        %3206 = vrot.lane.b32.xlu0 %v3152, 32
        %v3207 = vpop.permute.xlu0 %3206
        %3210 = vrot.lane.b32.xlu0 %v3170, 48
        %v3211 = vpop.permute.xlu0 %3210
        %3214 = vrot.lane.b32.xlu0 %v3161, 64
        %v3215 = vpop.permute.xlu0 %3214
        %3218 = vrot.lane.b32.xlu0 %v3171, 80
        %v3219 = vpop.permute.xlu0 %3218
        %3222 = vrot.lane.b32.xlu0 %v3168, 96
        %v3223 = vpop.permute.xlu0 %3222
        %3226 = vrot.lane.b32.xlu0 %v3172, 112
        %v3227 = vpop.permute.xlu0 %3226
        %v3229 = vsel %vm521, %v3079, %v3175
        %v3230 = vsel %vm523, %v3229, %v3179
        %v3231 = vsel %vm525, %v3230, %v3183
        %v3232 = vsel %vm527, %v3231, %v3187
        %v3233 = vsel %vm529, %v3232, %v3191
        %v3234 = vsel %vm531, %v3233, %v3195
        %v3235 = vsel %vm533, %v3234, %v3199
        %v3236 = vsel %vm521, %v3145, %v3203
        %v3237 = vsel %vm523, %v3236, %v3207
        %v3238 = vsel %vm525, %v3237, %v3211
        %v3239 = vsel %vm527, %v3238, %v3215
        %v3240 = vsel %vm529, %v3239, %v3219
        %v3241 = vsel %vm531, %v3240, %v3223
        %v3242 = vsel %vm533, %v3241, %v3227
        %3243 = vrot.lane.b32.xlu0 %v2821, 126
        %v3244 = vpop.permute.xlu0 %3243
        %3245 = vrot.lane.b32.xlu0 %v2811, 126
        %v3246 = vpop.permute.xlu0 %3245
        %3247 = vrot.lane.b32.xlu0 %v2822, 126
        %v3248 = vpop.permute.xlu0 %3247
        %3249 = vrot.lane.b32.xlu0 %v2814, 126
        %v3250 = vpop.permute.xlu0 %3249
        %v3255 = vcombine.high %v3244, 0.0
        %v3257 = vunpack.c.l.s4 1983009808
        %v3258 = vunpack.c.0.s8 %v3257
        %v3259 = vlaneseq
        %v3260 = vshrl.u32 %v3259, 7
        %v3261 = vsub.s32 %v3258, %v3260
        %v3262 = vrot.slane %v3244, %v3261
        %v3264 = vunpack.c.l.s4 1983009808
        %v3265 = vunpack.c.0.s8 %v3264
        %v3266 = vlaneseq
        %v3267 = vshrl.u32 %v3266, 7
        %v3268 = vsub.s32 %v3265, %v3267
        %v3269 = vrot.slane %v3255, %v3268
        %v3270 = vcombine.high %v3248, 0.0
        %v3272 = vunpack.c.l.s4 1983009808
        %v3273 = vunpack.c.0.s8 %v3272
        %v3274 = vlaneseq
        %v3275 = vshrl.u32 %v3274, 7
        %v3276 = vsub.s32 %v3273, %v3275
        %v3277 = vrot.slane %v3248, %v3276
        %v3279 = vunpack.c.l.s4 1983009808
        %v3280 = vunpack.c.0.s8 %v3279
        %v3281 = vlaneseq
        %v3282 = vshrl.u32 %v3281, 7
        %v3283 = vsub.s32 %v3280, %v3282
        %v3284 = vrot.slane %v3270, %v3283
        %v3285 = vcombine.low %v3262, %v3277
        %v3286 = vcombine.high %v3262, %v3277
        %v3288 = vunpack.c.l.s4 1934713408
        %v3289 = vunpack.c.0.s8 %v3288
        %v3290 = vlaneseq
        %v3291 = vshrl.u32 %v3290, 7
        %v3292 = vsub.s32 %v3289, %v3291
        %v3293 = vrot.slane %v3285, %v3292
        %v3295 = vunpack.c.l.s4 1934713408
        %v3296 = vunpack.c.0.s8 %v3295
        %v3297 = vlaneseq
        %v3298 = vshrl.u32 %v3297, 7
        %v3299 = vsub.s32 %v3296, %v3298
        %v3300 = vrot.slane %v3286, %v3299
        %v3301 = vcombine.low %v3269, %v3284
        %v3302 = vcombine.high %v3269, %v3284
        %v3304 = vunpack.c.l.s4 1934713408
        %v3305 = vunpack.c.0.s8 %v3304
        %v3306 = vlaneseq
        %v3307 = vshrl.u32 %v3306, 7
        %v3308 = vsub.s32 %v3305, %v3307
        %v3309 = vrot.slane %v3301, %v3308
        %v3311 = vunpack.c.l.s4 1934713408
        %v3312 = vunpack.c.0.s8 %v3311
        %v3313 = vlaneseq
        %v3314 = vshrl.u32 %v3313, 7
        %v3315 = vsub.s32 %v3312, %v3314
        %v3316 = vrot.slane %v3302, %v3315
        %v3317 = vcombine.high %v3293, 0.0
        %v3318 = vcombine.high %v3300, 0.0
        %v3319 = vcombine.high %v3309, 0.0
        %v3320 = vcombine.high %v3316, 0.0
        %v3321 = vcombine.high %v3246, 0.0
        %v3323 = vunpack.c.l.s4 1983009808
        %v3324 = vunpack.c.0.s8 %v3323
        %v3325 = vlaneseq
        %v3326 = vshrl.u32 %v3325, 7
        %v3327 = vsub.s32 %v3324, %v3326
        %v3328 = vrot.slane %v3246, %v3327
        %v3330 = vunpack.c.l.s4 1983009808
        %v3331 = vunpack.c.0.s8 %v3330
        %v3332 = vlaneseq
        %v3333 = vshrl.u32 %v3332, 7
        %v3334 = vsub.s32 %v3331, %v3333
        %v3335 = vrot.slane %v3321, %v3334
        %v3336 = vcombine.high %v3250, 0.0
        %v3338 = vunpack.c.l.s4 1983009808
        %v3339 = vunpack.c.0.s8 %v3338
        %v3340 = vlaneseq
        %v3341 = vshrl.u32 %v3340, 7
        %v3342 = vsub.s32 %v3339, %v3341
        %v3343 = vrot.slane %v3250, %v3342
        %v3345 = vunpack.c.l.s4 1983009808
        %v3346 = vunpack.c.0.s8 %v3345
        %v3347 = vlaneseq
        %v3348 = vshrl.u32 %v3347, 7
        %v3349 = vsub.s32 %v3346, %v3348
        %v3350 = vrot.slane %v3336, %v3349
        %v3351 = vcombine.low %v3328, %v3343
        %v3352 = vcombine.high %v3328, %v3343
        %v3354 = vunpack.c.l.s4 1934713408
        %v3355 = vunpack.c.0.s8 %v3354
        %v3356 = vlaneseq
        %v3357 = vshrl.u32 %v3356, 7
        %v3358 = vsub.s32 %v3355, %v3357
        %v3359 = vrot.slane %v3351, %v3358
        %v3361 = vunpack.c.l.s4 1934713408
        %v3362 = vunpack.c.0.s8 %v3361
        %v3363 = vlaneseq
        %v3364 = vshrl.u32 %v3363, 7
        %v3365 = vsub.s32 %v3362, %v3364
        %v3366 = vrot.slane %v3352, %v3365
        %v3367 = vcombine.low %v3335, %v3350
        %v3368 = vcombine.high %v3335, %v3350
        %v3370 = vunpack.c.l.s4 1934713408
        %v3371 = vunpack.c.0.s8 %v3370
        %v3372 = vlaneseq
        %v3373 = vshrl.u32 %v3372, 7
        %v3374 = vsub.s32 %v3371, %v3373
        %v3375 = vrot.slane %v3367, %v3374
        %v3377 = vunpack.c.l.s4 1934713408
        %v3378 = vunpack.c.0.s8 %v3377
        %v3379 = vlaneseq
        %v3380 = vshrl.u32 %v3379, 7
        %v3381 = vsub.s32 %v3378, %v3380
        %v3382 = vrot.slane %v3368, %v3381
        %v3383 = vcombine.high %v3359, 0.0
        %v3384 = vcombine.high %v3366, 0.0
        %v3385 = vcombine.high %v3375, 0.0
        %v3386 = vcombine.high %v3382, 0.0
        %3388 = vrot.lane.b32.xlu0 %v3317, 16
        %v3389 = vpop.permute.xlu0 %3388
        %3392 = vrot.lane.b32.xlu0 %v3300, 32
        %v3393 = vpop.permute.xlu0 %3392
        %3396 = vrot.lane.b32.xlu0 %v3318, 48
        %v3397 = vpop.permute.xlu0 %3396
        %3400 = vrot.lane.b32.xlu0 %v3309, 64
        %v3401 = vpop.permute.xlu0 %3400
        %3404 = vrot.lane.b32.xlu0 %v3319, 80
        %v3405 = vpop.permute.xlu0 %3404
        %3408 = vrot.lane.b32.xlu0 %v3316, 96
        %v3409 = vpop.permute.xlu0 %3408
        %3412 = vrot.lane.b32.xlu0 %v3320, 112
        %v3413 = vpop.permute.xlu0 %3412
        %3416 = vrot.lane.b32.xlu0 %v3383, 16
        %v3417 = vpop.permute.xlu0 %3416
        %3420 = vrot.lane.b32.xlu0 %v3366, 32
        %v3421 = vpop.permute.xlu0 %3420
        %3424 = vrot.lane.b32.xlu0 %v3384, 48
        %v3425 = vpop.permute.xlu0 %3424
        %3428 = vrot.lane.b32.xlu0 %v3375, 64
        %v3429 = vpop.permute.xlu0 %3428
        %3432 = vrot.lane.b32.xlu0 %v3385, 80
        %v3433 = vpop.permute.xlu0 %3432
        %3436 = vrot.lane.b32.xlu0 %v3382, 96
        %v3437 = vpop.permute.xlu0 %3436
        %3440 = vrot.lane.b32.xlu0 %v3386, 112
        %v3441 = vpop.permute.xlu0 %3440
        %v3443 = vsel %vm521, %v3293, %v3389
        %v3444 = vsel %vm523, %v3443, %v3393
        %v3445 = vsel %vm525, %v3444, %v3397
        %v3446 = vsel %vm527, %v3445, %v3401
        %v3447 = vsel %vm529, %v3446, %v3405
        %v3448 = vsel %vm531, %v3447, %v3409
        %v3449 = vsel %vm533, %v3448, %v3413
        %v3450 = vsel %vm521, %v3359, %v3417
        %v3451 = vsel %vm523, %v3450, %v3421
        %v3452 = vsel %vm525, %v3451, %v3425
        %v3453 = vsel %vm527, %v3452, %v3429
        %v3454 = vsel %vm529, %v3453, %v3433
        %v3455 = vsel %vm531, %v3454, %v3437
        %v3456 = vsel %vm533, %v3455, %v3441
        %v3459 = vrot.slane %v2821, 1
        %v3460 = vrot.slane %v2811, 1
        %v3461 = vsel %vm1223, %v3459, %v3460
        %v3462 = vrot.slane %v2823, 1
        %v3463 = vsel %vm1223, %v3460, %v3462
        %v3464 = vrot.slane %v2822, 1
        %v3465 = vrot.slane %v2814, 1
        %v3466 = vsel %vm1223, %v3464, %v3465
        %v3467 = vrot.slane %v2824, 1
        %v3468 = vsel %vm1223, %v3465, %v3467
        %v3473 = vcombine.high %v3461, 0.0
        %v3475 = vunpack.c.l.s4 1983009808
        %v3476 = vunpack.c.0.s8 %v3475
        %v3477 = vlaneseq
        %v3478 = vshrl.u32 %v3477, 7
        %v3479 = vsub.s32 %v3476, %v3478
        %v3480 = vrot.slane %v3461, %v3479
        %v3482 = vunpack.c.l.s4 1983009808
        %v3483 = vunpack.c.0.s8 %v3482
        %v3484 = vlaneseq
        %v3485 = vshrl.u32 %v3484, 7
        %v3486 = vsub.s32 %v3483, %v3485
        %v3487 = vrot.slane %v3473, %v3486
        %v3488 = vcombine.high %v3466, 0.0
        %v3490 = vunpack.c.l.s4 1983009808
        %v3491 = vunpack.c.0.s8 %v3490
        %v3492 = vlaneseq
        %v3493 = vshrl.u32 %v3492, 7
        %v3494 = vsub.s32 %v3491, %v3493
        %v3495 = vrot.slane %v3466, %v3494
        %v3497 = vunpack.c.l.s4 1983009808
        %v3498 = vunpack.c.0.s8 %v3497
        %v3499 = vlaneseq
        %v3500 = vshrl.u32 %v3499, 7
        %v3501 = vsub.s32 %v3498, %v3500
        %v3502 = vrot.slane %v3488, %v3501
        %v3503 = vcombine.low %v3480, %v3495
        %v3504 = vcombine.high %v3480, %v3495
        %v3506 = vunpack.c.l.s4 1934713408
        %v3507 = vunpack.c.0.s8 %v3506
        %v3508 = vlaneseq
        %v3509 = vshrl.u32 %v3508, 7
        %v3510 = vsub.s32 %v3507, %v3509
        %v3511 = vrot.slane %v3503, %v3510
        %v3513 = vunpack.c.l.s4 1934713408
        %v3514 = vunpack.c.0.s8 %v3513
        %v3515 = vlaneseq
        %v3516 = vshrl.u32 %v3515, 7
        %v3517 = vsub.s32 %v3514, %v3516
        %v3518 = vrot.slane %v3504, %v3517
        %v3519 = vcombine.low %v3487, %v3502
        %v3520 = vcombine.high %v3487, %v3502
        %v3522 = vunpack.c.l.s4 1934713408
        %v3523 = vunpack.c.0.s8 %v3522
        %v3524 = vlaneseq
        %v3525 = vshrl.u32 %v3524, 7
        %v3526 = vsub.s32 %v3523, %v3525
        %v3527 = vrot.slane %v3519, %v3526
        %v3529 = vunpack.c.l.s4 1934713408
        %v3530 = vunpack.c.0.s8 %v3529
        %v3531 = vlaneseq
        %v3532 = vshrl.u32 %v3531, 7
        %v3533 = vsub.s32 %v3530, %v3532
        %v3534 = vrot.slane %v3520, %v3533
        %v3535 = vcombine.high %v3511, 0.0
        %v3536 = vcombine.high %v3518, 0.0
        %v3537 = vcombine.high %v3527, 0.0
        %v3538 = vcombine.high %v3534, 0.0
        %v3539 = vcombine.high %v3463, 0.0
        %v3541 = vunpack.c.l.s4 1983009808
        %v3542 = vunpack.c.0.s8 %v3541
        %v3543 = vlaneseq
        %v3544 = vshrl.u32 %v3543, 7
        %v3545 = vsub.s32 %v3542, %v3544
        %v3546 = vrot.slane %v3463, %v3545
        %v3548 = vunpack.c.l.s4 1983009808
        %v3549 = vunpack.c.0.s8 %v3548
        %v3550 = vlaneseq
        %v3551 = vshrl.u32 %v3550, 7
        %v3552 = vsub.s32 %v3549, %v3551
        %v3553 = vrot.slane %v3539, %v3552
        %v3554 = vcombine.high %v3468, 0.0
        %v3556 = vunpack.c.l.s4 1983009808
        %v3557 = vunpack.c.0.s8 %v3556
        %v3558 = vlaneseq
        %v3559 = vshrl.u32 %v3558, 7
        %v3560 = vsub.s32 %v3557, %v3559
        %v3561 = vrot.slane %v3468, %v3560
        %v3563 = vunpack.c.l.s4 1983009808
        %v3564 = vunpack.c.0.s8 %v3563
        %v3565 = vlaneseq
        %v3566 = vshrl.u32 %v3565, 7
        %v3567 = vsub.s32 %v3564, %v3566
        %v3568 = vrot.slane %v3554, %v3567
        %v3569 = vcombine.low %v3546, %v3561
        %v3570 = vcombine.high %v3546, %v3561
        %v3572 = vunpack.c.l.s4 1934713408
        %v3573 = vunpack.c.0.s8 %v3572
        %v3574 = vlaneseq
        %v3575 = vshrl.u32 %v3574, 7
        %v3576 = vsub.s32 %v3573, %v3575
        %v3577 = vrot.slane %v3569, %v3576
        %v3579 = vunpack.c.l.s4 1934713408
        %v3580 = vunpack.c.0.s8 %v3579
        %v3581 = vlaneseq
        %v3582 = vshrl.u32 %v3581, 7
        %v3583 = vsub.s32 %v3580, %v3582
        %v3584 = vrot.slane %v3570, %v3583
        %v3585 = vcombine.low %v3553, %v3568
        %v3586 = vcombine.high %v3553, %v3568
        %v3588 = vunpack.c.l.s4 1934713408
        %v3589 = vunpack.c.0.s8 %v3588
        %v3590 = vlaneseq
        %v3591 = vshrl.u32 %v3590, 7
        %v3592 = vsub.s32 %v3589, %v3591
        %v3593 = vrot.slane %v3585, %v3592
        %v3595 = vunpack.c.l.s4 1934713408
        %v3596 = vunpack.c.0.s8 %v3595
        %v3597 = vlaneseq
        %v3598 = vshrl.u32 %v3597, 7
        %v3599 = vsub.s32 %v3596, %v3598
        %v3600 = vrot.slane %v3586, %v3599
        %v3601 = vcombine.high %v3577, 0.0
        %v3602 = vcombine.high %v3584, 0.0
        %v3603 = vcombine.high %v3593, 0.0
        %v3604 = vcombine.high %v3600, 0.0
        %3606 = vrot.lane.b32.xlu0 %v3535, 16
        %v3607 = vpop.permute.xlu0 %3606
        %3610 = vrot.lane.b32.xlu0 %v3518, 32
        %v3611 = vpop.permute.xlu0 %3610
        %3614 = vrot.lane.b32.xlu0 %v3536, 48
        %v3615 = vpop.permute.xlu0 %3614
        %3618 = vrot.lane.b32.xlu0 %v3527, 64
        %v3619 = vpop.permute.xlu0 %3618
        %3622 = vrot.lane.b32.xlu0 %v3537, 80
        %v3623 = vpop.permute.xlu0 %3622
        %3626 = vrot.lane.b32.xlu0 %v3534, 96
        %v3627 = vpop.permute.xlu0 %3626
        %3630 = vrot.lane.b32.xlu0 %v3538, 112
        %v3631 = vpop.permute.xlu0 %3630
        %3634 = vrot.lane.b32.xlu0 %v3601, 16
        %v3635 = vpop.permute.xlu0 %3634
        %3638 = vrot.lane.b32.xlu0 %v3584, 32
        %v3639 = vpop.permute.xlu0 %3638
        %3642 = vrot.lane.b32.xlu0 %v3602, 48
        %v3643 = vpop.permute.xlu0 %3642
        %3646 = vrot.lane.b32.xlu0 %v3593, 64
        %v3647 = vpop.permute.xlu0 %3646
        %3650 = vrot.lane.b32.xlu0 %v3603, 80
        %v3651 = vpop.permute.xlu0 %3650
        %3654 = vrot.lane.b32.xlu0 %v3600, 96
        %v3655 = vpop.permute.xlu0 %3654
        %3658 = vrot.lane.b32.xlu0 %v3604, 112
        %v3659 = vpop.permute.xlu0 %3658
        %v3661 = vsel %vm521, %v3511, %v3607
        %v3662 = vsel %vm523, %v3661, %v3611
        %v3663 = vsel %vm525, %v3662, %v3615
        %v3664 = vsel %vm527, %v3663, %v3619
        %v3665 = vsel %vm529, %v3664, %v3623
        %v3666 = vsel %vm531, %v3665, %v3627
        %v3667 = vsel %vm533, %v3666, %v3631
        %v3668 = vsel %vm521, %v3577, %v3635
        %v3669 = vsel %vm523, %v3668, %v3639
        %v3670 = vsel %vm525, %v3669, %v3643
        %v3671 = vsel %vm527, %v3670, %v3647
        %v3672 = vsel %vm529, %v3671, %v3651
        %v3673 = vsel %vm531, %v3672, %v3655
        %v3674 = vsel %vm533, %v3673, %v3659
        %3675 = vrot.lane.b32.xlu0 %v3461, 127
        %v3676 = vpop.permute.xlu0 %3675
        %3677 = vrot.lane.b32.xlu0 %v3463, 127
        %v3678 = vpop.permute.xlu0 %3677
        %3679 = vrot.lane.b32.xlu0 %v3466, 127
        %v3680 = vpop.permute.xlu0 %3679
        %3681 = vrot.lane.b32.xlu0 %v3468, 127
        %v3682 = vpop.permute.xlu0 %3681
        %v3687 = vcombine.high %v3676, 0.0
        %v3689 = vunpack.c.l.s4 1983009808
        %v3690 = vunpack.c.0.s8 %v3689
        %v3691 = vlaneseq
        %v3692 = vshrl.u32 %v3691, 7
        %v3693 = vsub.s32 %v3690, %v3692
        %v3694 = vrot.slane %v3676, %v3693
        %v3696 = vunpack.c.l.s4 1983009808
        %v3697 = vunpack.c.0.s8 %v3696
        %v3698 = vlaneseq
        %v3699 = vshrl.u32 %v3698, 7
        %v3700 = vsub.s32 %v3697, %v3699
        %v3701 = vrot.slane %v3687, %v3700
        %v3702 = vcombine.high %v3680, 0.0
        %v3704 = vunpack.c.l.s4 1983009808
        %v3705 = vunpack.c.0.s8 %v3704
        %v3706 = vlaneseq
        %v3707 = vshrl.u32 %v3706, 7
        %v3708 = vsub.s32 %v3705, %v3707
        %v3709 = vrot.slane %v3680, %v3708
        %v3711 = vunpack.c.l.s4 1983009808
        %v3712 = vunpack.c.0.s8 %v3711
        %v3713 = vlaneseq
        %v3714 = vshrl.u32 %v3713, 7
        %v3715 = vsub.s32 %v3712, %v3714
        %v3716 = vrot.slane %v3702, %v3715
        %v3717 = vcombine.low %v3694, %v3709
        %v3718 = vcombine.high %v3694, %v3709
        %v3720 = vunpack.c.l.s4 1934713408
        %v3721 = vunpack.c.0.s8 %v3720
        %v3722 = vlaneseq
        %v3723 = vshrl.u32 %v3722, 7
        %v3724 = vsub.s32 %v3721, %v3723
        %v3725 = vrot.slane %v3717, %v3724
        %v3727 = vunpack.c.l.s4 1934713408
        %v3728 = vunpack.c.0.s8 %v3727
        %v3729 = vlaneseq
        %v3730 = vshrl.u32 %v3729, 7
        %v3731 = vsub.s32 %v3728, %v3730
        %v3732 = vrot.slane %v3718, %v3731
        %v3733 = vcombine.low %v3701, %v3716
        %v3734 = vcombine.high %v3701, %v3716
        %v3736 = vunpack.c.l.s4 1934713408
        %v3737 = vunpack.c.0.s8 %v3736
        %v3738 = vlaneseq
        %v3739 = vshrl.u32 %v3738, 7
        %v3740 = vsub.s32 %v3737, %v3739
        %v3741 = vrot.slane %v3733, %v3740
        %v3743 = vunpack.c.l.s4 1934713408
        %v3744 = vunpack.c.0.s8 %v3743
        %v3745 = vlaneseq
        %v3746 = vshrl.u32 %v3745, 7
        %v3747 = vsub.s32 %v3744, %v3746
        %v3748 = vrot.slane %v3734, %v3747
        %v3749 = vcombine.high %v3725, 0.0
        %v3750 = vcombine.high %v3732, 0.0
        %v3751 = vcombine.high %v3741, 0.0
        %v3752 = vcombine.high %v3748, 0.0
        %v3753 = vcombine.high %v3678, 0.0
        %v3755 = vunpack.c.l.s4 1983009808
        %v3756 = vunpack.c.0.s8 %v3755
        %v3757 = vlaneseq
        %v3758 = vshrl.u32 %v3757, 7
        %v3759 = vsub.s32 %v3756, %v3758
        %v3760 = vrot.slane %v3678, %v3759
        %v3762 = vunpack.c.l.s4 1983009808
        %v3763 = vunpack.c.0.s8 %v3762
        %v3764 = vlaneseq
        %v3765 = vshrl.u32 %v3764, 7
        %v3766 = vsub.s32 %v3763, %v3765
        %v3767 = vrot.slane %v3753, %v3766
        %v3768 = vcombine.high %v3682, 0.0
        %v3770 = vunpack.c.l.s4 1983009808
        %v3771 = vunpack.c.0.s8 %v3770
        %v3772 = vlaneseq
        %v3773 = vshrl.u32 %v3772, 7
        %v3774 = vsub.s32 %v3771, %v3773
        %v3775 = vrot.slane %v3682, %v3774
        %v3777 = vunpack.c.l.s4 1983009808
        %v3778 = vunpack.c.0.s8 %v3777
        %v3779 = vlaneseq
        %v3780 = vshrl.u32 %v3779, 7
        %v3781 = vsub.s32 %v3778, %v3780
        %v3782 = vrot.slane %v3768, %v3781
        %v3783 = vcombine.low %v3760, %v3775
        %v3784 = vcombine.high %v3760, %v3775
        %v3786 = vunpack.c.l.s4 1934713408
        %v3787 = vunpack.c.0.s8 %v3786
        %v3788 = vlaneseq
        %v3789 = vshrl.u32 %v3788, 7
        %v3790 = vsub.s32 %v3787, %v3789
        %v3791 = vrot.slane %v3783, %v3790
        %v3793 = vunpack.c.l.s4 1934713408
        %v3794 = vunpack.c.0.s8 %v3793
        %v3795 = vlaneseq
        %v3796 = vshrl.u32 %v3795, 7
        %v3797 = vsub.s32 %v3794, %v3796
        %v3798 = vrot.slane %v3784, %v3797
        %v3799 = vcombine.low %v3767, %v3782
        %v3800 = vcombine.high %v3767, %v3782
        %v3802 = vunpack.c.l.s4 1934713408
        %v3803 = vunpack.c.0.s8 %v3802
        %v3804 = vlaneseq
        %v3805 = vshrl.u32 %v3804, 7
        %v3806 = vsub.s32 %v3803, %v3805
        %v3807 = vrot.slane %v3799, %v3806
        %v3809 = vunpack.c.l.s4 1934713408
        %v3810 = vunpack.c.0.s8 %v3809
        %v3811 = vlaneseq
        %v3812 = vshrl.u32 %v3811, 7
        %v3813 = vsub.s32 %v3810, %v3812
        %v3814 = vrot.slane %v3800, %v3813
        %v3815 = vcombine.high %v3791, 0.0
        %v3816 = vcombine.high %v3798, 0.0
        %v3817 = vcombine.high %v3807, 0.0
        %v3818 = vcombine.high %v3814, 0.0
        %3820 = vrot.lane.b32.xlu0 %v3749, 16
        %v3821 = vpop.permute.xlu0 %3820
        %3824 = vrot.lane.b32.xlu0 %v3732, 32
        %v3825 = vpop.permute.xlu0 %3824
        %3828 = vrot.lane.b32.xlu0 %v3750, 48
        %v3829 = vpop.permute.xlu0 %3828
        %3832 = vrot.lane.b32.xlu0 %v3741, 64
        %v3833 = vpop.permute.xlu0 %3832
        %3836 = vrot.lane.b32.xlu0 %v3751, 80
        %v3837 = vpop.permute.xlu0 %3836
        %3840 = vrot.lane.b32.xlu0 %v3748, 96
        %v3841 = vpop.permute.xlu0 %3840
        %3844 = vrot.lane.b32.xlu0 %v3752, 112
        %v3845 = vpop.permute.xlu0 %3844
        %3848 = vrot.lane.b32.xlu0 %v3815, 16
        %v3849 = vpop.permute.xlu0 %3848
        %3852 = vrot.lane.b32.xlu0 %v3798, 32
        %v3853 = vpop.permute.xlu0 %3852
        %3856 = vrot.lane.b32.xlu0 %v3816, 48
        %v3857 = vpop.permute.xlu0 %3856
        %3860 = vrot.lane.b32.xlu0 %v3807, 64
        %v3861 = vpop.permute.xlu0 %3860
        %3864 = vrot.lane.b32.xlu0 %v3817, 80
        %v3865 = vpop.permute.xlu0 %3864
        %3868 = vrot.lane.b32.xlu0 %v3814, 96
        %v3869 = vpop.permute.xlu0 %3868
        %3872 = vrot.lane.b32.xlu0 %v3818, 112
        %v3873 = vpop.permute.xlu0 %3872
        %v3875 = vsel %vm521, %v3725, %v3821
        %v3876 = vsel %vm523, %v3875, %v3825
        %v3877 = vsel %vm525, %v3876, %v3829
        %v3878 = vsel %vm527, %v3877, %v3833
        %v3879 = vsel %vm529, %v3878, %v3837
        %v3880 = vsel %vm531, %v3879, %v3841
        %v3881 = vsel %vm533, %v3880, %v3845
        %v3882 = vsel %vm521, %v3791, %v3849
        %v3883 = vsel %vm523, %v3882, %v3853
        %v3884 = vsel %vm525, %v3883, %v3857
        %v3885 = vsel %vm527, %v3884, %v3861
        %v3886 = vsel %vm529, %v3885, %v3865
        %v3887 = vsel %vm531, %v3886, %v3869
        %v3888 = vsel %vm533, %v3887, %v3873
        %3889 = vrot.lane.b32.xlu0 %v3461, 126
        %v3890 = vpop.permute.xlu0 %3889
        %3891 = vrot.lane.b32.xlu0 %v3463, 126
        %v3892 = vpop.permute.xlu0 %3891
        %3893 = vrot.lane.b32.xlu0 %v3466, 126
        %v3894 = vpop.permute.xlu0 %3893
        %3895 = vrot.lane.b32.xlu0 %v3468, 126
        %v3896 = vpop.permute.xlu0 %3895
        %v3901 = vcombine.high %v3890, 0.0
        %v3903 = vunpack.c.l.s4 1983009808
        %v3904 = vunpack.c.0.s8 %v3903
        %v3905 = vlaneseq
        %v3906 = vshrl.u32 %v3905, 7
        %v3907 = vsub.s32 %v3904, %v3906
        %v3908 = vrot.slane %v3890, %v3907
        %v3910 = vunpack.c.l.s4 1983009808
        %v3911 = vunpack.c.0.s8 %v3910
        %v3912 = vlaneseq
        %v3913 = vshrl.u32 %v3912, 7
        %v3914 = vsub.s32 %v3911, %v3913
        %v3915 = vrot.slane %v3901, %v3914
        %v3916 = vcombine.high %v3894, 0.0
        %v3918 = vunpack.c.l.s4 1983009808
        %v3919 = vunpack.c.0.s8 %v3918
        %v3920 = vlaneseq
        %v3921 = vshrl.u32 %v3920, 7
        %v3922 = vsub.s32 %v3919, %v3921
        %v3923 = vrot.slane %v3894, %v3922
        %v3925 = vunpack.c.l.s4 1983009808
        %v3926 = vunpack.c.0.s8 %v3925
        %v3927 = vlaneseq
        %v3928 = vshrl.u32 %v3927, 7
        %v3929 = vsub.s32 %v3926, %v3928
        %v3930 = vrot.slane %v3916, %v3929
        %v3931 = vcombine.low %v3908, %v3923
        %v3932 = vcombine.high %v3908, %v3923
        %v3934 = vunpack.c.l.s4 1934713408
        %v3935 = vunpack.c.0.s8 %v3934
        %v3936 = vlaneseq
        %v3937 = vshrl.u32 %v3936, 7
        %v3938 = vsub.s32 %v3935, %v3937
        %v3939 = vrot.slane %v3931, %v3938
        %v3941 = vunpack.c.l.s4 1934713408
        %v3942 = vunpack.c.0.s8 %v3941
        %v3943 = vlaneseq
        %v3944 = vshrl.u32 %v3943, 7
        %v3945 = vsub.s32 %v3942, %v3944
        %v3946 = vrot.slane %v3932, %v3945
        %v3947 = vcombine.low %v3915, %v3930
        %v3948 = vcombine.high %v3915, %v3930
        %v3950 = vunpack.c.l.s4 1934713408
        %v3951 = vunpack.c.0.s8 %v3950
        %v3952 = vlaneseq
        %v3953 = vshrl.u32 %v3952, 7
        %v3954 = vsub.s32 %v3951, %v3953
        %v3955 = vrot.slane %v3947, %v3954
        %v3957 = vunpack.c.l.s4 1934713408
        %v3958 = vunpack.c.0.s8 %v3957
        %v3959 = vlaneseq
        %v3960 = vshrl.u32 %v3959, 7
        %v3961 = vsub.s32 %v3958, %v3960
        %v3962 = vrot.slane %v3948, %v3961
        %v3963 = vcombine.high %v3939, 0.0
        %v3964 = vcombine.high %v3946, 0.0
        %v3965 = vcombine.high %v3955, 0.0
        %v3966 = vcombine.high %v3962, 0.0
        %v3967 = vcombine.high %v3892, 0.0
        %v3969 = vunpack.c.l.s4 1983009808
        %v3970 = vunpack.c.0.s8 %v3969
        %v3971 = vlaneseq
        %v3972 = vshrl.u32 %v3971, 7
        %v3973 = vsub.s32 %v3970, %v3972
        %v3974 = vrot.slane %v3892, %v3973
        %v3976 = vunpack.c.l.s4 1983009808
        %v3977 = vunpack.c.0.s8 %v3976
        %v3978 = vlaneseq
        %v3979 = vshrl.u32 %v3978, 7
        %v3980 = vsub.s32 %v3977, %v3979
        %v3981 = vrot.slane %v3967, %v3980
        %v3982 = vcombine.high %v3896, 0.0
        %v3984 = vunpack.c.l.s4 1983009808
        %v3985 = vunpack.c.0.s8 %v3984
        %v3986 = vlaneseq
        %v3987 = vshrl.u32 %v3986, 7
        %v3988 = vsub.s32 %v3985, %v3987
        %v3989 = vrot.slane %v3896, %v3988
        %v3991 = vunpack.c.l.s4 1983009808
        %v3992 = vunpack.c.0.s8 %v3991
        %v3993 = vlaneseq
        %v3994 = vshrl.u32 %v3993, 7
        %v3995 = vsub.s32 %v3992, %v3994
        %v3996 = vrot.slane %v3982, %v3995
        %v3997 = vcombine.low %v3974, %v3989
        %v3998 = vcombine.high %v3974, %v3989
        %v4000 = vunpack.c.l.s4 1934713408
        %v4001 = vunpack.c.0.s8 %v4000
        %v4002 = vlaneseq
        %v4003 = vshrl.u32 %v4002, 7
        %v4004 = vsub.s32 %v4001, %v4003
        %v4005 = vrot.slane %v3997, %v4004
        %v4007 = vunpack.c.l.s4 1934713408
        %v4008 = vunpack.c.0.s8 %v4007
        %v4009 = vlaneseq
        %v4010 = vshrl.u32 %v4009, 7
        %v4011 = vsub.s32 %v4008, %v4010
        %v4012 = vrot.slane %v3998, %v4011
        %v4013 = vcombine.low %v3981, %v3996
        %v4014 = vcombine.high %v3981, %v3996
        %v4016 = vunpack.c.l.s4 1934713408
        %v4017 = vunpack.c.0.s8 %v4016
        %v4018 = vlaneseq
        %v4019 = vshrl.u32 %v4018, 7
        %v4020 = vsub.s32 %v4017, %v4019
        %v4021 = vrot.slane %v4013, %v4020
        %v4023 = vunpack.c.l.s4 1934713408
        %v4024 = vunpack.c.0.s8 %v4023
        %v4025 = vlaneseq
        %v4026 = vshrl.u32 %v4025, 7
        %v4027 = vsub.s32 %v4024, %v4026
        %v4028 = vrot.slane %v4014, %v4027
        %v4029 = vcombine.high %v4005, 0.0
        %v4030 = vcombine.high %v4012, 0.0
        %v4031 = vcombine.high %v4021, 0.0
        %v4032 = vcombine.high %v4028, 0.0
        %4034 = vrot.lane.b32.xlu0 %v3963, 16
        %v4035 = vpop.permute.xlu0 %4034
        %4038 = vrot.lane.b32.xlu0 %v3946, 32
        %v4039 = vpop.permute.xlu0 %4038
        %4042 = vrot.lane.b32.xlu0 %v3964, 48
        %v4043 = vpop.permute.xlu0 %4042
        %4046 = vrot.lane.b32.xlu0 %v3955, 64
        %v4047 = vpop.permute.xlu0 %4046
        %4050 = vrot.lane.b32.xlu0 %v3965, 80
        %v4051 = vpop.permute.xlu0 %4050
        %4054 = vrot.lane.b32.xlu0 %v3962, 96
        %v4055 = vpop.permute.xlu0 %4054
        %4058 = vrot.lane.b32.xlu0 %v3966, 112
        %v4059 = vpop.permute.xlu0 %4058
        %4062 = vrot.lane.b32.xlu0 %v4029, 16
        %v4063 = vpop.permute.xlu0 %4062
        %4066 = vrot.lane.b32.xlu0 %v4012, 32
        %v4067 = vpop.permute.xlu0 %4066
        %4070 = vrot.lane.b32.xlu0 %v4030, 48
        %v4071 = vpop.permute.xlu0 %4070
        %4074 = vrot.lane.b32.xlu0 %v4021, 64
        %v4075 = vpop.permute.xlu0 %4074
        %4078 = vrot.lane.b32.xlu0 %v4031, 80
        %v4079 = vpop.permute.xlu0 %4078
        %4082 = vrot.lane.b32.xlu0 %v4028, 96
        %v4083 = vpop.permute.xlu0 %4082
        %4086 = vrot.lane.b32.xlu0 %v4032, 112
        %v4087 = vpop.permute.xlu0 %4086
        %v4089 = vsel %vm521, %v3939, %v4035
        %v4090 = vsel %vm523, %v4089, %v4039
        %v4091 = vsel %vm525, %v4090, %v4043
        %v4092 = vsel %vm527, %v4091, %v4047
        %v4093 = vsel %vm529, %v4092, %v4051
        %v4094 = vsel %vm531, %v4093, %v4055
        %v4095 = vsel %vm533, %v4094, %v4059
        %v4096 = vsel %vm521, %v4005, %v4063
        %v4097 = vsel %vm523, %v4096, %v4067
        %v4098 = vsel %vm525, %v4097, %v4071
        %v4099 = vsel %vm527, %v4098, %v4075
        %v4100 = vsel %vm529, %v4099, %v4079
        %v4101 = vsel %vm531, %v4100, %v4083
        %v4102 = vsel %vm533, %v4101, %v4087
        %v4103 = vrot.slane %v2821, 2
        %v4104 = vrot.slane %v2811, 2
        %v4105 = vsel %vm1868, %v4103, %v4104
        %v4106 = vrot.slane %v2823, 2
        %v4107 = vsel %vm1868, %v4104, %v4106
        %v4108 = vrot.slane %v2822, 2
        %v4109 = vrot.slane %v2814, 2
        %v4110 = vsel %vm1868, %v4108, %v4109
        %v4111 = vrot.slane %v2824, 2
        %v4112 = vsel %vm1868, %v4109, %v4111
        %v4117 = vcombine.high %v4105, 0.0
        %v4119 = vunpack.c.l.s4 1983009808
        %v4120 = vunpack.c.0.s8 %v4119
        %v4121 = vlaneseq
        %v4122 = vshrl.u32 %v4121, 7
        %v4123 = vsub.s32 %v4120, %v4122
        %v4124 = vrot.slane %v4105, %v4123
        %v4126 = vunpack.c.l.s4 1983009808
        %v4127 = vunpack.c.0.s8 %v4126
        %v4128 = vlaneseq
        %v4129 = vshrl.u32 %v4128, 7
        %v4130 = vsub.s32 %v4127, %v4129
        %v4131 = vrot.slane %v4117, %v4130
        %v4132 = vcombine.high %v4110, 0.0
        %v4134 = vunpack.c.l.s4 1983009808
        %v4135 = vunpack.c.0.s8 %v4134
        %v4136 = vlaneseq
        %v4137 = vshrl.u32 %v4136, 7
        %v4138 = vsub.s32 %v4135, %v4137
        %v4139 = vrot.slane %v4110, %v4138
        %v4141 = vunpack.c.l.s4 1983009808
        %v4142 = vunpack.c.0.s8 %v4141
        %v4143 = vlaneseq
        %v4144 = vshrl.u32 %v4143, 7
        %v4145 = vsub.s32 %v4142, %v4144
        %v4146 = vrot.slane %v4132, %v4145
        %v4147 = vcombine.low %v4124, %v4139
        %v4148 = vcombine.high %v4124, %v4139
        %v4150 = vunpack.c.l.s4 1934713408
        %v4151 = vunpack.c.0.s8 %v4150
        %v4152 = vlaneseq
        %v4153 = vshrl.u32 %v4152, 7
        %v4154 = vsub.s32 %v4151, %v4153
        %v4155 = vrot.slane %v4147, %v4154
        %v4157 = vunpack.c.l.s4 1934713408
        %v4158 = vunpack.c.0.s8 %v4157
        %v4159 = vlaneseq
        %v4160 = vshrl.u32 %v4159, 7
        %v4161 = vsub.s32 %v4158, %v4160
        %v4162 = vrot.slane %v4148, %v4161
        %v4163 = vcombine.low %v4131, %v4146
        %v4164 = vcombine.high %v4131, %v4146
        %v4166 = vunpack.c.l.s4 1934713408
        %v4167 = vunpack.c.0.s8 %v4166
        %v4168 = vlaneseq
        %v4169 = vshrl.u32 %v4168, 7
        %v4170 = vsub.s32 %v4167, %v4169
        %v4171 = vrot.slane %v4163, %v4170
        %v4173 = vunpack.c.l.s4 1934713408
        %v4174 = vunpack.c.0.s8 %v4173
        %v4175 = vlaneseq
        %v4176 = vshrl.u32 %v4175, 7
        %v4177 = vsub.s32 %v4174, %v4176
        %v4178 = vrot.slane %v4164, %v4177
        %v4179 = vcombine.high %v4155, 0.0
        %v4180 = vcombine.high %v4162, 0.0
        %v4181 = vcombine.high %v4171, 0.0
        %v4182 = vcombine.high %v4178, 0.0
        %v4183 = vcombine.high %v4107, 0.0
        %v4185 = vunpack.c.l.s4 1983009808
        %v4186 = vunpack.c.0.s8 %v4185
        %v4187 = vlaneseq
        %v4188 = vshrl.u32 %v4187, 7
        %v4189 = vsub.s32 %v4186, %v4188
        %v4190 = vrot.slane %v4107, %v4189
        %v4192 = vunpack.c.l.s4 1983009808
        %v4193 = vunpack.c.0.s8 %v4192
        %v4194 = vlaneseq
        %v4195 = vshrl.u32 %v4194, 7
        %v4196 = vsub.s32 %v4193, %v4195
        %v4197 = vrot.slane %v4183, %v4196
        %v4198 = vcombine.high %v4112, 0.0
        %v4200 = vunpack.c.l.s4 1983009808
        %v4201 = vunpack.c.0.s8 %v4200
        %v4202 = vlaneseq
        %v4203 = vshrl.u32 %v4202, 7
        %v4204 = vsub.s32 %v4201, %v4203
        %v4205 = vrot.slane %v4112, %v4204
        %v4207 = vunpack.c.l.s4 1983009808
        %v4208 = vunpack.c.0.s8 %v4207
        %v4209 = vlaneseq
        %v4210 = vshrl.u32 %v4209, 7
        %v4211 = vsub.s32 %v4208, %v4210
        %v4212 = vrot.slane %v4198, %v4211
        %v4213 = vcombine.low %v4190, %v4205
        %v4214 = vcombine.high %v4190, %v4205
        %v4216 = vunpack.c.l.s4 1934713408
        %v4217 = vunpack.c.0.s8 %v4216
        %v4218 = vlaneseq
        %v4219 = vshrl.u32 %v4218, 7
        %v4220 = vsub.s32 %v4217, %v4219
        %v4221 = vrot.slane %v4213, %v4220
        %v4223 = vunpack.c.l.s4 1934713408
        %v4224 = vunpack.c.0.s8 %v4223
        %v4225 = vlaneseq
        %v4226 = vshrl.u32 %v4225, 7
        %v4227 = vsub.s32 %v4224, %v4226
        %v4228 = vrot.slane %v4214, %v4227
        %v4229 = vcombine.low %v4197, %v4212
        %v4230 = vcombine.high %v4197, %v4212
        %v4232 = vunpack.c.l.s4 1934713408
        %v4233 = vunpack.c.0.s8 %v4232
        %v4234 = vlaneseq
        %v4235 = vshrl.u32 %v4234, 7
        %v4236 = vsub.s32 %v4233, %v4235
        %v4237 = vrot.slane %v4229, %v4236
        %v4239 = vunpack.c.l.s4 1934713408
        %v4240 = vunpack.c.0.s8 %v4239
        %v4241 = vlaneseq
        %v4242 = vshrl.u32 %v4241, 7
        %v4243 = vsub.s32 %v4240, %v4242
        %v4244 = vrot.slane %v4230, %v4243
        %v4245 = vcombine.high %v4221, 0.0
        %v4246 = vcombine.high %v4228, 0.0
        %v4247 = vcombine.high %v4237, 0.0
        %v4248 = vcombine.high %v4244, 0.0
        %4250 = vrot.lane.b32.xlu0 %v4179, 16
        %v4251 = vpop.permute.xlu0 %4250
        %4254 = vrot.lane.b32.xlu0 %v4162, 32
        %v4255 = vpop.permute.xlu0 %4254
        %4258 = vrot.lane.b32.xlu0 %v4180, 48
        %v4259 = vpop.permute.xlu0 %4258
        %4262 = vrot.lane.b32.xlu0 %v4171, 64
        %v4263 = vpop.permute.xlu0 %4262
        %4266 = vrot.lane.b32.xlu0 %v4181, 80
        %v4267 = vpop.permute.xlu0 %4266
        %4270 = vrot.lane.b32.xlu0 %v4178, 96
        %v4271 = vpop.permute.xlu0 %4270
        %4274 = vrot.lane.b32.xlu0 %v4182, 112
        %v4275 = vpop.permute.xlu0 %4274
        %4278 = vrot.lane.b32.xlu0 %v4245, 16
        %v4279 = vpop.permute.xlu0 %4278
        %4282 = vrot.lane.b32.xlu0 %v4228, 32
        %v4283 = vpop.permute.xlu0 %4282
        %4286 = vrot.lane.b32.xlu0 %v4246, 48
        %v4287 = vpop.permute.xlu0 %4286
        %4290 = vrot.lane.b32.xlu0 %v4237, 64
        %v4291 = vpop.permute.xlu0 %4290
        %4294 = vrot.lane.b32.xlu0 %v4247, 80
        %v4295 = vpop.permute.xlu0 %4294
        %4298 = vrot.lane.b32.xlu0 %v4244, 96
        %v4299 = vpop.permute.xlu0 %4298
        %4302 = vrot.lane.b32.xlu0 %v4248, 112
        %v4303 = vpop.permute.xlu0 %4302
        %v4305 = vsel %vm521, %v4155, %v4251
        %v4306 = vsel %vm523, %v4305, %v4255
        %v4307 = vsel %vm525, %v4306, %v4259
        %v4308 = vsel %vm527, %v4307, %v4263
        %v4309 = vsel %vm529, %v4308, %v4267
        %v4310 = vsel %vm531, %v4309, %v4271
        %v4311 = vsel %vm533, %v4310, %v4275
        %v4312 = vsel %vm521, %v4221, %v4279
        %v4313 = vsel %vm523, %v4312, %v4283
        %v4314 = vsel %vm525, %v4313, %v4287
        %v4315 = vsel %vm527, %v4314, %v4291
        %v4316 = vsel %vm529, %v4315, %v4295
        %v4317 = vsel %vm531, %v4316, %v4299
        %v4318 = vsel %vm533, %v4317, %v4303
        %4319 = vrot.lane.b32.xlu0 %v4105, 127
        %v4320 = vpop.permute.xlu0 %4319
        %4321 = vrot.lane.b32.xlu0 %v4107, 127
        %v4322 = vpop.permute.xlu0 %4321
        %4323 = vrot.lane.b32.xlu0 %v4110, 127
        %v4324 = vpop.permute.xlu0 %4323
        %4325 = vrot.lane.b32.xlu0 %v4112, 127
        %v4326 = vpop.permute.xlu0 %4325
        %v4331 = vcombine.high %v4320, 0.0
        %v4333 = vunpack.c.l.s4 1983009808
        %v4334 = vunpack.c.0.s8 %v4333
        %v4335 = vlaneseq
        %v4336 = vshrl.u32 %v4335, 7
        %v4337 = vsub.s32 %v4334, %v4336
        %v4338 = vrot.slane %v4320, %v4337
        %v4340 = vunpack.c.l.s4 1983009808
        %v4341 = vunpack.c.0.s8 %v4340
        %v4342 = vlaneseq
        %v4343 = vshrl.u32 %v4342, 7
        %v4344 = vsub.s32 %v4341, %v4343
        %v4345 = vrot.slane %v4331, %v4344
        %v4346 = vcombine.high %v4324, 0.0
        %v4348 = vunpack.c.l.s4 1983009808
        %v4349 = vunpack.c.0.s8 %v4348
        %v4350 = vlaneseq
        %v4351 = vshrl.u32 %v4350, 7
        %v4352 = vsub.s32 %v4349, %v4351
        %v4353 = vrot.slane %v4324, %v4352
        %v4355 = vunpack.c.l.s4 1983009808
        %v4356 = vunpack.c.0.s8 %v4355
        %v4357 = vlaneseq
        %v4358 = vshrl.u32 %v4357, 7
        %v4359 = vsub.s32 %v4356, %v4358
        %v4360 = vrot.slane %v4346, %v4359
        %v4361 = vcombine.low %v4338, %v4353
        %v4362 = vcombine.high %v4338, %v4353
        %v4364 = vunpack.c.l.s4 1934713408
        %v4365 = vunpack.c.0.s8 %v4364
        %v4366 = vlaneseq
        %v4367 = vshrl.u32 %v4366, 7
        %v4368 = vsub.s32 %v4365, %v4367
        %v4369 = vrot.slane %v4361, %v4368
        %v4371 = vunpack.c.l.s4 1934713408
        %v4372 = vunpack.c.0.s8 %v4371
        %v4373 = vlaneseq
        %v4374 = vshrl.u32 %v4373, 7
        %v4375 = vsub.s32 %v4372, %v4374
        %v4376 = vrot.slane %v4362, %v4375
        %v4377 = vcombine.low %v4345, %v4360
        %v4378 = vcombine.high %v4345, %v4360
        %v4380 = vunpack.c.l.s4 1934713408
        %v4381 = vunpack.c.0.s8 %v4380
        %v4382 = vlaneseq
        %v4383 = vshrl.u32 %v4382, 7
        %v4384 = vsub.s32 %v4381, %v4383
        %v4385 = vrot.slane %v4377, %v4384
        %v4387 = vunpack.c.l.s4 1934713408
        %v4388 = vunpack.c.0.s8 %v4387
        %v4389 = vlaneseq
        %v4390 = vshrl.u32 %v4389, 7
        %v4391 = vsub.s32 %v4388, %v4390
        %v4392 = vrot.slane %v4378, %v4391
        %v4393 = vcombine.high %v4369, 0.0
        %v4394 = vcombine.high %v4376, 0.0
        %v4395 = vcombine.high %v4385, 0.0
        %v4396 = vcombine.high %v4392, 0.0
        %v4397 = vcombine.high %v4322, 0.0
        %v4399 = vunpack.c.l.s4 1983009808
        %v4400 = vunpack.c.0.s8 %v4399
        %v4401 = vlaneseq
        %v4402 = vshrl.u32 %v4401, 7
        %v4403 = vsub.s32 %v4400, %v4402
        %v4404 = vrot.slane %v4322, %v4403
        %v4406 = vunpack.c.l.s4 1983009808
        %v4407 = vunpack.c.0.s8 %v4406
        %v4408 = vlaneseq
        %v4409 = vshrl.u32 %v4408, 7
        %v4410 = vsub.s32 %v4407, %v4409
        %v4411 = vrot.slane %v4397, %v4410
        %v4412 = vcombine.high %v4326, 0.0
        %v4414 = vunpack.c.l.s4 1983009808
        %v4415 = vunpack.c.0.s8 %v4414
        %v4416 = vlaneseq
        %v4417 = vshrl.u32 %v4416, 7
        %v4418 = vsub.s32 %v4415, %v4417
        %v4419 = vrot.slane %v4326, %v4418
        %v4421 = vunpack.c.l.s4 1983009808
        %v4422 = vunpack.c.0.s8 %v4421
        %v4423 = vlaneseq
        %v4424 = vshrl.u32 %v4423, 7
        %v4425 = vsub.s32 %v4422, %v4424
        %v4426 = vrot.slane %v4412, %v4425
        %v4427 = vcombine.low %v4404, %v4419
        %v4428 = vcombine.high %v4404, %v4419
        %v4430 = vunpack.c.l.s4 1934713408
        %v4431 = vunpack.c.0.s8 %v4430
        %v4432 = vlaneseq
        %v4433 = vshrl.u32 %v4432, 7
        %v4434 = vsub.s32 %v4431, %v4433
        %v4435 = vrot.slane %v4427, %v4434
        %v4437 = vunpack.c.l.s4 1934713408
        %v4438 = vunpack.c.0.s8 %v4437
        %v4439 = vlaneseq
        %v4440 = vshrl.u32 %v4439, 7
        %v4441 = vsub.s32 %v4438, %v4440
        %v4442 = vrot.slane %v4428, %v4441
        %v4443 = vcombine.low %v4411, %v4426
        %v4444 = vcombine.high %v4411, %v4426
        %v4446 = vunpack.c.l.s4 1934713408
        %v4447 = vunpack.c.0.s8 %v4446
        %v4448 = vlaneseq
        %v4449 = vshrl.u32 %v4448, 7
        %v4450 = vsub.s32 %v4447, %v4449
        %v4451 = vrot.slane %v4443, %v4450
        %v4453 = vunpack.c.l.s4 1934713408
        %v4454 = vunpack.c.0.s8 %v4453
        %v4455 = vlaneseq
        %v4456 = vshrl.u32 %v4455, 7
        %v4457 = vsub.s32 %v4454, %v4456
        %v4458 = vrot.slane %v4444, %v4457
        %v4459 = vcombine.high %v4435, 0.0
        %v4460 = vcombine.high %v4442, 0.0
        %v4461 = vcombine.high %v4451, 0.0
        %v4462 = vcombine.high %v4458, 0.0
        %4464 = vrot.lane.b32.xlu0 %v4393, 16
        %v4465 = vpop.permute.xlu0 %4464
        %4468 = vrot.lane.b32.xlu0 %v4376, 32
        %v4469 = vpop.permute.xlu0 %4468
        %4472 = vrot.lane.b32.xlu0 %v4394, 48
        %v4473 = vpop.permute.xlu0 %4472
        %4476 = vrot.lane.b32.xlu0 %v4385, 64
        %v4477 = vpop.permute.xlu0 %4476
        %4480 = vrot.lane.b32.xlu0 %v4395, 80
        %v4481 = vpop.permute.xlu0 %4480
        %4484 = vrot.lane.b32.xlu0 %v4392, 96
        %v4485 = vpop.permute.xlu0 %4484
        %4488 = vrot.lane.b32.xlu0 %v4396, 112
        %v4489 = vpop.permute.xlu0 %4488
        %4492 = vrot.lane.b32.xlu0 %v4459, 16
        %v4493 = vpop.permute.xlu0 %4492
        %4496 = vrot.lane.b32.xlu0 %v4442, 32
        %v4497 = vpop.permute.xlu0 %4496
        %4500 = vrot.lane.b32.xlu0 %v4460, 48
        %v4501 = vpop.permute.xlu0 %4500
        %4504 = vrot.lane.b32.xlu0 %v4451, 64
        %v4505 = vpop.permute.xlu0 %4504
        %4508 = vrot.lane.b32.xlu0 %v4461, 80
        %v4509 = vpop.permute.xlu0 %4508
        %4512 = vrot.lane.b32.xlu0 %v4458, 96
        %v4513 = vpop.permute.xlu0 %4512
        %4516 = vrot.lane.b32.xlu0 %v4462, 112
        %v4517 = vpop.permute.xlu0 %4516
        %v4519 = vsel %vm521, %v4369, %v4465
        %v4520 = vsel %vm523, %v4519, %v4469
        %v4521 = vsel %vm525, %v4520, %v4473
        %v4522 = vsel %vm527, %v4521, %v4477
        %v4523 = vsel %vm529, %v4522, %v4481
        %v4524 = vsel %vm531, %v4523, %v4485
        %v4525 = vsel %vm533, %v4524, %v4489
        %v4526 = vsel %vm521, %v4435, %v4493
        %v4527 = vsel %vm523, %v4526, %v4497
        %v4528 = vsel %vm525, %v4527, %v4501
        %v4529 = vsel %vm527, %v4528, %v4505
        %v4530 = vsel %vm529, %v4529, %v4509
        %v4531 = vsel %vm531, %v4530, %v4513
        %v4532 = vsel %vm533, %v4531, %v4517
        %4533 = vrot.lane.b32.xlu0 %v4105, 126
        %v4534 = vpop.permute.xlu0 %4533
        %4535 = vrot.lane.b32.xlu0 %v4107, 126
        %v4536 = vpop.permute.xlu0 %4535
        %4537 = vrot.lane.b32.xlu0 %v4110, 126
        %v4538 = vpop.permute.xlu0 %4537
        %4539 = vrot.lane.b32.xlu0 %v4112, 126
        %v4540 = vpop.permute.xlu0 %4539
        %v4545 = vcombine.high %v4534, 0.0
        %v4547 = vunpack.c.l.s4 1983009808
        %v4548 = vunpack.c.0.s8 %v4547
        %v4549 = vlaneseq
        %v4550 = vshrl.u32 %v4549, 7
        %v4551 = vsub.s32 %v4548, %v4550
        %v4552 = vrot.slane %v4534, %v4551
        %v4554 = vunpack.c.l.s4 1983009808
        %v4555 = vunpack.c.0.s8 %v4554
        %v4556 = vlaneseq
        %v4557 = vshrl.u32 %v4556, 7
        %v4558 = vsub.s32 %v4555, %v4557
        %v4559 = vrot.slane %v4545, %v4558
        %v4560 = vcombine.high %v4538, 0.0
        %v4562 = vunpack.c.l.s4 1983009808
        %v4563 = vunpack.c.0.s8 %v4562
        %v4564 = vlaneseq
        %v4565 = vshrl.u32 %v4564, 7
        %v4566 = vsub.s32 %v4563, %v4565
        %v4567 = vrot.slane %v4538, %v4566
        %v4569 = vunpack.c.l.s4 1983009808
        %v4570 = vunpack.c.0.s8 %v4569
        %v4571 = vlaneseq
        %v4572 = vshrl.u32 %v4571, 7
        %v4573 = vsub.s32 %v4570, %v4572
        %v4574 = vrot.slane %v4560, %v4573
        %v4575 = vcombine.low %v4552, %v4567
        %v4576 = vcombine.high %v4552, %v4567
        %v4578 = vunpack.c.l.s4 1934713408
        %v4579 = vunpack.c.0.s8 %v4578
        %v4580 = vlaneseq
        %v4581 = vshrl.u32 %v4580, 7
        %v4582 = vsub.s32 %v4579, %v4581
        %v4583 = vrot.slane %v4575, %v4582
        %v4585 = vunpack.c.l.s4 1934713408
        %v4586 = vunpack.c.0.s8 %v4585
        %v4587 = vlaneseq
        %v4588 = vshrl.u32 %v4587, 7
        %v4589 = vsub.s32 %v4586, %v4588
        %v4590 = vrot.slane %v4576, %v4589
        %v4591 = vcombine.low %v4559, %v4574
        %v4592 = vcombine.high %v4559, %v4574
        %v4594 = vunpack.c.l.s4 1934713408
        %v4595 = vunpack.c.0.s8 %v4594
        %v4596 = vlaneseq
        %v4597 = vshrl.u32 %v4596, 7
        %v4598 = vsub.s32 %v4595, %v4597
        %v4599 = vrot.slane %v4591, %v4598
        %v4601 = vunpack.c.l.s4 1934713408
        %v4602 = vunpack.c.0.s8 %v4601
        %v4603 = vlaneseq
        %v4604 = vshrl.u32 %v4603, 7
        %v4605 = vsub.s32 %v4602, %v4604
        %v4606 = vrot.slane %v4592, %v4605
        %v4607 = vcombine.high %v4583, 0.0
        %v4608 = vcombine.high %v4590, 0.0
        %v4609 = vcombine.high %v4599, 0.0
        %v4610 = vcombine.high %v4606, 0.0
        %v4611 = vcombine.high %v4536, 0.0
        %v4613 = vunpack.c.l.s4 1983009808
        %v4614 = vunpack.c.0.s8 %v4613
        %v4615 = vlaneseq
        %v4616 = vshrl.u32 %v4615, 7
        %v4617 = vsub.s32 %v4614, %v4616
        %v4618 = vrot.slane %v4536, %v4617
        %v4620 = vunpack.c.l.s4 1983009808
        %v4621 = vunpack.c.0.s8 %v4620
        %v4622 = vlaneseq
        %v4623 = vshrl.u32 %v4622, 7
        %v4624 = vsub.s32 %v4621, %v4623
        %v4625 = vrot.slane %v4611, %v4624
        %v4626 = vcombine.high %v4540, 0.0
        %v4628 = vunpack.c.l.s4 1983009808
        %v4629 = vunpack.c.0.s8 %v4628
        %v4630 = vlaneseq
        %v4631 = vshrl.u32 %v4630, 7
        %v4632 = vsub.s32 %v4629, %v4631
        %v4633 = vrot.slane %v4540, %v4632
        %v4635 = vunpack.c.l.s4 1983009808
        %v4636 = vunpack.c.0.s8 %v4635
        %v4637 = vlaneseq
        %v4638 = vshrl.u32 %v4637, 7
        %v4639 = vsub.s32 %v4636, %v4638
        %v4640 = vrot.slane %v4626, %v4639
        %v4641 = vcombine.low %v4618, %v4633
        %v4642 = vcombine.high %v4618, %v4633
        %v4644 = vunpack.c.l.s4 1934713408
        %v4645 = vunpack.c.0.s8 %v4644
        %v4646 = vlaneseq
        %v4647 = vshrl.u32 %v4646, 7
        %v4648 = vsub.s32 %v4645, %v4647
        %v4649 = vrot.slane %v4641, %v4648
        %v4651 = vunpack.c.l.s4 1934713408
        %v4652 = vunpack.c.0.s8 %v4651
        %v4653 = vlaneseq
        %v4654 = vshrl.u32 %v4653, 7
        %v4655 = vsub.s32 %v4652, %v4654
        %v4656 = vrot.slane %v4642, %v4655
        %v4657 = vcombine.low %v4625, %v4640
        %v4658 = vcombine.high %v4625, %v4640
        %v4660 = vunpack.c.l.s4 1934713408
        %v4661 = vunpack.c.0.s8 %v4660
        %v4662 = vlaneseq
        %v4663 = vshrl.u32 %v4662, 7
        %v4664 = vsub.s32 %v4661, %v4663
        %v4665 = vrot.slane %v4657, %v4664
        %v4667 = vunpack.c.l.s4 1934713408
        %v4668 = vunpack.c.0.s8 %v4667
        %v4669 = vlaneseq
        %v4670 = vshrl.u32 %v4669, 7
        %v4671 = vsub.s32 %v4668, %v4670
        %v4672 = vrot.slane %v4658, %v4671
        %v4673 = vcombine.high %v4649, 0.0
        %v4674 = vcombine.high %v4656, 0.0
        %v4675 = vcombine.high %v4665, 0.0
        %v4676 = vcombine.high %v4672, 0.0
        %4678 = vrot.lane.b32.xlu0 %v4607, 16
        %v4679 = vpop.permute.xlu0 %4678
        %4682 = vrot.lane.b32.xlu0 %v4590, 32
        %v4683 = vpop.permute.xlu0 %4682
        %4686 = vrot.lane.b32.xlu0 %v4608, 48
        %v4687 = vpop.permute.xlu0 %4686
        %4690 = vrot.lane.b32.xlu0 %v4599, 64
        %v4691 = vpop.permute.xlu0 %4690
        %4694 = vrot.lane.b32.xlu0 %v4609, 80
        %v4695 = vpop.permute.xlu0 %4694
        %4698 = vrot.lane.b32.xlu0 %v4606, 96
        %v4699 = vpop.permute.xlu0 %4698
        %4702 = vrot.lane.b32.xlu0 %v4610, 112
        %v4703 = vpop.permute.xlu0 %4702
        %4706 = vrot.lane.b32.xlu0 %v4673, 16
        %v4707 = vpop.permute.xlu0 %4706
        %4710 = vrot.lane.b32.xlu0 %v4656, 32
        %v4711 = vpop.permute.xlu0 %4710
        %4714 = vrot.lane.b32.xlu0 %v4674, 48
        %v4715 = vpop.permute.xlu0 %4714
        %4718 = vrot.lane.b32.xlu0 %v4665, 64
        %v4719 = vpop.permute.xlu0 %4718
        %4722 = vrot.lane.b32.xlu0 %v4675, 80
        %v4723 = vpop.permute.xlu0 %4722
        %4726 = vrot.lane.b32.xlu0 %v4672, 96
        %v4727 = vpop.permute.xlu0 %4726
        %4730 = vrot.lane.b32.xlu0 %v4676, 112
        %v4731 = vpop.permute.xlu0 %4730
        %v4733 = vsel %vm521, %v4583, %v4679
        %v4734 = vsel %vm523, %v4733, %v4683
        %v4735 = vsel %vm525, %v4734, %v4687
        %v4736 = vsel %vm527, %v4735, %v4691
        %v4737 = vsel %vm529, %v4736, %v4695
        %v4738 = vsel %vm531, %v4737, %v4699
        %v4739 = vsel %vm533, %v4738, %v4703
        %v4740 = vsel %vm521, %v4649, %v4707
        %v4741 = vsel %vm523, %v4740, %v4711
        %v4742 = vsel %vm525, %v4741, %v4715
        %v4743 = vsel %vm527, %v4742, %v4719
        %v4744 = vsel %vm529, %v4743, %v4723
        %v4745 = vsel %vm531, %v4744, %v4727
        %v4746 = vsel %vm533, %v4745, %v4731
        %v4749 = vrot.slane %v3235, 6
        %v4750 = vrot.slane %v3242, 6
        %v4755 = vrot.slane %v3449, 4
        %v4756 = vrot.slane %v3456, 4
        %v4761 = vrot.slane %v3667, 2
        %v4762 = vrot.slane %v3674, 2
        %v4767 = vrot.slane %v4095, 6
        %v4768 = vrot.slane %v4102, 6
        %v4773 = vrot.slane %v4311, 4
        %v4774 = vrot.slane %v4318, 4
        %v4779 = vrot.slane %v4525, 2
        %v4780 = vrot.slane %v4532, 2
        %v4783 = vsel %vm2549, %v3019, %v4749
        %v4784 = vsel %vm2549, %v3026, %v4750
        %v4785 = vsel %vm2552, %v4783, %v4755
        %v4786 = vsel %vm2552, %v4784, %v4756
        %v4787 = vsel %vm1868, %v4785, %v4761
        %v4788 = vsel %vm1868, %v4786, %v4762
        %v4789 = vsel %vm2549, %v3881, %v4767
        %v4790 = vsel %vm2549, %v3888, %v4768
        %v4791 = vsel %vm2552, %v4789, %v4773
        %v4792 = vsel %vm2552, %v4790, %v4774
        %v4793 = vsel %vm1868, %v4791, %v4779
        %v4794 = vsel %vm1868, %v4792, %v4780
        %s4795 = scalar_lea.vmem %s1, 1
        %v4796 = vld [vmem:[%s4795] sm:$0x1]
        %v4797 = vpack.c.bf16 %v4793, %v4787
        %v4798 = vpack.c.bf16 %v4794, %v4788
        %v4799 = vpack.c.bf16 %v4739, %v4739
        %v4800 = vpack.c.bf16 %v4746, %v4746
        %v4802 = vsel %vm2568, %v4796, 0
        %v4805 = vsel %vm572, %v4799, 0
        %v4808 = vsel %vm572, %v4800, 0
        %4810 = vmatprep.subr.bf16.mxu0 0
        %4811 = vmatpush1.bf16.msra.mxu0 0
        %4812 = vmatprep.subr.bf16.mxu0 0
        %4813 = vmatpush1.bf16.msra.mxu0 0
        %4814 = vmatprep.subr.bf16.mxu0 0
        %4815 = vmatpush1.bf16.msra.mxu0 0
        %4816 = vmatprep.subr.bf16.mxu0 0
        %4817 = vmatpush1.bf16.msra.mxu0 0
        %4818 = vmatprep.subr.bf16.mxu0 0
        %4819 = vmatpush1.bf16.msra.mxu0 0
        %4820 = vmatprep.subr.bf16.mxu0 0
        %4821 = vmatpush1.bf16.msra.mxu0 0
        %4822 = vmatprep.subr.bf16.mxu0 %v4808
        %4823 = vmatpush1.bf16.msra.mxu0 %v4805
        %4824 = vmatprep.subr.bf16.mxu0 %v4798
        %4825 = vmatpush1.bf16.msra.mxu0 %v4797
        %4826 = vmatprep.subr.bf16.mxu0 0
        %4827 = vmatpush2.bf16.msra.mxu0 0
        %4828 = vmatprep.subr.bf16.mxu0 0
        %4829 = vmatpush2.bf16.msra.mxu0 0
        %4830 = vmatprep.subr.bf16.mxu0 0
        %4831 = vmatpush2.bf16.msra.mxu0 0
        %4832 = vmatprep.subr.bf16.mxu0 0
        %4833 = vmatpush2.bf16.msra.mxu0 0
        %4834 = vmatprep.subr.bf16.mxu0 0
        %4835 = vmatpush2.bf16.msra.mxu0 0
        %4836 = vmatprep.subr.bf16.mxu0 0
        %4837 = vmatpush2.bf16.msra.mxu0 0
        %4838 = vmatprep.subr.bf16.mxu0 0
        %4839 = vmatpush2.bf16.msra.mxu0 0
        %4840 = vmatprep.subr.bf16.mxu0 0
        %4841 = vmatpush2.bf16.msra.mxu0 0
        %4842 = vmatprep.mubr.bf16.mxu0 0
        %4843 = vmatmul.mubr.bf16.gmra.mxu0 %v4802
        %v4844 = vpop.f32.mrf.mxu0
        %v4845 = vadd.f32 0.0, %v4844
        %v4846 = vpop.f32.mrf.mxu0
        %v4847 = vadd.f32 0.0, %v4846
        %v4848 = vpop.f32.mrf.mxu0
        %v4849 = vpop.f32.mrf.mxu0
        %4850 = vdwg.mxu0
        %s4851 = scalar_lea.vmem %s2, 2
        %v4852 = vld [vmem:[%s4851] sm:$0x3]
        %4854 = vset.pattern.permute.xlu0 0
        %4855 = vperm.xlu0 %4854, %v4852
        %v4856 = vpop.permute.xlu0 %4855
        %v4858 = vmul.f32 %v4845, %v4856
        %v4859 = vmul.f32 %v4847, %v4856
        %s4860 = scalar_lea.vmem %s3, 2
        %v4861 = vld [vmem:[%s4860] sm:$0x3]
        %4863 = vset.pattern.permute.xlu0 0
        %4864 = vperm.xlu0 %4863, %v4861
        %v4865 = vpop.permute.xlu0 %4864
        %v4867 = vadd.f32 %v4858, %v4865
        %v4868 = vadd.f32 %v4859, %v4865
        %v4869 = vmax.f32 %v4867, 0.0
        %v4870 = vmax.f32 %v4868, 0.0
        %v4871 = vld [vmem:[%s4] sm:$0xf]
        %v4872 = vpack.c.bf16 %v534, %v534
        %v4873 = vpack.c.bf16 %v541, %v541
        %v4874 = vld [vmem:[%s5] sm:$0xf]
        %v4875 = vpack.c.bf16 %v4869, %v4869
        %v4876 = vpack.c.bf16 %v4870, %v4870
        %vm4877 = vcmask 15360
        %v4879 = vsel %vm4877, %v4874, 0
        %v4882 = vsel %vm572, %v4875, 0
        %v4885 = vsel %vm572, %v4876, 0
        %4887 = vmatprep.subr.bf16.mxu0 0
        %4888 = vmatpush1.bf16.msra.mxu0 0
        %4889 = vmatprep.subr.bf16.mxu0 0
        %4890 = vmatpush1.bf16.msra.mxu0 0
        %4891 = vmatprep.subr.bf16.mxu0 0
        %4892 = vmatpush1.bf16.msra.mxu0 0
        %4893 = vmatprep.subr.bf16.mxu0 0
        %4894 = vmatpush1.bf16.msra.mxu0 0
        %4895 = vmatprep.subr.bf16.mxu0 0
        %4896 = vmatpush1.bf16.msra.mxu0 0
        %4897 = vmatprep.subr.bf16.mxu0 0
        %4898 = vmatpush1.bf16.msra.mxu0 0
        %4899 = vmatprep.subr.bf16.mxu0 0
        %4900 = vmatpush1.bf16.msra.mxu0 0
        %4901 = vmatprep.subr.bf16.mxu0 %v4885
        %4902 = vmatpush1.bf16.msra.mxu0 %v4882
        %4903 = vmatprep.subr.bf16.mxu0 0
        %4904 = vmatpush2.bf16.msra.mxu0 0
        %4905 = vmatprep.subr.bf16.mxu0 0
        %4906 = vmatpush2.bf16.msra.mxu0 0
        %4907 = vmatprep.subr.bf16.mxu0 0
        %4908 = vmatpush2.bf16.msra.mxu0 0
        %4909 = vmatprep.subr.bf16.mxu0 0
        %4910 = vmatpush2.bf16.msra.mxu0 0
        %4911 = vmatprep.subr.bf16.mxu0 0
        %4912 = vmatpush2.bf16.msra.mxu0 0
        %4913 = vmatprep.subr.bf16.mxu0 0
        %4914 = vmatpush2.bf16.msra.mxu0 0
        %4915 = vmatprep.subr.bf16.mxu0 0
        %4916 = vmatpush2.bf16.msra.mxu0 0
        %4917 = vmatprep.subr.bf16.mxu0 0
        %4918 = vmatpush2.bf16.msra.mxu0 0
        %4919 = vmatprep.mubr.bf16.mxu0 0
        %4920 = vmatmul.mubr.bf16.gmra.mxu0 %v4879
        %v4921 = vpop.f32.mrf.mxu0
        %v4922 = vadd.f32 0.0, %v4921
        %v4923 = vpop.f32.mrf.mxu0
        %v4924 = vadd.f32 0.0, %v4923
        %v4925 = vpop.f32.mrf.mxu0
        %v4926 = vpop.f32.mrf.mxu0
        %4927 = vdwg.mxu0
        %v4929 = vsel %vm4877, %v4871, 0
        %v4932 = vsel %vm572, %v4872, 0
        %v4935 = vsel %vm572, %v4873, 0
        %4937 = vmatprep.subr.bf16.mxu0 0
        %4938 = vmatpush1.bf16.msra.mxu0 0
        %4939 = vmatprep.subr.bf16.mxu0 0
        %4940 = vmatpush1.bf16.msra.mxu0 0
        %4941 = vmatprep.subr.bf16.mxu0 0
        %4942 = vmatpush1.bf16.msra.mxu0 0
        %4943 = vmatprep.subr.bf16.mxu0 0
        %4944 = vmatpush1.bf16.msra.mxu0 0
        %4945 = vmatprep.subr.bf16.mxu0 0
        %4946 = vmatpush1.bf16.msra.mxu0 0
        %4947 = vmatprep.subr.bf16.mxu0 0
        %4948 = vmatpush1.bf16.msra.mxu0 0
        %4949 = vmatprep.subr.bf16.mxu0 0
        %4950 = vmatpush1.bf16.msra.mxu0 0
        %4951 = vmatprep.subr.bf16.mxu0 %v4935
        %4952 = vmatpush1.bf16.msra.mxu0 %v4932
        %4953 = vmatprep.subr.bf16.mxu0 0
        %4954 = vmatpush2.bf16.msra.mxu0 0
        %4955 = vmatprep.subr.bf16.mxu0 0
        %4956 = vmatpush2.bf16.msra.mxu0 0
        %4957 = vmatprep.subr.bf16.mxu0 0
        %4958 = vmatpush2.bf16.msra.mxu0 0
        %4959 = vmatprep.subr.bf16.mxu0 0
        %4960 = vmatpush2.bf16.msra.mxu0 0
        %4961 = vmatprep.subr.bf16.mxu0 0
        %4962 = vmatpush2.bf16.msra.mxu0 0
        %4963 = vmatprep.subr.bf16.mxu0 0
        %4964 = vmatpush2.bf16.msra.mxu0 0
        %4965 = vmatprep.subr.bf16.mxu0 0
        %4966 = vmatpush2.bf16.msra.mxu0 0
        %4967 = vmatprep.subr.bf16.mxu0 0
        %4968 = vmatpush2.bf16.msra.mxu0 0
        %4969 = vmatprep.mubr.bf16.mxu0 0
        %4970 = vmatmul.mubr.bf16.gmra.mxu0 %v4929
        %v4971 = vpop.f32.mrf.mxu0
        %v4972 = vadd.f32 %v4922, %v4971
        %v4973 = vpop.f32.mrf.mxu0
        %v4974 = vadd.f32 %v4924, %v4973
        %v4975 = vpop.f32.mrf.mxu0
        %v4976 = vpop.f32.mrf.mxu0
        %4977 = vdwg.mxu0
        %v4978 = vld [vmem:[%s6] sm:$0xff]
        %4980 = vset.pattern.permute.xlu0 0
        %4981 = vperm.xlu0 %4980, %v4978
        %v4982 = vpop.permute.xlu0 %4981
        %v4984 = vmul.f32 %v4972, %v4982
        %v4985 = vmul.f32 %v4974, %v4982
        %v4986 = vld [vmem:[%s7] sm:$0xff]
        %4988 = vset.pattern.permute.xlu0 0
        %4989 = vperm.xlu0 %4988, %v4986
        %v4990 = vpop.permute.xlu0 %4989
        %v4992 = vadd.f32 %v4984, %v4990
        %v4993 = vadd.f32 %v4985, %v4990
        %v4994 = vmax.f32 %v4992, 0.0
        %v4995 = vmax.f32 %v4993, 0.0
        %4996 = vst [vmem:[%s323] sm:$0xff] %v4994
        %4997 = vst [vmem:[%s323 + $0x8] sm:$0xff] %v4995
        %s4998 = sand.u32 %s206, 1
        %s4999 = scalar_lea.sflag [#allocation4], %s4998
        %s5000 = sand.u32 %s206, 1
        %s5001 = smul.addr %s5000, 16
        %s5002 = scalar_lea.vmem [#allocation5], %s5001
        // Predicated region
        $region57: #{tpu_custom_call.1} parent=51 // pred_check
          %p5003 = pneg %p216
        $region58: #{tpu_custom_call.1} parent=51 // pred_check_branch
          %5005 = sbr.rel (%p5003) target = $region60
        $region59: #{tpu_custom_call.1} parent=51 // pred_region
          %s5007 = ssub.s32 256, 256
          %5008 = vsyncadd %s4999, %s5007
          %s5009 = smul.addr %s25, 2
          %s5010 = smul.addr %s5009, 128
          %s5011 = scalar_lea.hbm %s8, %s5010
          %s5013 = sshll.u32 %s5002, 4
          %s5014 = int_to_ptr.vmem [resolvable:$true] %s5013
          %5016 = dma.vmem_to_hbm [thread:$0]  %s5014, 256, %s5011, %s4999
        $region60: #{tpu_custom_call.1} parent=51 // pred_fallthru
          _
      $region52: #{tpu_custom_call.1} parent=5 // pred_fallthru
        _
      %p5017 = scmp.le.s32.totalorder 2, %s20
      // Predicated region
      $region61: #{tpu_custom_call.1} parent=5 // pred_check
        %p5018 = pneg %p5017
      $region62: #{tpu_custom_call.1} parent=5 // pred_check_branch
        %5020 = sbr.rel (%p5018) target = $region64
      $region63: #{tpu_custom_call.1} parent=5 // pred_region
        %s5021 = ssub.s32 %s20, 2
        // Predicated region
        $region65: #{tpu_custom_call.1} parent=63 // pred_check
          %p5022 = pneg %p222
        $region66: #{tpu_custom_call.1} parent=63 // pred_check_branch
          %5024 = sbr.rel (%p5022) target = $region68
        $region67: #{tpu_custom_call.1} parent=63 // pred_region
          %s5025 = sand.u32 %s207, 1
          %s5026 = scalar_lea.sflag [#allocation4], %s5025
          %s5027 = sand.u32 %s207, 1
          %s5028 = smul.addr %s5027, 16
          %s5029 = scalar_lea.vmem [#allocation5], %s5028
          %5030 = dma.done %s5026, 256
        $region68: #{tpu_custom_call.1} parent=63 // pred_fallthru
          _
      $region64: #{tpu_custom_call.1} parent=5 // pred_fallthru
        _
    $region6: #{tpu_custom_call.1} parent=1 // loop_footer
      %s24 = sadd.s32 1, %s20
    $region7: #{tpu_custom_call.1} parent=1 // loop_footer_branch
      %19 = sbr.rel target = $region3
    $region8: #{tpu_custom_call.1} parent=1 // loop_exit
      _
    %5031 = vsyncpa [#allocation3], 1
    %s5032 = scalar_lea.sflag [#allocation3], 1
    %5033 = vsyncpa %s5032, 1
    %5034 = vsyncpa [#allocation4], 1
    %s5035 = scalar_lea.sflag [#allocation4], 1
    %5036 = vsyncpa %s5035, 1

</llo_original>
